<compile_context>
chip_gen: v5e
topology: v5e:2x2
jax: 0.10.0
libtpu: 0.0.40
codegen_flags: <defaults>
</compile_context>

<pallas_src>
import functools

import jax
import jax.numpy as jnp
from jax.experimental import pallas as pl
from jax.experimental.pallas import tpu as pltpu

_LANE = 128
_SUBLANE = 8
_VMEM_LIMIT = 32 * 1024 * 1024


def _round_up(v, m):
    return (v + m - 1) // m * m


def _pick_row_tile(m, max_tile):
    """Row-tile size for an (m, ...) slab.

    Prefers: a multiple of 8 that exactly divides m (no hidden jnp.pad slab copies),
    <= max_tile, and leaving >= 2 grid steps when m is large enough (so the "parallel"
    axis can feed both TensorCores on v7x).  Falls back to one whole-array tile
    (always a legal block shape) when m is not a multiple of 8.
    """
    max_tile = max(_SUBLANE, max_tile // _SUBLANE * _SUBLANE)
    if m % _SUBLANE == 0:
        upper = min(max_tile, m)
        if m >= 2 * _SUBLANE:
            upper = min(upper, (m // 2) // _SUBLANE * _SUBLANE)
        upper = max(upper, _SUBLANE)
        for t in range(upper, 0, -_SUBLANE):
            if m % t == 0:
                return t
    # TODO(synk): for very large m that is not a multiple of 8, build the producer
    # directly into a padded-M buffer instead of using one giant tile.
    return m


# ----------------------------------------------------------------------------
# Pallas kernels / wrappers
# ----------------------------------------------------------------------------
def _matmul_kernel(a_ref, w_ref, o_ref):
    o_ref[...] = jnp.dot(a_ref[...], w_ref[...], preferred_element_type=jnp.float32)


def _tiled_matmul(a, w, *, block_m=512):
    """(M, K) @ (K, n_out) -> (M, n_out) fp32, row-tiled over M ("parallel" axis).

    The weight is resident across tiles; its output dim is zero-padded to a multiple
    of 128 lanes so stores are lane-dense.  The row-tile divides M exactly, so no
    padded copy of the (potentially large) activation slab is made.
    """
    M, K = a.shape
    K2, n_out = w.shape
    assert K == K2
    n_pad = _round_up(n_out, _LANE)
    if n_pad != n_out:
        w = jnp.pad(w, ((0, 0), (0, n_pad - n_out)))
    tm = _pick_row_tile(M, block_m)
    out = pl.pallas_call(
        _matmul_kernel,
        out_shape=jax.ShapeDtypeStruct((M, n_pad), jnp.float32),
        grid=(M // tm,),
        in_specs=[pl.BlockSpec((tm, K), lambda i: (i, 0)),
                  pl.BlockSpec((K, n_pad), lambda i: (0, 0))],
        out_specs=pl.BlockSpec((tm, n_pad), lambda i: (i, 0)),
        compiler_params=pltpu.CompilerParams(
            dimension_semantics=("parallel",),
            vmem_limit_bytes=_VMEM_LIMIT),
        cost_estimate=pl.CostEstimate(
            flops=2 * M * K * n_pad,
            transcendentals=0,
            bytes_accessed=4 * (M * K + K * n_pad + M * n_pad)),
    )(a.astype(jnp.float32), w.astype(jnp.float32))
    return out[:, :n_out]


def _fused_sample_conv(p_r, p_c, xq_lt, xq_rb, xq_lb, xq_rt, w2, *, hp, wp,
                       n_taps, c, block_m=512):
    """Fused bilinear weights + 4-corner combine + final conv-as-matmul.

    p_r, p_c : (M, N)   raw (unclipped) sampling rows / cols, f32
    xq_*     : (M, N*c) gathered corner activations, feature order [tap, channel]
    w2       : (N*c, outc) final conv weight matrix
    returns  : (M, outc) f32
    """
    M, NC = xq_lt.shape
    n_out = w2.shape[1]
    out_pad = _round_up(n_out, _LANE)
    if out_pad != n_out:
        w2 = jnp.pad(w2, ((0, 0), (0, out_pad - n_out)))
    # 0/1 expansion matrix: (tm, N) @ (N, N*c) broadcasts each g value over its c
    # channels on the MXU, so per-channel g never round-trips through HBM.
    expand = (jnp.arange(NC, dtype=jnp.int32)[None, :] // c
              == jnp.arange(n_taps, dtype=jnp.int32)[:, None]).astype(jnp.float32)

    # Cap the row tile so the streaming working set (double-buffered) stays ~<=12 MiB.
    bytes_per_row = 4 * (4 * NC + 2 * n_taps + out_pad) * 2
    cap = max(_SUBLANE,
              min(block_m, (12 * 1024 * 1024 // bytes_per_row) // _SUBLANE * _SUBLANE))
    tm = _pick_row_tile(M, cap)

    def kernel(pr_ref, pc_ref, xlt_ref, xrb_ref, xlb_ref, xrt_ref, e_ref, w_ref, o_ref):
        pr = pr_ref[...]
        pc = pc_ref[...]
        fr = jnp.floor(pr)
        fc = jnp.floor(pc)
        qlt_r = jnp.clip(fr, 0.0, hp - 1.0)
        qlt_c = jnp.clip(fc, 0.0, wp - 1.0)
        qrb_r = jnp.clip(fr + 1.0, 0.0, hp - 1.0)
        qrb_c = jnp.clip(fc + 1.0, 0.0, wp - 1.0)
        prc = jnp.clip(pr, 0.0, hp - 1.0)
        pcc = jnp.clip(pc, 0.0, wp - 1.0)
        a_r = 1.0 + (qlt_r - prc)     # lt-row weight
        b_r = 1.0 - (qrb_r - prc)     # rb-row weight
        a_c = 1.0 + (qlt_c - pcc)     # lt-col weight
        b_c = 1.0 - (qrb_c - pcc)     # rb-col weight
        e = e_ref[...]

        def expand_g(g):              # (tm, N) -> (tm, N*c)
            return jnp.dot(g, e, preferred_element_type=jnp.float32)

        comb = (expand_g(a_r * a_c) * xlt_ref[...] +
                expand_g(b_r * b_c) * xrb_ref[...] +
                expand_g(a_r * b_c) * xlb_ref[...] +
                expand_g(b_r * a_c) * xrt_ref[...])
        o_ref[...] = jnp.dot(comb, w_ref[...], preferred_element_type=jnp.float32)

    g_spec = pl.BlockSpec((tm, n_taps), lambda i: (i, 0))
    x_spec = pl.BlockSpec((tm, NC), lambda i: (i, 0))
    out = pl.pallas_call(
        kernel,
        out_shape=jax.ShapeDtypeStruct((M, out_pad), jnp.float32),
        grid=(M // tm,),
        in_specs=[g_spec, g_spec, x_spec, x_spec, x_spec, x_spec,
                  pl.BlockSpec((n_taps, NC), lambda i: (0, 0)),
                  pl.BlockSpec((NC, out_pad), lambda i: (0, 0))],
        out_specs=pl.BlockSpec((tm, out_pad), lambda i: (i, 0)),
        compiler_params=pltpu.CompilerParams(
            dimension_semantics=("parallel",),
            vmem_limit_bytes=_VMEM_LIMIT),
        cost_estimate=pl.CostEstimate(
            flops=2 * M * NC * (out_pad + 4 * n_taps) + 8 * M * NC,
            transcendentals=0,
            bytes_accessed=4 * (4 * M * NC + 2 * M * n_taps + M * out_pad
                                + NC * (n_taps + out_pad))),
    )(p_r, p_c, xq_lt, xq_rb, xq_lb, xq_rt, expand, w2)
    return out[:, :n_out]


# ----------------------------------------------------------------------------
# Conv2d_cd (theta folded into the weights -> one matmul)
# ----------------------------------------------------------------------------
def _im2col_nhwc(x_nhwc, kh, kw, stride, padding):
    """(b,H,W,c) -> (b*ho*wo, kh*kw*c), feature order [ki, kj, c]."""
    # TODO(synk): replace the HBM-materialized im2col slab (9x inflation) with a
    # halo-tiled direct-conv Pallas kernel (9 shifted-window accumulating dots on a
    # resident row band of the padded image).
    b, H, W, c = x_nhwc.shape
    xp = jnp.pad(x_nhwc, ((0, 0), (padding, padding), (padding, padding), (0, 0)))
    Hp, Wp = H + 2 * padding, W + 2 * padding
    ho = (Hp - kh) // stride + 1
    wo = (Wp - kw) // stride + 1
    patches = []
    for i in range(kh):
        for j in range(kw):
            patches.append(xp[:, i:i + (ho - 1) * stride + 1:stride,
                              j:j + (wo - 1) * stride + 1:stride, :])
    col = jnp.stack(patches, axis=3)                          # (b, ho, wo, kh*kw, c)
    return col.reshape(b * ho * wo, kh * kw * c), ho, wo


def conv2d_cd_nhwc(x_nhwc, weight, *, stride=1, padding=1, theta=0.9):
    """Conv2d_cd forward in NHWC: conv(x, W, pad) - theta * conv1x1(x, W.sum(2,3)).

    The diff term is folded into the center-tap rows of the im2col weight matrix
    (exact because padding == (k-1)//2 and dilation == 1), so only one matmul runs.
    Returns (b, ho, wo, co).
    """
    b, H, W, ci = x_nhwc.shape
    co, ci2, kh, kw = weight.shape
    assert ci2 == ci and padding == (kh - 1) // 2 == (kw - 1) // 2
    wmat = jnp.transpose(weight, (0, 2, 3, 1)).reshape(co, kh * kw * ci).T   # (K, co)
    if abs(theta) > 1e-8:
        kdiff = weight.sum(axis=(2, 3)).T                                    # (ci, co)
        ctr = ((kh // 2) * kw + (kw // 2)) * ci
        wmat = wmat.at[ctr:ctr + ci, :].add(-theta * kdiff)
    col, ho, wo = _im2col_nhwc(x_nhwc, kh, kw, stride, padding)
    out = _tiled_matmul(col, wmat, block_m=512)                              # (M, co)
    return out.reshape(b, ho, wo, co)


# ----------------------------------------------------------------------------
# DeformConv2dcd forward
# ----------------------------------------------------------------------------
def deform_conv2dcd_forward(x, p_conv_w, conv_w, *, ks=3, padding=1, stride=1,
                            theta=0.9):
    """x: (b, inc, H, W) NCHW; returns (b, outc, h, w) NCHW (matches PyTorch)."""
    b, c, H, W = x.shape
    N = ks * ks
    outc = conv_w.shape[0]

    x_nhwc = jnp.transpose(x, (0, 2, 3, 1))                  # single boundary transpose

    # offset = Conv2d_cd(x) in NHWC -> already (b, h, w, 2N), no extra relayouts
    offset = conv2d_cd_nhwc(x_nhwc, p_conv_w, stride=stride, padding=1, theta=theta)
    _, h, w, _ = offset.shape

    xp = jnp.pad(x_nhwc, ((0, 0), (padding, padding), (padding, padding), (0, 0)))
    Hp, Wp = H + 2 * padding, W + 2 * padding
    xp_flat = xp.reshape(b, Hp * Wp, c)

    # sampling positions p = p_0 + p_n + offset (rows in [:N], cols in [N:])
    lo, hi = -(ks - 1) // 2, (ks - 1) // 2 + 1
    pn_x, pn_y = jnp.meshgrid(jnp.arange(lo, hi), jnp.arange(lo, hi), indexing='ij')
    p_n = jnp.concatenate([pn_x.reshape(-1), pn_y.reshape(-1)]).astype(jnp.float32)
    p0_x, p0_y = jnp.meshgrid(jnp.arange(1, h * stride + 1, stride),
                              jnp.arange(1, w * stride + 1, stride), indexing='ij')
    p_0 = jnp.concatenate([jnp.broadcast_to(p0_x[..., None], (h, w, N)),
                           jnp.broadcast_to(p0_y[..., None], (h, w, N))],
                          axis=-1).astype(jnp.float32)
    p = offset + p_0[None] + p_n[None, None, None, :]        # (b, h, w, 2N)
    p_r = p[..., :N].reshape(b * h * w, N)                   # sampling rows
    p_c = p[..., N:].reshape(b * h * w, N)                   # sampling cols

    # clipped integer corner coordinates (XLA side, only needed for the gathers)
    fr, fc = jnp.floor(p_r), jnp.floor(p_c)
    qlt_r = jnp.clip(fr, 0, Hp - 1).astype(jnp.int32)
    qlt_c = jnp.clip(fc, 0, Wp - 1).astype(jnp.int32)
    qrb_r = jnp.clip(fr + 1.0, 0, Hp - 1).astype(jnp.int32)
    qrb_c = jnp.clip(fc + 1.0, 0, Wp - 1).astype(jnp.int32)

    def gather(q_r, q_c):
        # Per-image ROW gather: index tensor is (b, h*w*N), never broadcast over c.
        # TODO(synk): the data-dependent corner gather stays in XLA; moving it
        # in-kernel (padded image resident in VMEM + vectorized row gather) would also
        # remove these 4 slab writes/reads but needs a Mosaic dynamic-gather path.
        idx = (q_r * Wp + q_c).reshape(b, h * w * N)
        rows = jax.vmap(lambda img, ids: jnp.take(img, ids, axis=0))(xp_flat, idx)
        return rows.reshape(b * h * w, N * c)                 # feature order [tap, ch]

    xq_lt = gather(qlt_r, qlt_c)
    xq_rb = gather(qrb_r, qrb_c)
    xq_lb = gather(qlt_r, qrb_c)                              # (lt rows, rb cols)
    xq_rt = gather(qrb_r, qlt_c)                              # (rb rows, lt cols)

    # final conv (kernel=ks, stride=ks over the re-tiled x_offset) == per-pixel matmul,
    # fused with the bilinear combine so x_offset never hits HBM.
    w2 = jnp.transpose(conv_w, (0, 2, 3, 1)).reshape(outc, N * c).T          # (N*c, outc)
    out = _fused_sample_conv(p_r, p_c, xq_lt, xq_rb, xq_lb, xq_rt, w2,
                             hp=Hp, wp=Wp, n_taps=N, c=c, block_m=512)       # (M, outc)
    return out.reshape(b, h, w, outc).transpose(0, 3, 1, 2)                  # NCHW boundary


# ----------------------------------------------------------------------------
# Pure-JAX reference (mirrors the PyTorch module step by step) for validation
# ----------------------------------------------------------------------------
def _reference_forward(x, p_conv_w, conv_w, *, ks=3, padding=1, stride=1, theta=0.9):
    dn = ('NCHW', 'OIHW', 'NCHW')
    hp = jax.lax.Precision.HIGHEST
    b, c, H, W = x.shape
    N = ks * ks
    out_normal = jax.lax.conv_general_dilated(
        x, p_conv_w, (stride, stride), [(padding, padding), (padding, padding)],
        dimension_numbers=dn, precision=hp)
    kdiff = p_conv_w.sum(axis=(2, 3))[:, :, None, None]
    out_diff = jax.lax.conv_general_dilated(
        x, kdiff, (stride, stride), [(0, 0), (0, 0)], dimension_numbers=dn, precision=hp)
    offset = out_normal - theta * out_diff                    # (b, 2N, h, w)
    _, _, h, w = offset.shape

    xp = jnp.pad(x, ((0, 0), (0, 0), (padding, padding), (padding, padding)))
    Hp, Wp = H + 2 * padding, W + 2 * padding

    lo, hi = -(ks - 1) // 2, (ks - 1) // 2 + 1
    pn_x, pn_y = jnp.meshgrid(jnp.arange(lo, hi), jnp.arange(lo, hi), indexing='ij')
    p_n = jnp.concatenate([pn_x.reshape(-1), pn_y.reshape(-1)]).astype(jnp.float32)
    p0_x, p0_y = jnp.meshgrid(jnp.arange(1, h * stride + 1, stride),
                              jnp.arange(1, w * stride + 1, stride), indexing='ij')
    p_0 = jnp.concatenate([jnp.broadcast_to(p0_x[None], (N, h, w)),
                           jnp.broadcast_to(p0_y[None], (N, h, w))], 0).astype(jnp.float32)
    p = (p_0[None] + p_n[None, :, None, None] + offset).transpose(0, 2, 3, 1)

    def clip_rc(t):
        return jnp.concatenate([jnp.clip(t[..., :N], 0, Hp - 1),
                                jnp.clip(t[..., N:], 0, Wp - 1)], -1)

    q_lt = clip_rc(jnp.floor(p)).astype(jnp.int32)
    q_rb = clip_rc(jnp.floor(p) + 1.0).astype(jnp.int32)
    q_lb = jnp.concatenate([q_lt[..., :N], q_rb[..., N:]], -1)
    q_rt = jnp.concatenate([q_rb[..., :N], q_lt[..., N:]], -1)
    p_c = clip_rc(p)

    def g_of(q, sx, sy):
        return ((1.0 + sx * (q[..., :N].astype(jnp.float32) - p_c[..., :N])) *
                (1.0 + sy * (q[..., N:].astype(jnp.float32) - p_c[..., N:])))

    xp_flat = xp.reshape(b, c, Hp * Wp)

    def gather(q):
        idx = (q[..., :N] * Wp + q[..., N:]).reshape(b, 1, h * w * N)
        idx = jnp.broadcast_to(idx, (b, c, h * w * N))
        return jnp.take_along_axis(xp_flat, idx, axis=-1).reshape(b, c, h, w, N)

    x_off = (g_of(q_lt, 1, 1)[:, None] * gather(q_lt) +
             g_of(q_rb, -1, -1)[:, None] * gather(q_rb) +
             g_of(q_lb, 1, -1)[:, None] * gather(q_lb) +
             g_of(q_rt, -1, 1)[:, None] * gather(q_rt))
    xo = jnp.concatenate([x_off[..., s:s + ks].reshape(b, c, h, w * ks)
                          for s in range(0, N, ks)], axis=-1)
    xo = xo.reshape(b, c, h * ks, w * ks)
    return jax.lax.conv_general_dilated(xo, conv_w, (ks, ks), [(0, 0), (0, 0)],
                                        dimension_numbers=dn, precision=hp)


# ----------------------------------------------------------------------------
if __name__ == "__main__":
    key = jax.random.PRNGKey(0)
    k1, k2, k3 = jax.random.split(key, 3)

    b, inc, outc, H, W = 2, 4, 8, 16, 16
    ks = 3

    x = jax.random.normal(k1, (b, inc, H, W), jnp.float32)
    # deterministic synthetic weights (shapes from the module __init__, bias-free)
    p_conv_w = 0.1 * jax.random.normal(k2, (2 * ks * ks, inc, ks, ks), jnp.float32)
    conv_w = 0.1 * jax.random.normal(k3, (outc, inc, ks, ks), jnp.float32)

    fwd = jax.jit(functools.partial(deform_conv2dcd_forward, ks=ks, padding=1,
                                    stride=1, theta=0.9))
    out = fwd(x, p_conv_w, conv_w)
    jax.block_until_ready(out)
    assert out.shape == (b, outc, H, W)

    ref = _reference_forward(x, p_conv_w, conv_w, ks=ks, padding=1, stride=1, theta=0.9)
    err = float(jnp.max(jnp.abs(out - ref)))
    assert err < 1e-2, f"mismatch vs pure-JAX reference: max abs err = {err}"

    print("KERNEL_OK")
</pallas_src>

<mosaic_0001>
module attributes {stable_mosaic.version = 11 : i64} {
  func.func @_matmul_kernel(%arg0: i32, %arg1: memref<256x36xf32, #tpu.memory_space<vmem>>, %arg2: memref<36x128xf32, #tpu.memory_space<vmem>>, %arg3: memref<256x128xf32, #tpu.memory_space<vmem>>) attributes {dimension_semantics = [#tpu.dimension_semantics<parallel>], iteration_bounds = array<i64: 2>, scalar_prefetch = 0 : i64, scratch_operands = 0 : i64, tpu.core_type = #tpu.core_type<tc>, window_params = [{transform_indices = @transform_0, window_bounds = array<i64: 256, 36>}, {pipeline_mode = #tpu.pipeline_mode<synchronous>, transform_indices = @transform_1, window_bounds = array<i64: 36, 128>}, {transform_indices = @transform_2, window_bounds = array<i64: 256, 128>}]} {
    %c0 = arith.constant 0 : index
    %c0_0 = arith.constant 0 : index
    %0 = vector.load %arg1[%c0, %c0_0] : memref<256x36xf32, #tpu.memory_space<vmem>>, vector<256x36xf32>
    %c0_1 = arith.constant 0 : index
    %c0_2 = arith.constant 0 : index
    %1 = vector.load %arg2[%c0_1, %c0_2] : memref<36x128xf32, #tpu.memory_space<vmem>>, vector<36x128xf32>
    %cst = arith.constant dense<0.000000e+00> : vector<256x128xf32>
    %2 = tpu.matmul %0, %1, %cst {dimension_numbers = #tpu.dot_dimension_numbers<[1], [0], [0], [1], [0, 0, 1, 1], [], []>} : vector<256x36xf32>, vector<36x128xf32>, vector<256x128xf32> -> vector<256x128xf32>
    %c0_3 = arith.constant 0 : index
    %c0_4 = arith.constant 0 : index
    %3 = vector.load %arg3[%c0_3, %c0_4] : memref<256x128xf32, #tpu.memory_space<vmem>>, vector<256x128xf32>
    tpu.vector_store %arg3[%c0_3, %c0_4], %2 {strides = array<i32>} : memref<256x128xf32, #tpu.memory_space<vmem>>, vector<256x128xf32>,
    return
  }
  func.func @transform_0(%arg0: i32) -> (i32, i32) {
    %c0_i32 = arith.constant 0 : i32
    %c0_i32_0 = arith.constant 0 : i32
    return %arg0, %c0_i32 : i32, i32
  }
  func.func @transform_1(%arg0: i32) -> (i32, i32) {
    %c0_i32 = arith.constant 0 : i32
    %c0_i32_0 = arith.constant 0 : i32
    %c0_i32_1 = arith.constant 0 : i32
    return %c0_i32, %c0_i32_0 : i32, i32
  }
  func.func @transform_2(%arg0: i32) -> (i32, i32) {
    %c0_i32 = arith.constant 0 : i32
    %c0_i32_0 = arith.constant 0 : i32
    return %arg0, %c0_i32 : i32, i32
  }
}

module attributes {stable_mosaic.version = 11 : i64} {
  func.func @kernel(%arg0: i32, %arg1: memref<256x9xf32, #tpu.memory_space<vmem>>, %arg2: memref<256x9xf32, #tpu.memory_space<vmem>>, %arg3: memref<256x36xf32, #tpu.memory_space<vmem>>, %arg4: memref<256x36xf32, #tpu.memory_space<vmem>>, %arg5: memref<256x36xf32, #tpu.memory_space<vmem>>, %arg6: memref<256x36xf32, #tpu.memory_space<vmem>>, %arg7: memref<9x36xf32, #tpu.memory_space<vmem>>, %arg8: memref<36x128xf32, #tpu.memory_space<vmem>>, %arg9: memref<256x128xf32, #tpu.memory_space<vmem>>) attributes {dimension_semantics = [#tpu.dimension_semantics<parallel>], iteration_bounds = array<i64: 2>, scalar_prefetch = 0 : i64, scratch_operands = 0 : i64, tpu.core_type = #tpu.core_type<tc>, window_params = [{transform_indices = @transform_0, window_bounds = array<i64: 256, 9>}, {transform_indices = @transform_1, window_bounds = array<i64: 256, 9>}, {transform_indices = @transform_2, window_bounds = array<i64: 256, 36>}, {transform_indices = @transform_3, window_bounds = array<i64: 256, 36>}, {transform_indices = @transform_4, window_bounds = array<i64: 256, 36>}, {transform_indices = @transform_5, window_bounds = array<i64: 256, 36>}, {pipeline_mode = #tpu.pipeline_mode<synchronous>, transform_indices = @transform_6, window_bounds = array<i64: 9, 36>}, {pipeline_mode = #tpu.pipeline_mode<synchronous>, transform_indices = @transform_7, window_bounds = array<i64: 36, 128>}, {transform_indices = @transform_8, window_bounds = array<i64: 256, 128>}]} {
    %c0 = arith.constant 0 : index
    %c0_0 = arith.constant 0 : index
    %0 = vector.load %arg1[%c0, %c0_0] : memref<256x9xf32, #tpu.memory_space<vmem>>, vector<256x9xf32>
    %c0_1 = arith.constant 0 : index
    %c0_2 = arith.constant 0 : index
    %1 = vector.load %arg2[%c0_1, %c0_2] : memref<256x9xf32, #tpu.memory_space<vmem>>, vector<256x9xf32>
    %2 = math.floor %0 : vector<256x9xf32>
    %3 = math.floor %1 : vector<256x9xf32>
    %cst = arith.constant 0.000000e+00 : f32
    %cst_3 = arith.constant 1.700000e+01 : f32
    %4 = vector.broadcast %cst : f32 to vector<256x9xf32>
    %5 = arith.maximumf %4, %2 : vector<256x9xf32>
    %6 = vector.broadcast %cst_3 : f32 to vector<256x9xf32>
    %7 = arith.minimumf %6, %5 : vector<256x9xf32>
    %cst_4 = arith.constant 0.000000e+00 : f32
    %cst_5 = arith.constant 1.700000e+01 : f32
    %8 = vector.broadcast %cst_4 : f32 to vector<256x9xf32>
    %9 = arith.maximumf %8, %3 : vector<256x9xf32>
    %10 = vector.broadcast %cst_5 : f32 to vector<256x9xf32>
    %11 = arith.minimumf %10, %9 : vector<256x9xf32>
    %cst_6 = arith.constant 1.000000e+00 : f32
    %12 = vector.broadcast %cst_6 : f32 to vector<256x9xf32>
    %13 = arith.addf %2, %12 : vector<256x9xf32>
    %cst_7 = arith.constant 0.000000e+00 : f32
    %cst_8 = arith.constant 1.700000e+01 : f32
    %14 = vector.broadcast %cst_7 : f32 to vector<256x9xf32>
    %15 = arith.maximumf %14, %13 : vector<256x9xf32>
    %16 = vector.broadcast %cst_8 : f32 to vector<256x9xf32>
    %17 = arith.minimumf %16, %15 : vector<256x9xf32>
    %cst_9 = arith.constant 1.000000e+00 : f32
    %18 = vector.broadcast %cst_9 : f32 to vector<256x9xf32>
    %19 = arith.addf %3, %18 : vector<256x9xf32>
    %cst_10 = arith.constant 0.000000e+00 : f32
    %cst_11 = arith.constant 1.700000e+01 : f32
    %20 = vector.broadcast %cst_10 : f32 to vector<256x9xf32>
    %21 = arith.maximumf %20, %19 : vector<256x9xf32>
    %22 = vector.broadcast %cst_11 : f32 to vector<256x9xf32>
    %23 = arith.minimumf %22, %21 : vector<256x9xf32>
    %cst_12 = arith.constant 0.000000e+00 : f32
    %cst_13 = arith.constant 1.700000e+01 : f32
    %24 = vector.broadcast %cst_12 : f32 to vector<256x9xf32>
    %25 = arith.maximumf %24, %0 : vector<256x9xf32>
    %26 = vector.broadcast %cst_13 : f32 to vector<256x9xf32>
    %27 = arith.minimumf %26, %25 : vector<256x9xf32>
    %cst_14 = arith.constant 0.000000e+00 : f32
    %cst_15 = arith.constant 1.700000e+01 : f32
    %28 = vector.broadcast %cst_14 : f32 to vector<256x9xf32>
    %29 = arith.maximumf %28, %1 : vector<256x9xf32>
    %30 = vector.broadcast %cst_15 : f32 to vector<256x9xf32>
    %31 = arith.minimumf %30, %29 : vector<256x9xf32>
    %32 = arith.subf %7, %27 : vector<256x9xf32>
    %cst_16 = arith.constant 1.000000e+00 : f32
    %33 = vector.broadcast %cst_16 : f32 to vector<256x9xf32>
    %34 = arith.addf %33, %32 : vector<256x9xf32>
    %35 = arith.subf %17, %27 : vector<256x9xf32>
    %cst_17 = arith.constant 1.000000e+00 : f32
    %36 = vector.broadcast %cst_17 : f32 to vector<256x9xf32>
    %37 = arith.subf %36, %35 : vector<256x9xf32>
    %38 = arith.subf %11, %31 : vector<256x9xf32>
    %cst_18 = arith.constant 1.000000e+00 : f32
    %39 = vector.broadcast %cst_18 : f32 to vector<256x9xf32>
    %40 = arith.addf %39, %38 : vector<256x9xf32>
    %41 = arith.subf %23, %31 : vector<256x9xf32>
    %cst_19 = arith.constant 1.000000e+00 : f32
    %42 = vector.broadcast %cst_19 : f32 to vector<256x9xf32>
    %43 = arith.subf %42, %41 : vector<256x9xf32>
    %c0_20 = arith.constant 0 : index
    %c0_21 = arith.constant 0 : index
    %44 = vector.load %arg7[%c0_20, %c0_21] : memref<9x36xf32, #tpu.memory_space<vmem>>, vector<9x36xf32>
    %45 = arith.mulf %34, %40 : vector<256x9xf32>
    %cst_22 = arith.constant dense<0.000000e+00> : vector<256x36xf32>
    %46 = tpu.matmul %45, %44, %cst_22 {dimension_numbers = #tpu.dot_dimension_numbers<[1], [0], [0], [1], [0, 0, 1, 1], [], []>} : vector<256x9xf32>, vector<9x36xf32>, vector<256x36xf32> -> vector<256x36xf32>
    %c0_23 = arith.constant 0 : index
    %c0_24 = arith.constant 0 : index
    %47 = vector.load %arg3[%c0_23, %c0_24] : memref<256x36xf32, #tpu.memory_space<vmem>>, vector<256x36xf32>
    %48 = arith.mulf %46, %47 : vector<256x36xf32>
    %49 = arith.mulf %37, %43 : vector<256x9xf32>
    %cst_25 = arith.constant dense<0.000000e+00> : vector<256x36xf32>
    %50 = tpu.matmul %49, %44, %cst_25 {dimension_numbers = #tpu.dot_dimension_numbers<[1], [0], [0], [1], [0, 0, 1, 1], [], []>} : vector<256x9xf32>, vector<9x36xf32>, vector<256x36xf32> -> vector<256x36xf32>
    %c0_26 = arith.constant 0 : index
    %c0_27 = arith.constant 0 : index
    %51 = vector.load %arg4[%c0_26, %c0_27] : memref<256x36xf32, #tpu.memory_space<vmem>>, vector<256x36xf32>
    %52 = arith.mulf %50, %51 : vector<256x36xf32>
    %53 = arith.addf %48, %52 : vector<256x36xf32>
    %54 = arith.mulf %34, %43 : vector<256x9xf32>
    %cst_28 = arith.constant dense<0.000000e+00> : vector<256x36xf32>
    %55 = tpu.matmul %54, %44, %cst_28 {dimension_numbers = #tpu.dot_dimension_numbers<[1], [0], [0], [1], [0, 0, 1, 1], [], []>} : vector<256x9xf32>, vector<9x36xf32>, vector<256x36xf32> -> vector<256x36xf32>
    %c0_29 = arith.constant 0 : index
    %c0_30 = arith.constant 0 : index
    %56 = vector.load %arg5[%c0_29, %c0_30] : memref<256x36xf32, #tpu.memory_space<vmem>>, vector<256x36xf32>
    %57 = arith.mulf %55, %56 : vector<256x36xf32>
    %58 = arith.addf %53, %57 : vector<256x36xf32>
    %59 = arith.mulf %37, %40 : vector<256x9xf32>
    %cst_31 = arith.constant dense<0.000000e+00> : vector<256x36xf32>
    %60 = tpu.matmul %59, %44, %cst_31 {dimension_numbers = #tpu.dot_dimension_numbers<[1], [0], [0], [1], [0, 0, 1, 1], [], []>} : vector<256x9xf32>, vector<9x36xf32>, vector<256x36xf32> -> vector<256x36xf32>
    %c0_32 = arith.constant 0 : index
    %c0_33 = arith.constant 0 : index
    %61 = vector.load %arg6[%c0_32, %c0_33] : memref<256x36xf32, #tpu.memory_space<vmem>>, vector<256x36xf32>
    %62 = arith.mulf %60, %61 : vector<256x36xf32>
    %63 = arith.addf %58, %62 : vector<256x36xf32>
    %c0_34 = arith.constant 0 : index
    %c0_35 = arith.constant 0 : index
    %64 = vector.load %arg8[%c0_34, %c0_35] : memref<36x128xf32, #tpu.memory_space<vmem>>, vector<36x128xf32>
    %cst_36 = arith.constant dense<0.000000e+00> : vector<256x128xf32>
    %65 = tpu.matmul %63, %64, %cst_36 {dimension_numbers = #tpu.dot_dimension_numbers<[1], [0], [0], [1], [0, 0, 1, 1], [], []>} : vector<256x36xf32>, vector<36x128xf32>, vector<256x128xf32> -> vector<256x128xf32>
    %c0_37 = arith.constant 0 : index
    %c0_38 = arith.constant 0 : index
    %66 = vector.load %arg9[%c0_37, %c0_38] : memref<256x128xf32, #tpu.memory_space<vmem>>, vector<256x128xf32>
    tpu.vector_store %arg9[%c0_37, %c0_38], %65 {strides = array<i32>} : memref<256x128xf32, #tpu.memory_space<vmem>>, vector<256x128xf32>,
    return
  }
  func.func @transform_0(%arg0: i32) -> (i32, i32) {
    %c0_i32 = arith.constant 0 : i32
    %c0_i32_0 = arith.constant 0 : i32
    return %arg0, %c0_i32 : i32, i32
  }
  func.func @transform_1(%arg0: i32) -> (i32, i32) {
    %c0_i32 = arith.constant 0 : i32
    %c0_i32_0 = arith.constant 0 : i32
    return %arg0, %c0_i32 : i32, i32
  }
  func.func @transform_2(%arg0: i32) -> (i32, i32) {
    %c0_i32 = arith.constant 0 : i32
    %c0_i32_0 = arith.constant 0 : i32
    return %arg0, %c0_i32 : i32, i32
  }
  func.func @transform_3(%arg0: i32) -> (i32, i32) {
    %c0_i32 = arith.constant 0 : i32
    %c0_i32_0 = arith.constant 0 : i32
    return %arg0, %c0_i32 : i32, i32
  }
  func.func @transform_4(%arg0: i32) -> (i32, i32) {
    %c0_i32 = arith.constant 0 : i32
    %c0_i32_0 = arith.constant 0 : i32
    return %arg0, %c0_i32 : i32, i32
  }
  func.func @transform_5(%arg0: i32) -> (i32, i32) {
    %c0_i32 = arith.constant 0 : i32
    %c0_i32_0 = arith.constant 0 : i32
    return %arg0, %c0_i32 : i32, i32
  }
  func.func @transform_6(%arg0: i32) -> (i32, i32) {
    %c0_i32 = arith.constant 0 : i32
    %c0_i32_0 = arith.constant 0 : i32
    %c0_i32_1 = arith.constant 0 : i32
    return %c0_i32, %c0_i32_0 : i32, i32
  }
  func.func @transform_7(%arg0: i32) -> (i32, i32) {
    %c0_i32 = arith.constant 0 : i32
    %c0_i32_0 = arith.constant 0 : i32
    %c0_i32_1 = arith.constant 0 : i32
    return %c0_i32, %c0_i32_0 : i32, i32
  }
  func.func @transform_8(%arg0: i32) -> (i32, i32) {
    %c0_i32 = arith.constant 0 : i32
    %c0_i32_0 = arith.constant 0 : i32
    return %arg0, %c0_i32 : i32, i32
  }
}

</mosaic_0001>

<llo_original>
// kernel: deform_conv2dcd_forward.2
$region0: #{deform_conv2dcd_forward.2}
  #allocation0 [shape = 'u32[]', space=smem, size = 0x4, offset = 0x4, fixed_abs, tag = 'smem constant byte address 0x4 - core index']
  #allocation1 [shape = 'u32[72,128]{1,0:T(1,128)}', space=vmem, size = 0x9000, scoped, tag = 'internal scratch']
  %s0 = inlined_call_operand.vmem [shape: f32[512,36], index: 0, kind: input, shape index: {}]
  %s1 = inlined_call_operand.vmem [shape: f32[36,128], index: 1, kind: input, shape index: {}]
  %s2 = inlined_call_operand.vmem [shape: f32[512,128], index: 2, kind: output, shape index: {}]
  %s3 = sld [smem:[#allocation0]]
  $region41: #{deform_conv2dcd_forward.2} parent=0
    _
  %s5 = ssub.s32 1, %s3
  %s6 = scalar_select 0, %s5, %s3
  loop: start=0, step=1, limit=4
  $region2: #{deform_conv2dcd_forward.2} parent=0 // loop_pre_header
    _
  $region3: #{deform_conv2dcd_forward.2} parent=0 // loop_header
    %s8 = sphi 0, %s12
    %p9 = scmp.ge.s32.totalorder %s8, 4
    %s18 = sphi 0, %s20
    %s21 = sphi 0, %s18
    %s22 = sphi 0, %s21
    %s38 = sphi 0, %s22
    %s42 = sphi 0, %s42
    %s44 = sphi 0, %s42
    %s45 = sphi 0, %s44
    %s59 = sphi 0, %s45
    %s65 = sphi 0, %s67
    %s68 = sphi 0, %s65
    %s69 = sphi 0, %s68
    %s85 = sphi 0, %s69
  $region4: #{deform_conv2dcd_forward.2} parent=0 // loop_header_branch
    %11 = sbr.rel (%p9) target = $region8
  $region5: #{deform_conv2dcd_forward.2} parent=0 // loop_body
    %s13 = ssub.s32 %s8, 1
    %s14 = ssub.s32 %s8, 2
    %s15 = sadd.s32 %s8, 1
    %s16 = ssub.s32 %s8, %s15
    %p17 = scmp.eq.s32.totalorder %s16, 0
    %s19 = sadd.s32 %s18, 1
    %s20 = scalar_select %p17, %s18, %s19
    %p23 = pneg %p17
    %p24 = scmp.eq.s32.totalorder %s8, 1
    %p25 = por %p23, %p24
    %p26 = scmp.ne.s32.totalorder %s18, %s21
    %p27 = scmp.eq.s32.totalorder %s8, 0
    %p28 = por %p26, %p27
    %p29 = scmp.ne.s32.totalorder %s18, %s21
    %p30 = scmp.eq.s32.totalorder %s13, 1
    %p31 = por %p29, %p30
    %p32 = scmp.ne.s32.totalorder %s21, %s22
    %p33 = scmp.eq.s32.totalorder %s13, 0
    %p34 = por %p32, %p33
    %p35 = scmp.ne.s32.totalorder %s21, %s22
    %p36 = scmp.eq.s32.totalorder %s14, 1
    %p37 = por %p35, %p36
    %p39 = scmp.ne.s32.totalorder %s22, %s38
    %p40 = scmp.eq.s32.totalorder %s14, 0
    %p41 = por %p39, %p40
    %s43 = sadd.s32 %s42, 1
    %p46 = scmp.eq.s32.totalorder %s8, 1
    %p47 = scmp.ne.s32.totalorder %s42, %s44
    %p48 = scmp.eq.s32.totalorder %s8, 0
    %p49 = por %p47, %p48
    %p50 = scmp.ne.s32.totalorder %s42, %s44
    %p51 = scmp.eq.s32.totalorder %s13, 1
    %p52 = por %p50, %p51
    %p53 = scmp.ne.s32.totalorder %s44, %s45
    %p54 = scmp.eq.s32.totalorder %s13, 0
    %p55 = por %p53, %p54
    %p56 = scmp.ne.s32.totalorder %s44, %s45
    %p57 = scmp.eq.s32.totalorder %s14, 1
    %p58 = por %p56, %p57
    %p60 = scmp.ne.s32.totalorder %s45, %s59
    %p61 = scmp.eq.s32.totalorder %s14, 0
    %p62 = por %p60, %p61
    %s63 = ssub.s32 %s8, %s15
    %p64 = scmp.eq.s32.totalorder %s63, 0
    %s66 = sadd.s32 %s65, 1
    %s67 = scalar_select %p64, %s65, %s66
    %p70 = pneg %p64
    %p71 = scmp.eq.s32.totalorder %s8, 1
    %p72 = por %p70, %p71
    %p73 = scmp.ne.s32.totalorder %s65, %s68
    %p74 = scmp.eq.s32.totalorder %s8, 0
    %p75 = por %p73, %p74
    %p76 = scmp.ne.s32.totalorder %s65, %s68
    %p77 = scmp.eq.s32.totalorder %s13, 1
    %p78 = por %p76, %p77
    %p79 = scmp.ne.s32.totalorder %s68, %s69
    %p80 = scmp.eq.s32.totalorder %s13, 0
    %p81 = por %p79, %p80
    %p82 = scmp.ne.s32.totalorder %s68, %s69
    %p83 = scmp.eq.s32.totalorder %s14, 1
    %p84 = por %p82, %p83
    %p86 = scmp.ne.s32.totalorder %s69, %s85
    %p87 = scmp.eq.s32.totalorder %s14, 0
    %p88 = por %p86, %p87
    %p89 = scmp.le.s32.totalorder 1, %s8
    %p90 = scmp.lt.s32.totalorder %s8, 3
    %p91 = pnand %p89, %p90
    %p92 = pneg %p91
    // Predicated region
    $region9: #{deform_conv2dcd_forward.2} parent=5 // pred_check
      _
    $region10: #{deform_conv2dcd_forward.2} parent=5 // pred_check_branch
      %94 = sbr.rel (%p91) target = $region12
    $region11: #{deform_conv2dcd_forward.2} parent=5 // pred_region
      %s95 = ssub.s32 %s8, 1
      // Predicated region
      $region13: #{deform_conv2dcd_forward.2} parent=11 // pred_check
        %p96 = pneg %p55
      $region14: #{deform_conv2dcd_forward.2} parent=11 // pred_check_branch
        %98 = sbr.rel (%p96) target = $region16
      $region15: #{deform_conv2dcd_forward.2} parent=11 // pred_region
        _
      $region16: #{deform_conv2dcd_forward.2} parent=11 // pred_fallthru
        _
    $region12: #{deform_conv2dcd_forward.2} parent=5 // pred_fallthru
      _
    %p99 = scmp.lt.s32.totalorder %s8, 2
    // Predicated region
    $region17: #{deform_conv2dcd_forward.2} parent=5 // pred_check
      %p100 = pneg %p99
    $region18: #{deform_conv2dcd_forward.2} parent=5 // pred_check_branch
      %102 = sbr.rel (%p100) target = $region20
    $region19: #{deform_conv2dcd_forward.2} parent=5 // pred_region
      // Predicated region
      $region21: #{deform_conv2dcd_forward.2} parent=19 // pred_check
        %p103 = pneg %p28
      $region22: #{deform_conv2dcd_forward.2} parent=19 // pred_check_branch
        %105 = sbr.rel (%p103) target = $region24
      $region23: #{deform_conv2dcd_forward.2} parent=19 // pred_region
        %s106 = smul.u32 32, %s8
        %p107 = scmp.lt.s32.totalorder %s106, 63
        %s108 = scalar_select %p107, %s106, 63
        %s109 = smul.addr %s108, 8
        %s110 = scalar_lea.vmem %s0, %s109
        %s111 = smul.u32 32, %s8
      $region24: #{deform_conv2dcd_forward.2} parent=19 // pred_fallthru
        _
    $region20: #{deform_conv2dcd_forward.2} parent=5 // pred_fallthru
      _
    %p112 = scmp.le.s32.totalorder 1, %s8
    %p113 = scmp.lt.s32.totalorder %s8, 3
    %p114 = pnand %p112, %p113
    %p115 = pneg %p114
    // Predicated region
    $region25: #{deform_conv2dcd_forward.2} parent=5 // pred_check
      _
    $region26: #{deform_conv2dcd_forward.2} parent=5 // pred_check_branch
      %117 = sbr.rel (%p114) target = $region28
    $region27: #{deform_conv2dcd_forward.2} parent=5 // pred_region
      %s118 = ssub.s32 %s8, 1
      %s119 = smul.u32 32, %s13
      %p120 = scmp.lt.s32.totalorder %s119, 63
      %s121 = scalar_select %p120, %s119, 63
      %s122 = smul.addr %s121, 8
      %s123 = scalar_lea.vmem %s0, %s122
      %p124 = pneg %p34
      %p125 = pneg %p31
      %p126 = pneg %p55
      %p127 = pneg %p52
      %p128 = pneg %p81
      %p129 = pneg %p78
      %s130 = smul.u32 32, %s13
      %p131 = scmp.lt.s32.totalorder %s130, 63
      %s132 = scalar_select %p131, %s130, 63
      %s133 = smul.addr %s132, 8
      %s134 = scalar_lea.vmem %s2, %s133
      %s135 = smul.u32 32, %s13
      %p136 = scmp.lt.s32.totalorder %s135, 63
      %s137 = scalar_select %p136, %s135, 63
      %s138 = smul.addr %s137, 8
      %s139 = scalar_lea.vmem %s0, %s138
      %s140 = smul.u32 32, %s13
      %s141 = smul.u32 32, %s13
      %p142 = scmp.lt.s32.totalorder %s141, 63
      %s143 = scalar_select %p142, %s141, 63
      %s144 = smul.addr %s143, 8
      %s145 = scalar_lea.vmem %s2, %s144
      %s146 = smul.u32 32, %s13
      %v147 = vld [vmem:[%s139] sm:$0xff]
      %v148 = vld [vmem:[%s139 + $0x8] sm:$0xff]
      %v149 = vld [vmem:[%s139 + $0x10] sm:$0xff]
      %v150 = vld [vmem:[%s139 + $0x18] sm:$0xff]
      %v151 = vld [vmem:[%s139 + $0x20] sm:$0xff]
      %v152 = vld [vmem:[%s139 + $0x28] sm:$0xff]
      %v153 = vld [vmem:[%s139 + $0x30] sm:$0xff]
      %v154 = vld [vmem:[%s139 + $0x38] sm:$0xff]
      %v155 = vld [vmem:[%s139 + $0x40] sm:$0xff]
      %v156 = vld [vmem:[%s139 + $0x48] sm:$0xff]
      %v157 = vld [vmem:[%s139 + $0x50] sm:$0xff]
      %v158 = vld [vmem:[%s139 + $0x58] sm:$0xff]
      %v159 = vld [vmem:[%s139 + $0x60] sm:$0xff]
      %v160 = vld [vmem:[%s139 + $0x68] sm:$0xff]
      %v161 = vld [vmem:[%s139 + $0x70] sm:$0xff]
      %v162 = vld [vmem:[%s139 + $0x78] sm:$0xff]
      %v163 = vld [vmem:[%s139 + $0x80] sm:$0xff]
      %v164 = vld [vmem:[%s139 + $0x88] sm:$0xff]
      %v165 = vld [vmem:[%s139 + $0x90] sm:$0xff]
      %v166 = vld [vmem:[%s139 + $0x98] sm:$0xff]
      %v167 = vld [vmem:[%s139 + $0xa0] sm:$0xff]
      %v168 = vld [vmem:[%s139 + $0xa8] sm:$0xff]
      %v169 = vld [vmem:[%s139 + $0xb0] sm:$0xff]
      %v170 = vld [vmem:[%s139 + $0xb8] sm:$0xff]
      %v171 = vld [vmem:[%s139 + $0xc0] sm:$0xff]
      %v172 = vld [vmem:[%s139 + $0xc8] sm:$0xff]
      %v173 = vld [vmem:[%s139 + $0xd0] sm:$0xff]
      %v174 = vld [vmem:[%s139 + $0xd8] sm:$0xff]
      %v175 = vld [vmem:[%s139 + $0xe0] sm:$0xff]
      %v176 = vld [vmem:[%s139 + $0xe8] sm:$0xff]
      %v177 = vld [vmem:[%s139 + $0xf0] sm:$0xff]
      %v178 = vld [vmem:[%s139 + $0xf8] sm:$0xff]
      %v179 = vld [vmem:[%s1] sm:$0xff]
      %v180 = vld [vmem:[%s1 + $0x8] sm:$0xff]
      %v181 = vld [vmem:[%s1 + $0x10] sm:$0xff]
      %v182 = vld [vmem:[%s1 + $0x18] sm:$0xff]
      %v183 = vld [vmem:[%s1 + $0x20] sm:$0xf]
      %vm184 = vcmask 293888
      %v186 = vsel %vm184, %v147, 0
      %v189 = vsel %vm184, %v148, 0
      %v192 = vsel %vm184, %v149, 0
      %v195 = vsel %vm184, %v150, 0
      %v198 = vsel %vm184, %v151, 0
      %v201 = vsel %vm184, %v152, 0
      %v204 = vsel %vm184, %v153, 0
      %v207 = vsel %vm184, %v154, 0
      %v210 = vsel %vm184, %v155, 0
      %v213 = vsel %vm184, %v156, 0
      %v216 = vsel %vm184, %v157, 0
      %v219 = vsel %vm184, %v158, 0
      %v222 = vsel %vm184, %v159, 0
      %v225 = vsel %vm184, %v160, 0
      %v228 = vsel %vm184, %v161, 0
      %v231 = vsel %vm184, %v162, 0
      %v234 = vsel %vm184, %v163, 0
      %v237 = vsel %vm184, %v164, 0
      %v240 = vsel %vm184, %v165, 0
      %v243 = vsel %vm184, %v166, 0
      %v246 = vsel %vm184, %v167, 0
      %v249 = vsel %vm184, %v168, 0
      %v252 = vsel %vm184, %v169, 0
      %v255 = vsel %vm184, %v170, 0
      %v258 = vsel %vm184, %v171, 0
      %v261 = vsel %vm184, %v172, 0
      %v264 = vsel %vm184, %v173, 0
      %v267 = vsel %vm184, %v174, 0
      %v270 = vsel %vm184, %v175, 0
      %v273 = vsel %vm184, %v176, 0
      %v276 = vsel %vm184, %v177, 0
      %v279 = vsel %vm184, %v178, 0
      %vm281 = vcmask 1043456
      %v283 = vsel %vm281, %v183, 0
      %285 = vmatpush.msra.mxu0 0.0
      %286 = vmatpush.msra.mxu0 0.0
      %287 = vmatpush.msra.mxu0 0.0
      %288 = vmatpush.msra.mxu0 0.0
      %289 = vmatpush.msra.mxu0 0.0
      %290 = vmatpush.msra.mxu0 0.0
      %291 = vmatpush.msra.mxu0 0.0
      %292 = vmatpush.msra.mxu0 0.0
      %293 = vmatpush.msra.mxu0 0.0
      %294 = vmatpush.msra.mxu0 0.0
      %295 = vmatpush.msra.mxu0 0.0
      %296 = vmatpush.msra.mxu0 %v283
      %297 = vmatpush.msra.mxu0 %v182
      %298 = vmatpush.msra.mxu0 %v181
      %299 = vmatpush.msra.mxu0 %v180
      %300 = vmatpush.msra.mxu0 %v179
      %301 = vmatmul.f32.gmra.mxu0 %v186
      %v302 = vpop.f32.mrf.mxu0
      %v303 = vadd.f32 0.0, %v302
      %304 = vmatmul.f32.gmra.mxu0 %v189
      %v305 = vpop.f32.mrf.mxu0
      %v306 = vadd.f32 0.0, %v305
      %307 = vmatmul.f32.gmra.mxu0 %v192
      %v308 = vpop.f32.mrf.mxu0
      %v309 = vadd.f32 0.0, %v308
      %310 = vmatmul.f32.gmra.mxu0 %v195
      %v311 = vpop.f32.mrf.mxu0
      %v312 = vadd.f32 0.0, %v311
      %313 = vmatmul.f32.gmra.mxu0 %v198
      %v314 = vpop.f32.mrf.mxu0
      %v315 = vadd.f32 0.0, %v314
      %316 = vmatmul.f32.gmra.mxu0 %v201
      %v317 = vpop.f32.mrf.mxu0
      %v318 = vadd.f32 0.0, %v317
      %319 = vmatmul.f32.gmra.mxu0 %v204
      %v320 = vpop.f32.mrf.mxu0
      %v321 = vadd.f32 0.0, %v320
      %322 = vmatmul.f32.gmra.mxu0 %v207
      %v323 = vpop.f32.mrf.mxu0
      %v324 = vadd.f32 0.0, %v323
      %325 = vmatmul.f32.gmra.mxu0 %v210
      %v326 = vpop.f32.mrf.mxu0
      %v327 = vadd.f32 0.0, %v326
      %328 = vmatmul.f32.gmra.mxu0 %v213
      %v329 = vpop.f32.mrf.mxu0
      %v330 = vadd.f32 0.0, %v329
      %331 = vmatmul.f32.gmra.mxu0 %v216
      %v332 = vpop.f32.mrf.mxu0
      %v333 = vadd.f32 0.0, %v332
      %334 = vmatmul.f32.gmra.mxu0 %v219
      %v335 = vpop.f32.mrf.mxu0
      %v336 = vadd.f32 0.0, %v335
      %337 = vmatmul.f32.gmra.mxu0 %v222
      %v338 = vpop.f32.mrf.mxu0
      %v339 = vadd.f32 0.0, %v338
      %340 = vmatmul.f32.gmra.mxu0 %v225
      %v341 = vpop.f32.mrf.mxu0
      %v342 = vadd.f32 0.0, %v341
      %343 = vmatmul.f32.gmra.mxu0 %v228
      %v344 = vpop.f32.mrf.mxu0
      %v345 = vadd.f32 0.0, %v344
      %346 = vmatmul.f32.gmra.mxu0 %v231
      %v347 = vpop.f32.mrf.mxu0
      %v348 = vadd.f32 0.0, %v347
      %349 = vmatmul.f32.gmra.mxu0 %v234
      %v350 = vpop.f32.mrf.mxu0
      %v351 = vadd.f32 0.0, %v350
      %352 = vmatmul.f32.gmra.mxu0 %v237
      %v353 = vpop.f32.mrf.mxu0
      %v354 = vadd.f32 0.0, %v353
      %355 = vmatmul.f32.gmra.mxu0 %v240
      %v356 = vpop.f32.mrf.mxu0
      %v357 = vadd.f32 0.0, %v356
      %358 = vmatmul.f32.gmra.mxu0 %v243
      %v359 = vpop.f32.mrf.mxu0
      %v360 = vadd.f32 0.0, %v359
      %361 = vmatmul.f32.gmra.mxu0 %v246
      %v362 = vpop.f32.mrf.mxu0
      %v363 = vadd.f32 0.0, %v362
      %364 = vmatmul.f32.gmra.mxu0 %v249
      %v365 = vpop.f32.mrf.mxu0
      %v366 = vadd.f32 0.0, %v365
      %367 = vmatmul.f32.gmra.mxu0 %v252
      %v368 = vpop.f32.mrf.mxu0
      %v369 = vadd.f32 0.0, %v368
      %370 = vmatmul.f32.gmra.mxu0 %v255
      %v371 = vpop.f32.mrf.mxu0
      %v372 = vadd.f32 0.0, %v371
      %373 = vmatmul.f32.gmra.mxu0 %v258
      %v374 = vpop.f32.mrf.mxu0
      %v375 = vadd.f32 0.0, %v374
      %376 = vmatmul.f32.gmra.mxu0 %v261
      %v377 = vpop.f32.mrf.mxu0
      %v378 = vadd.f32 0.0, %v377
      %379 = vmatmul.f32.gmra.mxu0 %v264
      %v380 = vpop.f32.mrf.mxu0
      %v381 = vadd.f32 0.0, %v380
      %382 = vmatmul.f32.gmra.mxu0 %v267
      %v383 = vpop.f32.mrf.mxu0
      %v384 = vadd.f32 0.0, %v383
      %385 = vmatmul.f32.gmra.mxu0 %v270
      %v386 = vpop.f32.mrf.mxu0
      %v387 = vadd.f32 0.0, %v386
      %388 = vmatmul.f32.gmra.mxu0 %v273
      %v389 = vpop.f32.mrf.mxu0
      %v390 = vadd.f32 0.0, %v389
      %391 = vmatmul.f32.gmra.mxu0 %v276
      %v392 = vpop.f32.mrf.mxu0
      %v393 = vadd.f32 0.0, %v392
      %394 = vmatmul.f32.gmra.mxu0 %v279
      %v395 = vpop.f32.mrf.mxu0
      %v396 = vadd.f32 0.0, %v395
      %397 = vdwg.mxu0
      %398 = vst [vmem:[%s145] sm:$0xff] %v303
      %399 = vst [vmem:[%s145 + $0x8] sm:$0xff] %v306
      %400 = vst [vmem:[%s145 + $0x10] sm:$0xff] %v309
      %401 = vst [vmem:[%s145 + $0x18] sm:$0xff] %v312
      %402 = vst [vmem:[%s145 + $0x20] sm:$0xff] %v315
      %403 = vst [vmem:[%s145 + $0x28] sm:$0xff] %v318
      %404 = vst [vmem:[%s145 + $0x30] sm:$0xff] %v321
      %405 = vst [vmem:[%s145 + $0x38] sm:$0xff] %v324
      %406 = vst [vmem:[%s145 + $0x40] sm:$0xff] %v327
      %407 = vst [vmem:[%s145 + $0x48] sm:$0xff] %v330
      %408 = vst [vmem:[%s145 + $0x50] sm:$0xff] %v333
      %409 = vst [vmem:[%s145 + $0x58] sm:$0xff] %v336
      %410 = vst [vmem:[%s145 + $0x60] sm:$0xff] %v339
      %411 = vst [vmem:[%s145 + $0x68] sm:$0xff] %v342
      %412 = vst [vmem:[%s145 + $0x70] sm:$0xff] %v345
      %413 = vst [vmem:[%s145 + $0x78] sm:$0xff] %v348
      %414 = vst [vmem:[%s145 + $0x80] sm:$0xff] %v351
      %415 = vst [vmem:[%s145 + $0x88] sm:$0xff] %v354
      %416 = vst [vmem:[%s145 + $0x90] sm:$0xff] %v357
      %417 = vst [vmem:[%s145 + $0x98] sm:$0xff] %v360
      %418 = vst [vmem:[%s145 + $0xa0] sm:$0xff] %v363
      %419 = vst [vmem:[%s145 + $0xa8] sm:$0xff] %v366
      %420 = vst [vmem:[%s145 + $0xb0] sm:$0xff] %v369
      %421 = vst [vmem:[%s145 + $0xb8] sm:$0xff] %v372
      %422 = vst [vmem:[%s145 + $0xc0] sm:$0xff] %v375
      %423 = vst [vmem:[%s145 + $0xc8] sm:$0xff] %v378
      %424 = vst [vmem:[%s145 + $0xd0] sm:$0xff] %v381
      %425 = vst [vmem:[%s145 + $0xd8] sm:$0xff] %v384
      %426 = vst [vmem:[%s145 + $0xe0] sm:$0xff] %v387
      %427 = vst [vmem:[%s145 + $0xe8] sm:$0xff] %v390
      %428 = vst [vmem:[%s145 + $0xf0] sm:$0xff] %v393
      %429 = vst [vmem:[%s145 + $0xf8] sm:$0xff] %v396
      %s430 = smul.u32 32, %s13
      %p431 = scmp.lt.s32.totalorder %s430, 63
      %s432 = scalar_select %p431, %s430, 63
      %s433 = smul.addr %s432, 8
      %s434 = scalar_lea.vmem %s2, %s433
      // Predicated region
      $region29: #{deform_conv2dcd_forward.2} parent=27 // pred_check
        %p435 = pneg %p78
      $region30: #{deform_conv2dcd_forward.2} parent=27 // pred_check_branch
        %437 = sbr.rel (%p435) target = $region32
      $region31: #{deform_conv2dcd_forward.2} parent=27 // pred_region
        %s438 = smul.u32 32, %s13
      $region32: #{deform_conv2dcd_forward.2} parent=27 // pred_fallthru
        _
    $region28: #{deform_conv2dcd_forward.2} parent=5 // pred_fallthru
      _
    %p439 = scmp.le.s32.totalorder 2, %s8
    // Predicated region
    $region33: #{deform_conv2dcd_forward.2} parent=5 // pred_check
      %p440 = pneg %p439
    $region34: #{deform_conv2dcd_forward.2} parent=5 // pred_check_branch
      %442 = sbr.rel (%p440) target = $region36
    $region35: #{deform_conv2dcd_forward.2} parent=5 // pred_region
      %s443 = ssub.s32 %s8, 2
      // Predicated region
      $region37: #{deform_conv2dcd_forward.2} parent=35 // pred_check
        %p444 = pneg %p84
      $region38: #{deform_conv2dcd_forward.2} parent=35 // pred_check_branch
        %446 = sbr.rel (%p444) target = $region40
      $region39: #{deform_conv2dcd_forward.2} parent=35 // pred_region
        %s447 = smul.u32 32, %s14
        %p448 = scmp.lt.s32.totalorder %s447, 63
        %s449 = scalar_select %p448, %s447, 63
        %s450 = smul.addr %s449, 8
        %s451 = scalar_lea.vmem %s2, %s450
      $region40: #{deform_conv2dcd_forward.2} parent=35 // pred_fallthru
        _
    $region36: #{deform_conv2dcd_forward.2} parent=5 // pred_fallthru
      _
  $region6: #{deform_conv2dcd_forward.2} parent=0 // loop_footer
    %s12 = sadd.s32 1, %s8
  $region7: #{deform_conv2dcd_forward.2} parent=0 // loop_footer_branch
    %7 = sbr.rel target = $region3
  $region8: #{deform_conv2dcd_forward.2} parent=0 // loop_exit
    _

// kernel: deform_conv2dcd_forward.3
$region0: #{deform_conv2dcd_forward.3}
  #allocation0 [shape = 'u32[]', space=smem, size = 0x4, offset = 0x4, fixed_abs, tag = 'smem constant byte address 0x4 - core index']
  #allocation1 [shape = 'u32[72,128]{1,0:T(1,128)}', space=vmem, size = 0x9000, scoped, tag = 'internal scratch']
  %s0 = inlined_call_operand.vmem [shape: f32[512,9], index: 0, kind: input, shape index: {}]
  %s1 = inlined_call_operand.vmem [shape: f32[512,9], index: 1, kind: input, shape index: {}]
  %s2 = inlined_call_operand.vmem [shape: f32[512,36], index: 2, kind: input, shape index: {}]
  %s3 = inlined_call_operand.vmem [shape: f32[512,36], index: 3, kind: input, shape index: {}]
  %s4 = inlined_call_operand.vmem [shape: f32[512,36], index: 4, kind: input, shape index: {}]
  %s5 = inlined_call_operand.vmem [shape: f32[512,36], index: 5, kind: input, shape index: {}]
  %s6 = inlined_call_operand.vmem [shape: f32[9,36], index: 6, kind: input, shape index: {}]
  %s7 = inlined_call_operand.vmem [shape: f32[36,128], index: 7, kind: input, shape index: {}]
  %s8 = inlined_call_operand.vmem [shape: f32[512,128], index: 8, kind: output, shape index: {}]
  %s9 = sld [smem:[#allocation0]]
  $region65: #{deform_conv2dcd_forward.3} parent=0
    _
  %s11 = ssub.s32 1, %s9
  %s12 = scalar_select 0, %s11, %s9
  loop: start=0, step=1, limit=4
  $region2: #{deform_conv2dcd_forward.3} parent=0 // loop_pre_header
    _
  $region3: #{deform_conv2dcd_forward.3} parent=0 // loop_header
    %s14 = sphi 0, %s18
    %p15 = scmp.ge.s32.totalorder %s14, 4
    %s24 = sphi 0, %s26
    %s27 = sphi 0, %s24
    %s28 = sphi 0, %s27
    %s44 = sphi 0, %s28
    %s50 = sphi 0, %s52
    %s53 = sphi 0, %s50
    %s54 = sphi 0, %s53
    %s70 = sphi 0, %s54
    %s76 = sphi 0, %s78
    %s79 = sphi 0, %s76
    %s80 = sphi 0, %s79
    %s96 = sphi 0, %s80
    %s102 = sphi 0, %s104
    %s105 = sphi 0, %s102
    %s106 = sphi 0, %s105
    %s122 = sphi 0, %s106
    %s128 = sphi 0, %s130
    %s131 = sphi 0, %s128
    %s132 = sphi 0, %s131
    %s148 = sphi 0, %s132
    %s154 = sphi 0, %s156
    %s157 = sphi 0, %s154
    %s158 = sphi 0, %s157
    %s174 = sphi 0, %s158
    %s178 = sphi 0, %s178
    %s180 = sphi 0, %s178
    %s181 = sphi 0, %s180
    %s195 = sphi 0, %s181
    %s199 = sphi 0, %s199
    %s201 = sphi 0, %s199
    %s202 = sphi 0, %s201
    %s216 = sphi 0, %s202
    %s222 = sphi 0, %s224
    %s225 = sphi 0, %s222
    %s226 = sphi 0, %s225
    %s242 = sphi 0, %s226
  $region4: #{deform_conv2dcd_forward.3} parent=0 // loop_header_branch
    %17 = sbr.rel (%p15) target = $region8
  $region5: #{deform_conv2dcd_forward.3} parent=0 // loop_body
    %s19 = ssub.s32 %s14, 1
    %s20 = ssub.s32 %s14, 2
    %s21 = sadd.s32 %s14, 1
    %s22 = ssub.s32 %s14, %s21
    %p23 = scmp.eq.s32.totalorder %s22, 0
    %s25 = sadd.s32 %s24, 1
    %s26 = scalar_select %p23, %s24, %s25
    %p29 = pneg %p23
    %p30 = scmp.eq.s32.totalorder %s14, 1
    %p31 = por %p29, %p30
    %p32 = scmp.ne.s32.totalorder %s24, %s27
    %p33 = scmp.eq.s32.totalorder %s14, 0
    %p34 = por %p32, %p33
    %p35 = scmp.ne.s32.totalorder %s24, %s27
    %p36 = scmp.eq.s32.totalorder %s19, 1
    %p37 = por %p35, %p36
    %p38 = scmp.ne.s32.totalorder %s27, %s28
    %p39 = scmp.eq.s32.totalorder %s19, 0
    %p40 = por %p38, %p39
    %p41 = scmp.ne.s32.totalorder %s27, %s28
    %p42 = scmp.eq.s32.totalorder %s20, 1
    %p43 = por %p41, %p42
    %p45 = scmp.ne.s32.totalorder %s28, %s44
    %p46 = scmp.eq.s32.totalorder %s20, 0
    %p47 = por %p45, %p46
    %s48 = ssub.s32 %s14, %s21
    %p49 = scmp.eq.s32.totalorder %s48, 0
    %s51 = sadd.s32 %s50, 1
    %s52 = scalar_select %p49, %s50, %s51
    %p55 = pneg %p49
    %p56 = scmp.eq.s32.totalorder %s14, 1
    %p57 = por %p55, %p56
    %p58 = scmp.ne.s32.totalorder %s50, %s53
    %p59 = scmp.eq.s32.totalorder %s14, 0
    %p60 = por %p58, %p59
    %p61 = scmp.ne.s32.totalorder %s50, %s53
    %p62 = scmp.eq.s32.totalorder %s19, 1
    %p63 = por %p61, %p62
    %p64 = scmp.ne.s32.totalorder %s53, %s54
    %p65 = scmp.eq.s32.totalorder %s19, 0
    %p66 = por %p64, %p65
    %p67 = scmp.ne.s32.totalorder %s53, %s54
    %p68 = scmp.eq.s32.totalorder %s20, 1
    %p69 = por %p67, %p68
    %p71 = scmp.ne.s32.totalorder %s54, %s70
    %p72 = scmp.eq.s32.totalorder %s20, 0
    %p73 = por %p71, %p72
    %s74 = ssub.s32 %s14, %s21
    %p75 = scmp.eq.s32.totalorder %s74, 0
    %s77 = sadd.s32 %s76, 1
    %s78 = scalar_select %p75, %s76, %s77
    %p81 = pneg %p75
    %p82 = scmp.eq.s32.totalorder %s14, 1
    %p83 = por %p81, %p82
    %p84 = scmp.ne.s32.totalorder %s76, %s79
    %p85 = scmp.eq.s32.totalorder %s14, 0
    %p86 = por %p84, %p85
    %p87 = scmp.ne.s32.totalorder %s76, %s79
    %p88 = scmp.eq.s32.totalorder %s19, 1
    %p89 = por %p87, %p88
    %p90 = scmp.ne.s32.totalorder %s79, %s80
    %p91 = scmp.eq.s32.totalorder %s19, 0
    %p92 = por %p90, %p91
    %p93 = scmp.ne.s32.totalorder %s79, %s80
    %p94 = scmp.eq.s32.totalorder %s20, 1
    %p95 = por %p93, %p94
    %p97 = scmp.ne.s32.totalorder %s80, %s96
    %p98 = scmp.eq.s32.totalorder %s20, 0
    %p99 = por %p97, %p98
    %s100 = ssub.s32 %s14, %s21
    %p101 = scmp.eq.s32.totalorder %s100, 0
    %s103 = sadd.s32 %s102, 1
    %s104 = scalar_select %p101, %s102, %s103
    %p107 = pneg %p101
    %p108 = scmp.eq.s32.totalorder %s14, 1
    %p109 = por %p107, %p108
    %p110 = scmp.ne.s32.totalorder %s102, %s105
    %p111 = scmp.eq.s32.totalorder %s14, 0
    %p112 = por %p110, %p111
    %p113 = scmp.ne.s32.totalorder %s102, %s105
    %p114 = scmp.eq.s32.totalorder %s19, 1
    %p115 = por %p113, %p114
    %p116 = scmp.ne.s32.totalorder %s105, %s106
    %p117 = scmp.eq.s32.totalorder %s19, 0
    %p118 = por %p116, %p117
    %p119 = scmp.ne.s32.totalorder %s105, %s106
    %p120 = scmp.eq.s32.totalorder %s20, 1
    %p121 = por %p119, %p120
    %p123 = scmp.ne.s32.totalorder %s106, %s122
    %p124 = scmp.eq.s32.totalorder %s20, 0
    %p125 = por %p123, %p124
    %s126 = ssub.s32 %s14, %s21
    %p127 = scmp.eq.s32.totalorder %s126, 0
    %s129 = sadd.s32 %s128, 1
    %s130 = scalar_select %p127, %s128, %s129
    %p133 = pneg %p127
    %p134 = scmp.eq.s32.totalorder %s14, 1
    %p135 = por %p133, %p134
    %p136 = scmp.ne.s32.totalorder %s128, %s131
    %p137 = scmp.eq.s32.totalorder %s14, 0
    %p138 = por %p136, %p137
    %p139 = scmp.ne.s32.totalorder %s128, %s131
    %p140 = scmp.eq.s32.totalorder %s19, 1
    %p141 = por %p139, %p140
    %p142 = scmp.ne.s32.totalorder %s131, %s132
    %p143 = scmp.eq.s32.totalorder %s19, 0
    %p144 = por %p142, %p143
    %p145 = scmp.ne.s32.totalorder %s131, %s132
    %p146 = scmp.eq.s32.totalorder %s20, 1
    %p147 = por %p145, %p146
    %p149 = scmp.ne.s32.totalorder %s132, %s148
    %p150 = scmp.eq.s32.totalorder %s20, 0
    %p151 = por %p149, %p150
    %s152 = ssub.s32 %s14, %s21
    %p153 = scmp.eq.s32.totalorder %s152, 0
    %s155 = sadd.s32 %s154, 1
    %s156 = scalar_select %p153, %s154, %s155
    %p159 = pneg %p153
    %p160 = scmp.eq.s32.totalorder %s14, 1
    %p161 = por %p159, %p160
    %p162 = scmp.ne.s32.totalorder %s154, %s157
    %p163 = scmp.eq.s32.totalorder %s14, 0
    %p164 = por %p162, %p163
    %p165 = scmp.ne.s32.totalorder %s154, %s157
    %p166 = scmp.eq.s32.totalorder %s19, 1
    %p167 = por %p165, %p166
    %p168 = scmp.ne.s32.totalorder %s157, %s158
    %p169 = scmp.eq.s32.totalorder %s19, 0
    %p170 = por %p168, %p169
    %p171 = scmp.ne.s32.totalorder %s157, %s158
    %p172 = scmp.eq.s32.totalorder %s20, 1
    %p173 = por %p171, %p172
    %p175 = scmp.ne.s32.totalorder %s158, %s174
    %p176 = scmp.eq.s32.totalorder %s20, 0
    %p177 = por %p175, %p176
    %s179 = sadd.s32 %s178, 1
    %p182 = scmp.eq.s32.totalorder %s14, 1
    %p183 = scmp.ne.s32.totalorder %s178, %s180
    %p184 = scmp.eq.s32.totalorder %s14, 0
    %p185 = por %p183, %p184
    %p186 = scmp.ne.s32.totalorder %s178, %s180
    %p187 = scmp.eq.s32.totalorder %s19, 1
    %p188 = por %p186, %p187
    %p189 = scmp.ne.s32.totalorder %s180, %s181
    %p190 = scmp.eq.s32.totalorder %s19, 0
    %p191 = por %p189, %p190
    %p192 = scmp.ne.s32.totalorder %s180, %s181
    %p193 = scmp.eq.s32.totalorder %s20, 1
    %p194 = por %p192, %p193
    %p196 = scmp.ne.s32.totalorder %s181, %s195
    %p197 = scmp.eq.s32.totalorder %s20, 0
    %p198 = por %p196, %p197
    %s200 = sadd.s32 %s199, 1
    %p203 = scmp.eq.s32.totalorder %s14, 1
    %p204 = scmp.ne.s32.totalorder %s199, %s201
    %p205 = scmp.eq.s32.totalorder %s14, 0
    %p206 = por %p204, %p205
    %p207 = scmp.ne.s32.totalorder %s199, %s201
    %p208 = scmp.eq.s32.totalorder %s19, 1
    %p209 = por %p207, %p208
    %p210 = scmp.ne.s32.totalorder %s201, %s202
    %p211 = scmp.eq.s32.totalorder %s19, 0
    %p212 = por %p210, %p211
    %p213 = scmp.ne.s32.totalorder %s201, %s202
    %p214 = scmp.eq.s32.totalorder %s20, 1
    %p215 = por %p213, %p214
    %p217 = scmp.ne.s32.totalorder %s202, %s216
    %p218 = scmp.eq.s32.totalorder %s20, 0
    %p219 = por %p217, %p218
    %s220 = ssub.s32 %s14, %s21
    %p221 = scmp.eq.s32.totalorder %s220, 0
    %s223 = sadd.s32 %s222, 1
    %s224 = scalar_select %p221, %s222, %s223
    %p227 = pneg %p221
    %p228 = scmp.eq.s32.totalorder %s14, 1
    %p229 = por %p227, %p228
    %p230 = scmp.ne.s32.totalorder %s222, %s225
    %p231 = scmp.eq.s32.totalorder %s14, 0
    %p232 = por %p230, %p231
    %p233 = scmp.ne.s32.totalorder %s222, %s225
    %p234 = scmp.eq.s32.totalorder %s19, 1
    %p235 = por %p233, %p234
    %p236 = scmp.ne.s32.totalorder %s225, %s226
    %p237 = scmp.eq.s32.totalorder %s19, 0
    %p238 = por %p236, %p237
    %p239 = scmp.ne.s32.totalorder %s225, %s226
    %p240 = scmp.eq.s32.totalorder %s20, 1
    %p241 = por %p239, %p240
    %p243 = scmp.ne.s32.totalorder %s226, %s242
    %p244 = scmp.eq.s32.totalorder %s20, 0
    %p245 = por %p243, %p244
    %p246 = scmp.le.s32.totalorder 1, %s14
    %p247 = scmp.lt.s32.totalorder %s14, 3
    %p248 = pnand %p246, %p247
    %p249 = pneg %p248
    // Predicated region
    $region9: #{deform_conv2dcd_forward.3} parent=5 // pred_check
      _
    $region10: #{deform_conv2dcd_forward.3} parent=5 // pred_check_branch
      %251 = sbr.rel (%p248) target = $region12
    $region11: #{deform_conv2dcd_forward.3} parent=5 // pred_region
      %s252 = ssub.s32 %s14, 1
      // Predicated region
      $region13: #{deform_conv2dcd_forward.3} parent=11 // pred_check
        %p253 = pneg %p191
      $region14: #{deform_conv2dcd_forward.3} parent=11 // pred_check_branch
        %255 = sbr.rel (%p253) target = $region16
      $region15: #{deform_conv2dcd_forward.3} parent=11 // pred_region
        _
      $region16: #{deform_conv2dcd_forward.3} parent=11 // pred_fallthru
        _
      // Predicated region
      $region17: #{deform_conv2dcd_forward.3} parent=11 // pred_check
        %p256 = pneg %p212
      $region18: #{deform_conv2dcd_forward.3} parent=11 // pred_check_branch
        %258 = sbr.rel (%p256) target = $region20
      $region19: #{deform_conv2dcd_forward.3} parent=11 // pred_region
        _
      $region20: #{deform_conv2dcd_forward.3} parent=11 // pred_fallthru
        _
    $region12: #{deform_conv2dcd_forward.3} parent=5 // pred_fallthru
      _
    %p259 = scmp.lt.s32.totalorder %s14, 2
    // Predicated region
    $region21: #{deform_conv2dcd_forward.3} parent=5 // pred_check
      %p260 = pneg %p259
    $region22: #{deform_conv2dcd_forward.3} parent=5 // pred_check_branch
      %262 = sbr.rel (%p260) target = $region24
    $region23: #{deform_conv2dcd_forward.3} parent=5 // pred_region
      // Predicated region
      $region25: #{deform_conv2dcd_forward.3} parent=23 // pred_check
        %p263 = pneg %p34
      $region26: #{deform_conv2dcd_forward.3} parent=23 // pred_check_branch
        %265 = sbr.rel (%p263) target = $region28
      $region27: #{deform_conv2dcd_forward.3} parent=23 // pred_region
        %s266 = smul.u32 32, %s14
        %p267 = scmp.lt.s32.totalorder %s266, 63
        %s268 = scalar_select %p267, %s266, 63
        %s269 = smul.addr %s268, 8
        %s270 = scalar_lea.vmem %s0, %s269
        %s271 = smul.u32 32, %s14
      $region28: #{deform_conv2dcd_forward.3} parent=23 // pred_fallthru
        _
      // Predicated region
      $region29: #{deform_conv2dcd_forward.3} parent=23 // pred_check
        %p272 = pneg %p60
      $region30: #{deform_conv2dcd_forward.3} parent=23 // pred_check_branch
        %274 = sbr.rel (%p272) target = $region32
      $region31: #{deform_conv2dcd_forward.3} parent=23 // pred_region
        %s275 = smul.u32 32, %s14
        %p276 = scmp.lt.s32.totalorder %s275, 63
        %s277 = scalar_select %p276, %s275, 63
        %s278 = smul.addr %s277, 8
        %s279 = scalar_lea.vmem %s1, %s278
        %s280 = smul.u32 32, %s14
      $region32: #{deform_conv2dcd_forward.3} parent=23 // pred_fallthru
        _
      // Predicated region
      $region33: #{deform_conv2dcd_forward.3} parent=23 // pred_check
        %p281 = pneg %p86
      $region34: #{deform_conv2dcd_forward.3} parent=23 // pred_check_branch
        %283 = sbr.rel (%p281) target = $region36
      $region35: #{deform_conv2dcd_forward.3} parent=23 // pred_region
        %s284 = smul.u32 32, %s14
        %p285 = scmp.lt.s32.totalorder %s284, 63
        %s286 = scalar_select %p285, %s284, 63
        %s287 = smul.addr %s286, 8
        %s288 = scalar_lea.vmem %s2, %s287
        %s289 = smul.u32 32, %s14
      $region36: #{deform_conv2dcd_forward.3} parent=23 // pred_fallthru
        _
      // Predicated region
      $region37: #{deform_conv2dcd_forward.3} parent=23 // pred_check
        %p290 = pneg %p112
      $region38: #{deform_conv2dcd_forward.3} parent=23 // pred_check_branch
        %292 = sbr.rel (%p290) target = $region40
      $region39: #{deform_conv2dcd_forward.3} parent=23 // pred_region
        %s293 = smul.u32 32, %s14
        %p294 = scmp.lt.s32.totalorder %s293, 63
        %s295 = scalar_select %p294, %s293, 63
        %s296 = smul.addr %s295, 8
        %s297 = scalar_lea.vmem %s3, %s296
        %s298 = smul.u32 32, %s14
      $region40: #{deform_conv2dcd_forward.3} parent=23 // pred_fallthru
        _
      // Predicated region
      $region41: #{deform_conv2dcd_forward.3} parent=23 // pred_check
        %p299 = pneg %p138
      $region42: #{deform_conv2dcd_forward.3} parent=23 // pred_check_branch
        %301 = sbr.rel (%p299) target = $region44
      $region43: #{deform_conv2dcd_forward.3} parent=23 // pred_region
        %s302 = smul.u32 32, %s14
        %p303 = scmp.lt.s32.totalorder %s302, 63
        %s304 = scalar_select %p303, %s302, 63
        %s305 = smul.addr %s304, 8
        %s306 = scalar_lea.vmem %s4, %s305
        %s307 = smul.u32 32, %s14
      $region44: #{deform_conv2dcd_forward.3} parent=23 // pred_fallthru
        _
      // Predicated region
      $region45: #{deform_conv2dcd_forward.3} parent=23 // pred_check
        %p308 = pneg %p164
      $region46: #{deform_conv2dcd_forward.3} parent=23 // pred_check_branch
        %310 = sbr.rel (%p308) target = $region48
      $region47: #{deform_conv2dcd_forward.3} parent=23 // pred_region
        %s311 = smul.u32 32, %s14
        %p312 = scmp.lt.s32.totalorder %s311, 63
        %s313 = scalar_select %p312, %s311, 63
        %s314 = smul.addr %s313, 8
        %s315 = scalar_lea.vmem %s5, %s314
        %s316 = smul.u32 32, %s14
      $region48: #{deform_conv2dcd_forward.3} parent=23 // pred_fallthru
        _
    $region24: #{deform_conv2dcd_forward.3} parent=5 // pred_fallthru
      _
    %p317 = scmp.le.s32.totalorder 1, %s14
    %p318 = scmp.lt.s32.totalorder %s14, 3
    %p319 = pnand %p317, %p318
    %p320 = pneg %p319
    // Predicated region
    $region49: #{deform_conv2dcd_forward.3} parent=5 // pred_check
      _
    $region50: #{deform_conv2dcd_forward.3} parent=5 // pred_check_branch
      %322 = sbr.rel (%p319) target = $region52
    $region51: #{deform_conv2dcd_forward.3} parent=5 // pred_region
      %s323 = ssub.s32 %s14, 1
      %s324 = smul.u32 32, %s19
      %p325 = scmp.lt.s32.totalorder %s324, 63
      %s326 = scalar_select %p325, %s324, 63
      %s327 = smul.addr %s326, 8
      %s328 = scalar_lea.vmem %s0, %s327
      %p329 = pneg %p40
      %p330 = pneg %p37
      %s331 = smul.u32 32, %s19
      %p332 = scmp.lt.s32.totalorder %s331, 63
      %s333 = scalar_select %p332, %s331, 63
      %s334 = smul.addr %s333, 8
      %s335 = scalar_lea.vmem %s1, %s334
      %p336 = pneg %p66
      %p337 = pneg %p63
      %s338 = smul.u32 32, %s19
      %p339 = scmp.lt.s32.totalorder %s338, 63
      %s340 = scalar_select %p339, %s338, 63
      %s341 = smul.addr %s340, 8
      %s342 = scalar_lea.vmem %s2, %s341
      %p343 = pneg %p92
      %p344 = pneg %p89
      %s345 = smul.u32 32, %s19
      %p346 = scmp.lt.s32.totalorder %s345, 63
      %s347 = scalar_select %p346, %s345, 63
      %s348 = smul.addr %s347, 8
      %s349 = scalar_lea.vmem %s3, %s348
      %p350 = pneg %p118
      %p351 = pneg %p115
      %s352 = smul.u32 32, %s19
      %p353 = scmp.lt.s32.totalorder %s352, 63
      %s354 = scalar_select %p353, %s352, 63
      %s355 = smul.addr %s354, 8
      %s356 = scalar_lea.vmem %s4, %s355
      %p357 = pneg %p144
      %p358 = pneg %p141
      %s359 = smul.u32 32, %s19
      %p360 = scmp.lt.s32.totalorder %s359, 63
      %s361 = scalar_select %p360, %s359, 63
      %s362 = smul.addr %s361, 8
      %s363 = scalar_lea.vmem %s5, %s362
      %p364 = pneg %p170
      %p365 = pneg %p167
      %p366 = pneg %p191
      %p367 = pneg %p188
      %p368 = pneg %p212
      %p369 = pneg %p209
      %p370 = pneg %p238
      %p371 = pneg %p235
      %s372 = smul.u32 32, %s19
      %p373 = scmp.lt.s32.totalorder %s372, 63
      %s374 = scalar_select %p373, %s372, 63
      %s375 = smul.addr %s374, 8
      %s376 = scalar_lea.vmem %s8, %s375
      %s377 = smul.u32 32, %s19
      %p378 = scmp.lt.s32.totalorder %s377, 63
      %s379 = scalar_select %p378, %s377, 63
      %s380 = smul.addr %s379, 8
      %s381 = scalar_lea.vmem %s0, %s380
      %s382 = smul.u32 32, %s19
      %s383 = smul.u32 32, %s19
      %p384 = scmp.lt.s32.totalorder %s383, 63
      %s385 = scalar_select %p384, %s383, 63
      %s386 = smul.addr %s385, 8
      %s387 = scalar_lea.vmem %s1, %s386
      %s388 = smul.u32 32, %s19
      %s389 = smul.u32 32, %s19
      %p390 = scmp.lt.s32.totalorder %s389, 63
      %s391 = scalar_select %p390, %s389, 63
      %s392 = smul.addr %s391, 8
      %s393 = scalar_lea.vmem %s2, %s392
      %s394 = smul.u32 32, %s19
      %s395 = smul.u32 32, %s19
      %p396 = scmp.lt.s32.totalorder %s395, 63
      %s397 = scalar_select %p396, %s395, 63
      %s398 = smul.addr %s397, 8
      %s399 = scalar_lea.vmem %s3, %s398
      %s400 = smul.u32 32, %s19
      %s401 = smul.u32 32, %s19
      %p402 = scmp.lt.s32.totalorder %s401, 63
      %s403 = scalar_select %p402, %s401, 63
      %s404 = smul.addr %s403, 8
      %s405 = scalar_lea.vmem %s4, %s404
      %s406 = smul.u32 32, %s19
      %s407 = smul.u32 32, %s19
      %p408 = scmp.lt.s32.totalorder %s407, 63
      %s409 = scalar_select %p408, %s407, 63
      %s410 = smul.addr %s409, 8
      %s411 = scalar_lea.vmem %s5, %s410
      %s412 = smul.u32 32, %s19
      %s413 = smul.u32 32, %s19
      %p414 = scmp.lt.s32.totalorder %s413, 63
      %s415 = scalar_select %p414, %s413, 63
      %s416 = smul.addr %s415, 8
      %s417 = scalar_lea.vmem %s8, %s416
      %s418 = smul.u32 32, %s19
      %v419 = vld [vmem:[%s381] sm:$0xff]
      %v420 = vld [vmem:[%s381 + $0x8] sm:$0xff]
      %v421 = vld [vmem:[%s381 + $0x10] sm:$0xff]
      %v422 = vld [vmem:[%s381 + $0x18] sm:$0xff]
      %v423 = vld [vmem:[%s381 + $0x20] sm:$0xff]
      %v424 = vld [vmem:[%s381 + $0x28] sm:$0xff]
      %v425 = vld [vmem:[%s381 + $0x30] sm:$0xff]
      %v426 = vld [vmem:[%s381 + $0x38] sm:$0xff]
      %v427 = vld [vmem:[%s381 + $0x40] sm:$0xff]
      %v428 = vld [vmem:[%s381 + $0x48] sm:$0xff]
      %v429 = vld [vmem:[%s381 + $0x50] sm:$0xff]
      %v430 = vld [vmem:[%s381 + $0x58] sm:$0xff]
      %v431 = vld [vmem:[%s381 + $0x60] sm:$0xff]
      %v432 = vld [vmem:[%s381 + $0x68] sm:$0xff]
      %v433 = vld [vmem:[%s381 + $0x70] sm:$0xff]
      %v434 = vld [vmem:[%s381 + $0x78] sm:$0xff]
      %v435 = vld [vmem:[%s381 + $0x80] sm:$0xff]
      %v436 = vld [vmem:[%s381 + $0x88] sm:$0xff]
      %v437 = vld [vmem:[%s381 + $0x90] sm:$0xff]
      %v438 = vld [vmem:[%s381 + $0x98] sm:$0xff]
      %v439 = vld [vmem:[%s381 + $0xa0] sm:$0xff]
      %v440 = vld [vmem:[%s381 + $0xa8] sm:$0xff]
      %v441 = vld [vmem:[%s381 + $0xb0] sm:$0xff]
      %v442 = vld [vmem:[%s381 + $0xb8] sm:$0xff]
      %v443 = vld [vmem:[%s381 + $0xc0] sm:$0xff]
      %v444 = vld [vmem:[%s381 + $0xc8] sm:$0xff]
      %v445 = vld [vmem:[%s381 + $0xd0] sm:$0xff]
      %v446 = vld [vmem:[%s381 + $0xd8] sm:$0xff]
      %v447 = vld [vmem:[%s381 + $0xe0] sm:$0xff]
      %v448 = vld [vmem:[%s381 + $0xe8] sm:$0xff]
      %v449 = vld [vmem:[%s381 + $0xf0] sm:$0xff]
      %v450 = vld [vmem:[%s381 + $0xf8] sm:$0xff]
      %v451 = vld [vmem:[%s387] sm:$0xff]
      %v452 = vld [vmem:[%s387 + $0x8] sm:$0xff]
      %v453 = vld [vmem:[%s387 + $0x10] sm:$0xff]
      %v454 = vld [vmem:[%s387 + $0x18] sm:$0xff]
      %v455 = vld [vmem:[%s387 + $0x20] sm:$0xff]
      %v456 = vld [vmem:[%s387 + $0x28] sm:$0xff]
      %v457 = vld [vmem:[%s387 + $0x30] sm:$0xff]
      %v458 = vld [vmem:[%s387 + $0x38] sm:$0xff]
      %v459 = vld [vmem:[%s387 + $0x40] sm:$0xff]
      %v460 = vld [vmem:[%s387 + $0x48] sm:$0xff]
      %v461 = vld [vmem:[%s387 + $0x50] sm:$0xff]
      %v462 = vld [vmem:[%s387 + $0x58] sm:$0xff]
      %v463 = vld [vmem:[%s387 + $0x60] sm:$0xff]
      %v464 = vld [vmem:[%s387 + $0x68] sm:$0xff]
      %v465 = vld [vmem:[%s387 + $0x70] sm:$0xff]
      %v466 = vld [vmem:[%s387 + $0x78] sm:$0xff]
      %v467 = vld [vmem:[%s387 + $0x80] sm:$0xff]
      %v468 = vld [vmem:[%s387 + $0x88] sm:$0xff]
      %v469 = vld [vmem:[%s387 + $0x90] sm:$0xff]
      %v470 = vld [vmem:[%s387 + $0x98] sm:$0xff]
      %v471 = vld [vmem:[%s387 + $0xa0] sm:$0xff]
      %v472 = vld [vmem:[%s387 + $0xa8] sm:$0xff]
      %v473 = vld [vmem:[%s387 + $0xb0] sm:$0xff]
      %v474 = vld [vmem:[%s387 + $0xb8] sm:$0xff]
      %v475 = vld [vmem:[%s387 + $0xc0] sm:$0xff]
      %v476 = vld [vmem:[%s387 + $0xc8] sm:$0xff]
      %v477 = vld [vmem:[%s387 + $0xd0] sm:$0xff]
      %v478 = vld [vmem:[%s387 + $0xd8] sm:$0xff]
      %v479 = vld [vmem:[%s387 + $0xe0] sm:$0xff]
      %v480 = vld [vmem:[%s387 + $0xe8] sm:$0xff]
      %v481 = vld [vmem:[%s387 + $0xf0] sm:$0xff]
      %v482 = vld [vmem:[%s387 + $0xf8] sm:$0xff]
      %v483 = vfloor.f32 %v419
      %v484 = vfloor.f32 %v420
      %v485 = vfloor.f32 %v421
      %v486 = vfloor.f32 %v422
      %v487 = vfloor.f32 %v423
      %v488 = vfloor.f32 %v424
      %v489 = vfloor.f32 %v425
      %v490 = vfloor.f32 %v426
      %v491 = vfloor.f32 %v427
      %v492 = vfloor.f32 %v428
      %v493 = vfloor.f32 %v429
      %v494 = vfloor.f32 %v430
      %v495 = vfloor.f32 %v431
      %v496 = vfloor.f32 %v432
      %v497 = vfloor.f32 %v433
      %v498 = vfloor.f32 %v434
      %v499 = vfloor.f32 %v435
      %v500 = vfloor.f32 %v436
      %v501 = vfloor.f32 %v437
      %v502 = vfloor.f32 %v438
      %v503 = vfloor.f32 %v439
      %v504 = vfloor.f32 %v440
      %v505 = vfloor.f32 %v441
      %v506 = vfloor.f32 %v442
      %v507 = vfloor.f32 %v443
      %v508 = vfloor.f32 %v444
      %v509 = vfloor.f32 %v445
      %v510 = vfloor.f32 %v446
      %v511 = vfloor.f32 %v447
      %v512 = vfloor.f32 %v448
      %v513 = vfloor.f32 %v449
      %v514 = vfloor.f32 %v450
      %v515 = vfloor.f32 %v451
      %v516 = vfloor.f32 %v452
      %v517 = vfloor.f32 %v453
      %v518 = vfloor.f32 %v454
      %v519 = vfloor.f32 %v455
      %v520 = vfloor.f32 %v456
      %v521 = vfloor.f32 %v457
      %v522 = vfloor.f32 %v458
      %v523 = vfloor.f32 %v459
      %v524 = vfloor.f32 %v460
      %v525 = vfloor.f32 %v461
      %v526 = vfloor.f32 %v462
      %v527 = vfloor.f32 %v463
      %v528 = vfloor.f32 %v464
      %v529 = vfloor.f32 %v465
      %v530 = vfloor.f32 %v466
      %v531 = vfloor.f32 %v467
      %v532 = vfloor.f32 %v468
      %v533 = vfloor.f32 %v469
      %v534 = vfloor.f32 %v470
      %v535 = vfloor.f32 %v471
      %v536 = vfloor.f32 %v472
      %v537 = vfloor.f32 %v473
      %v538 = vfloor.f32 %v474
      %v539 = vfloor.f32 %v475
      %v540 = vfloor.f32 %v476
      %v541 = vfloor.f32 %v477
      %v542 = vfloor.f32 %v478
      %v543 = vfloor.f32 %v479
      %v544 = vfloor.f32 %v480
      %v545 = vfloor.f32 %v481
      %v546 = vfloor.f32 %v482
      %v547 = vmax.f32 %v483, 0.0
      %v548 = vmax.f32 %v484, 0.0
      %v549 = vmax.f32 %v485, 0.0
      %v550 = vmax.f32 %v486, 0.0
      %v551 = vmax.f32 %v487, 0.0
      %v552 = vmax.f32 %v488, 0.0
      %v553 = vmax.f32 %v489, 0.0
      %v554 = vmax.f32 %v490, 0.0
      %v555 = vmax.f32 %v491, 0.0
      %v556 = vmax.f32 %v492, 0.0
      %v557 = vmax.f32 %v493, 0.0
      %v558 = vmax.f32 %v494, 0.0
      %v559 = vmax.f32 %v495, 0.0
      %v560 = vmax.f32 %v496, 0.0
      %v561 = vmax.f32 %v497, 0.0
      %v562 = vmax.f32 %v498, 0.0
      %v563 = vmax.f32 %v499, 0.0
      %v564 = vmax.f32 %v500, 0.0
      %v565 = vmax.f32 %v501, 0.0
      %v566 = vmax.f32 %v502, 0.0
      %v567 = vmax.f32 %v503, 0.0
      %v568 = vmax.f32 %v504, 0.0
      %v569 = vmax.f32 %v505, 0.0
      %v570 = vmax.f32 %v506, 0.0
      %v571 = vmax.f32 %v507, 0.0
      %v572 = vmax.f32 %v508, 0.0
      %v573 = vmax.f32 %v509, 0.0
      %v574 = vmax.f32 %v510, 0.0
      %v575 = vmax.f32 %v511, 0.0
      %v576 = vmax.f32 %v512, 0.0
      %v577 = vmax.f32 %v513, 0.0
      %v578 = vmax.f32 %v514, 0.0
      %v579 = vmin.f32 %v547, 17.0
      %v580 = vmin.f32 %v548, 17.0
      %v581 = vmin.f32 %v549, 17.0
      %v582 = vmin.f32 %v550, 17.0
      %v583 = vmin.f32 %v551, 17.0
      %v584 = vmin.f32 %v552, 17.0
      %v585 = vmin.f32 %v553, 17.0
      %v586 = vmin.f32 %v554, 17.0
      %v587 = vmin.f32 %v555, 17.0
      %v588 = vmin.f32 %v556, 17.0
      %v589 = vmin.f32 %v557, 17.0
      %v590 = vmin.f32 %v558, 17.0
      %v591 = vmin.f32 %v559, 17.0
      %v592 = vmin.f32 %v560, 17.0
      %v593 = vmin.f32 %v561, 17.0
      %v594 = vmin.f32 %v562, 17.0
      %v595 = vmin.f32 %v563, 17.0
      %v596 = vmin.f32 %v564, 17.0
      %v597 = vmin.f32 %v565, 17.0
      %v598 = vmin.f32 %v566, 17.0
      %v599 = vmin.f32 %v567, 17.0
      %v600 = vmin.f32 %v568, 17.0
      %v601 = vmin.f32 %v569, 17.0
      %v602 = vmin.f32 %v570, 17.0
      %v603 = vmin.f32 %v571, 17.0
      %v604 = vmin.f32 %v572, 17.0
      %v605 = vmin.f32 %v573, 17.0
      %v606 = vmin.f32 %v574, 17.0
      %v607 = vmin.f32 %v575, 17.0
      %v608 = vmin.f32 %v576, 17.0
      %v609 = vmin.f32 %v577, 17.0
      %v610 = vmin.f32 %v578, 17.0
      %v611 = vmax.f32 %v515, 0.0
      %v612 = vmax.f32 %v516, 0.0
      %v613 = vmax.f32 %v517, 0.0
      %v614 = vmax.f32 %v518, 0.0
      %v615 = vmax.f32 %v519, 0.0
      %v616 = vmax.f32 %v520, 0.0
      %v617 = vmax.f32 %v521, 0.0
      %v618 = vmax.f32 %v522, 0.0
      %v619 = vmax.f32 %v523, 0.0
      %v620 = vmax.f32 %v524, 0.0
      %v621 = vmax.f32 %v525, 0.0
      %v622 = vmax.f32 %v526, 0.0
      %v623 = vmax.f32 %v527, 0.0
      %v624 = vmax.f32 %v528, 0.0
      %v625 = vmax.f32 %v529, 0.0
      %v626 = vmax.f32 %v530, 0.0
      %v627 = vmax.f32 %v531, 0.0
      %v628 = vmax.f32 %v532, 0.0
      %v629 = vmax.f32 %v533, 0.0
      %v630 = vmax.f32 %v534, 0.0
      %v631 = vmax.f32 %v535, 0.0
      %v632 = vmax.f32 %v536, 0.0
      %v633 = vmax.f32 %v537, 0.0
      %v634 = vmax.f32 %v538, 0.0
      %v635 = vmax.f32 %v539, 0.0
      %v636 = vmax.f32 %v540, 0.0
      %v637 = vmax.f32 %v541, 0.0
      %v638 = vmax.f32 %v542, 0.0
      %v639 = vmax.f32 %v543, 0.0
      %v640 = vmax.f32 %v544, 0.0
      %v641 = vmax.f32 %v545, 0.0
      %v642 = vmax.f32 %v546, 0.0
      %v643 = vmin.f32 %v611, 17.0
      %v644 = vmin.f32 %v612, 17.0
      %v645 = vmin.f32 %v613, 17.0
      %v646 = vmin.f32 %v614, 17.0
      %v647 = vmin.f32 %v615, 17.0
      %v648 = vmin.f32 %v616, 17.0
      %v649 = vmin.f32 %v617, 17.0
      %v650 = vmin.f32 %v618, 17.0
      %v651 = vmin.f32 %v619, 17.0
      %v652 = vmin.f32 %v620, 17.0
      %v653 = vmin.f32 %v621, 17.0
      %v654 = vmin.f32 %v622, 17.0
      %v655 = vmin.f32 %v623, 17.0
      %v656 = vmin.f32 %v624, 17.0
      %v657 = vmin.f32 %v625, 17.0
      %v658 = vmin.f32 %v626, 17.0
      %v659 = vmin.f32 %v627, 17.0
      %v660 = vmin.f32 %v628, 17.0
      %v661 = vmin.f32 %v629, 17.0
      %v662 = vmin.f32 %v630, 17.0
      %v663 = vmin.f32 %v631, 17.0
      %v664 = vmin.f32 %v632, 17.0
      %v665 = vmin.f32 %v633, 17.0
      %v666 = vmin.f32 %v634, 17.0
      %v667 = vmin.f32 %v635, 17.0
      %v668 = vmin.f32 %v636, 17.0
      %v669 = vmin.f32 %v637, 17.0
      %v670 = vmin.f32 %v638, 17.0
      %v671 = vmin.f32 %v639, 17.0
      %v672 = vmin.f32 %v640, 17.0
      %v673 = vmin.f32 %v641, 17.0
      %v674 = vmin.f32 %v642, 17.0
      %v675 = vadd.f32 %v483, 1.0
      %v676 = vadd.f32 %v484, 1.0
      %v677 = vadd.f32 %v485, 1.0
      %v678 = vadd.f32 %v486, 1.0
      %v679 = vadd.f32 %v487, 1.0
      %v680 = vadd.f32 %v488, 1.0
      %v681 = vadd.f32 %v489, 1.0
      %v682 = vadd.f32 %v490, 1.0
      %v683 = vadd.f32 %v491, 1.0
      %v684 = vadd.f32 %v492, 1.0
      %v685 = vadd.f32 %v493, 1.0
      %v686 = vadd.f32 %v494, 1.0
      %v687 = vadd.f32 %v495, 1.0
      %v688 = vadd.f32 %v496, 1.0
      %v689 = vadd.f32 %v497, 1.0
      %v690 = vadd.f32 %v498, 1.0
      %v691 = vadd.f32 %v499, 1.0
      %v692 = vadd.f32 %v500, 1.0
      %v693 = vadd.f32 %v501, 1.0
      %v694 = vadd.f32 %v502, 1.0
      %v695 = vadd.f32 %v503, 1.0
      %v696 = vadd.f32 %v504, 1.0
      %v697 = vadd.f32 %v505, 1.0
      %v698 = vadd.f32 %v506, 1.0
      %v699 = vadd.f32 %v507, 1.0
      %v700 = vadd.f32 %v508, 1.0
      %v701 = vadd.f32 %v509, 1.0
      %v702 = vadd.f32 %v510, 1.0
      %v703 = vadd.f32 %v511, 1.0
      %v704 = vadd.f32 %v512, 1.0
      %v705 = vadd.f32 %v513, 1.0
      %v706 = vadd.f32 %v514, 1.0
      %v707 = vmax.f32 %v675, 0.0
      %v708 = vmax.f32 %v676, 0.0
      %v709 = vmax.f32 %v677, 0.0
      %v710 = vmax.f32 %v678, 0.0
      %v711 = vmax.f32 %v679, 0.0
      %v712 = vmax.f32 %v680, 0.0
      %v713 = vmax.f32 %v681, 0.0
      %v714 = vmax.f32 %v682, 0.0
      %v715 = vmax.f32 %v683, 0.0
      %v716 = vmax.f32 %v684, 0.0
      %v717 = vmax.f32 %v685, 0.0
      %v718 = vmax.f32 %v686, 0.0
      %v719 = vmax.f32 %v687, 0.0
      %v720 = vmax.f32 %v688, 0.0
      %v721 = vmax.f32 %v689, 0.0
      %v722 = vmax.f32 %v690, 0.0
      %v723 = vmax.f32 %v691, 0.0
      %v724 = vmax.f32 %v692, 0.0
      %v725 = vmax.f32 %v693, 0.0
      %v726 = vmax.f32 %v694, 0.0
      %v727 = vmax.f32 %v695, 0.0
      %v728 = vmax.f32 %v696, 0.0
      %v729 = vmax.f32 %v697, 0.0
      %v730 = vmax.f32 %v698, 0.0
      %v731 = vmax.f32 %v699, 0.0
      %v732 = vmax.f32 %v700, 0.0
      %v733 = vmax.f32 %v701, 0.0
      %v734 = vmax.f32 %v702, 0.0
      %v735 = vmax.f32 %v703, 0.0
      %v736 = vmax.f32 %v704, 0.0
      %v737 = vmax.f32 %v705, 0.0
      %v738 = vmax.f32 %v706, 0.0
      %v739 = vmin.f32 %v707, 17.0
      %v740 = vmin.f32 %v708, 17.0
      %v741 = vmin.f32 %v709, 17.0
      %v742 = vmin.f32 %v710, 17.0
      %v743 = vmin.f32 %v711, 17.0
      %v744 = vmin.f32 %v712, 17.0
      %v745 = vmin.f32 %v713, 17.0
      %v746 = vmin.f32 %v714, 17.0
      %v747 = vmin.f32 %v715, 17.0
      %v748 = vmin.f32 %v716, 17.0
      %v749 = vmin.f32 %v717, 17.0
      %v750 = vmin.f32 %v718, 17.0
      %v751 = vmin.f32 %v719, 17.0
      %v752 = vmin.f32 %v720, 17.0
      %v753 = vmin.f32 %v721, 17.0
      %v754 = vmin.f32 %v722, 17.0
      %v755 = vmin.f32 %v723, 17.0
      %v756 = vmin.f32 %v724, 17.0
      %v757 = vmin.f32 %v725, 17.0
      %v758 = vmin.f32 %v726, 17.0
      %v759 = vmin.f32 %v727, 17.0
      %v760 = vmin.f32 %v728, 17.0
      %v761 = vmin.f32 %v729, 17.0
      %v762 = vmin.f32 %v730, 17.0
      %v763 = vmin.f32 %v731, 17.0
      %v764 = vmin.f32 %v732, 17.0
      %v765 = vmin.f32 %v733, 17.0
      %v766 = vmin.f32 %v734, 17.0
      %v767 = vmin.f32 %v735, 17.0
      %v768 = vmin.f32 %v736, 17.0
      %v769 = vmin.f32 %v737, 17.0
      %v770 = vmin.f32 %v738, 17.0
      %v771 = vadd.f32 %v515, 1.0
      %v772 = vadd.f32 %v516, 1.0
      %v773 = vadd.f32 %v517, 1.0
      %v774 = vadd.f32 %v518, 1.0
      %v775 = vadd.f32 %v519, 1.0
      %v776 = vadd.f32 %v520, 1.0
      %v777 = vadd.f32 %v521, 1.0
      %v778 = vadd.f32 %v522, 1.0
      %v779 = vadd.f32 %v523, 1.0
      %v780 = vadd.f32 %v524, 1.0
      %v781 = vadd.f32 %v525, 1.0
      %v782 = vadd.f32 %v526, 1.0
      %v783 = vadd.f32 %v527, 1.0
      %v784 = vadd.f32 %v528, 1.0
      %v785 = vadd.f32 %v529, 1.0
      %v786 = vadd.f32 %v530, 1.0
      %v787 = vadd.f32 %v531, 1.0
      %v788 = vadd.f32 %v532, 1.0
      %v789 = vadd.f32 %v533, 1.0
      %v790 = vadd.f32 %v534, 1.0
      %v791 = vadd.f32 %v535, 1.0
      %v792 = vadd.f32 %v536, 1.0
      %v793 = vadd.f32 %v537, 1.0
      %v794 = vadd.f32 %v538, 1.0
      %v795 = vadd.f32 %v539, 1.0
      %v796 = vadd.f32 %v540, 1.0
      %v797 = vadd.f32 %v541, 1.0
      %v798 = vadd.f32 %v542, 1.0
      %v799 = vadd.f32 %v543, 1.0
      %v800 = vadd.f32 %v544, 1.0
      %v801 = vadd.f32 %v545, 1.0
      %v802 = vadd.f32 %v546, 1.0
      %v803 = vmax.f32 %v771, 0.0
      %v804 = vmax.f32 %v772, 0.0
      %v805 = vmax.f32 %v773, 0.0
      %v806 = vmax.f32 %v774, 0.0
      %v807 = vmax.f32 %v775, 0.0
      %v808 = vmax.f32 %v776, 0.0
      %v809 = vmax.f32 %v777, 0.0
      %v810 = vmax.f32 %v778, 0.0
      %v811 = vmax.f32 %v779, 0.0
      %v812 = vmax.f32 %v780, 0.0
      %v813 = vmax.f32 %v781, 0.0
      %v814 = vmax.f32 %v782, 0.0
      %v815 = vmax.f32 %v783, 0.0
      %v816 = vmax.f32 %v784, 0.0
      %v817 = vmax.f32 %v785, 0.0
      %v818 = vmax.f32 %v786, 0.0
      %v819 = vmax.f32 %v787, 0.0
      %v820 = vmax.f32 %v788, 0.0
      %v821 = vmax.f32 %v789, 0.0
      %v822 = vmax.f32 %v790, 0.0
      %v823 = vmax.f32 %v791, 0.0
      %v824 = vmax.f32 %v792, 0.0
      %v825 = vmax.f32 %v793, 0.0
      %v826 = vmax.f32 %v794, 0.0
      %v827 = vmax.f32 %v795, 0.0
      %v828 = vmax.f32 %v796, 0.0
      %v829 = vmax.f32 %v797, 0.0
      %v830 = vmax.f32 %v798, 0.0
      %v831 = vmax.f32 %v799, 0.0
      %v832 = vmax.f32 %v800, 0.0
      %v833 = vmax.f32 %v801, 0.0
      %v834 = vmax.f32 %v802, 0.0
      %v835 = vmin.f32 %v803, 17.0
      %v836 = vmin.f32 %v804, 17.0
      %v837 = vmin.f32 %v805, 17.0
      %v838 = vmin.f32 %v806, 17.0
      %v839 = vmin.f32 %v807, 17.0
      %v840 = vmin.f32 %v808, 17.0
      %v841 = vmin.f32 %v809, 17.0
      %v842 = vmin.f32 %v810, 17.0
      %v843 = vmin.f32 %v811, 17.0
      %v844 = vmin.f32 %v812, 17.0
      %v845 = vmin.f32 %v813, 17.0
      %v846 = vmin.f32 %v814, 17.0
      %v847 = vmin.f32 %v815, 17.0
      %v848 = vmin.f32 %v816, 17.0
      %v849 = vmin.f32 %v817, 17.0
      %v850 = vmin.f32 %v818, 17.0
      %v851 = vmin.f32 %v819, 17.0
      %v852 = vmin.f32 %v820, 17.0
      %v853 = vmin.f32 %v821, 17.0
      %v854 = vmin.f32 %v822, 17.0
      %v855 = vmin.f32 %v823, 17.0
      %v856 = vmin.f32 %v824, 17.0
      %v857 = vmin.f32 %v825, 17.0
      %v858 = vmin.f32 %v826, 17.0
      %v859 = vmin.f32 %v827, 17.0
      %v860 = vmin.f32 %v828, 17.0
      %v861 = vmin.f32 %v829, 17.0
      %v862 = vmin.f32 %v830, 17.0
      %v863 = vmin.f32 %v831, 17.0
      %v864 = vmin.f32 %v832, 17.0
      %v865 = vmin.f32 %v833, 17.0
      %v866 = vmin.f32 %v834, 17.0
      %v867 = vmax.f32 %v419, 0.0
      %v868 = vmax.f32 %v420, 0.0
      %v869 = vmax.f32 %v421, 0.0
      %v870 = vmax.f32 %v422, 0.0
      %v871 = vmax.f32 %v423, 0.0
      %v872 = vmax.f32 %v424, 0.0
      %v873 = vmax.f32 %v425, 0.0
      %v874 = vmax.f32 %v426, 0.0
      %v875 = vmax.f32 %v427, 0.0
      %v876 = vmax.f32 %v428, 0.0
      %v877 = vmax.f32 %v429, 0.0
      %v878 = vmax.f32 %v430, 0.0
      %v879 = vmax.f32 %v431, 0.0
      %v880 = vmax.f32 %v432, 0.0
      %v881 = vmax.f32 %v433, 0.0
      %v882 = vmax.f32 %v434, 0.0
      %v883 = vmax.f32 %v435, 0.0
      %v884 = vmax.f32 %v436, 0.0
      %v885 = vmax.f32 %v437, 0.0
      %v886 = vmax.f32 %v438, 0.0
      %v887 = vmax.f32 %v439, 0.0
      %v888 = vmax.f32 %v440, 0.0
      %v889 = vmax.f32 %v441, 0.0
      %v890 = vmax.f32 %v442, 0.0
      %v891 = vmax.f32 %v443, 0.0
      %v892 = vmax.f32 %v444, 0.0
      %v893 = vmax.f32 %v445, 0.0
      %v894 = vmax.f32 %v446, 0.0
      %v895 = vmax.f32 %v447, 0.0
      %v896 = vmax.f32 %v448, 0.0
      %v897 = vmax.f32 %v449, 0.0
      %v898 = vmax.f32 %v450, 0.0
      %v899 = vmin.f32 %v867, 17.0
      %v900 = vmin.f32 %v868, 17.0
      %v901 = vmin.f32 %v869, 17.0
      %v902 = vmin.f32 %v870, 17.0
      %v903 = vmin.f32 %v871, 17.0
      %v904 = vmin.f32 %v872, 17.0
      %v905 = vmin.f32 %v873, 17.0
      %v906 = vmin.f32 %v874, 17.0
      %v907 = vmin.f32 %v875, 17.0
      %v908 = vmin.f32 %v876, 17.0
      %v909 = vmin.f32 %v877, 17.0
      %v910 = vmin.f32 %v878, 17.0
      %v911 = vmin.f32 %v879, 17.0
      %v912 = vmin.f32 %v880, 17.0
      %v913 = vmin.f32 %v881, 17.0
      %v914 = vmin.f32 %v882, 17.0
      %v915 = vmin.f32 %v883, 17.0
      %v916 = vmin.f32 %v884, 17.0
      %v917 = vmin.f32 %v885, 17.0
      %v918 = vmin.f32 %v886, 17.0
      %v919 = vmin.f32 %v887, 17.0
      %v920 = vmin.f32 %v888, 17.0
      %v921 = vmin.f32 %v889, 17.0
      %v922 = vmin.f32 %v890, 17.0
      %v923 = vmin.f32 %v891, 17.0
      %v924 = vmin.f32 %v892, 17.0
      %v925 = vmin.f32 %v893, 17.0
      %v926 = vmin.f32 %v894, 17.0
      %v927 = vmin.f32 %v895, 17.0
      %v928 = vmin.f32 %v896, 17.0
      %v929 = vmin.f32 %v897, 17.0
      %v930 = vmin.f32 %v898, 17.0
      %v931 = vmax.f32 %v451, 0.0
      %v932 = vmax.f32 %v452, 0.0
      %v933 = vmax.f32 %v453, 0.0
      %v934 = vmax.f32 %v454, 0.0
      %v935 = vmax.f32 %v455, 0.0
      %v936 = vmax.f32 %v456, 0.0
      %v937 = vmax.f32 %v457, 0.0
      %v938 = vmax.f32 %v458, 0.0
      %v939 = vmax.f32 %v459, 0.0
      %v940 = vmax.f32 %v460, 0.0
      %v941 = vmax.f32 %v461, 0.0
      %v942 = vmax.f32 %v462, 0.0
      %v943 = vmax.f32 %v463, 0.0
      %v944 = vmax.f32 %v464, 0.0
      %v945 = vmax.f32 %v465, 0.0
      %v946 = vmax.f32 %v466, 0.0
      %v947 = vmax.f32 %v467, 0.0
      %v948 = vmax.f32 %v468, 0.0
      %v949 = vmax.f32 %v469, 0.0
      %v950 = vmax.f32 %v470, 0.0
      %v951 = vmax.f32 %v471, 0.0
      %v952 = vmax.f32 %v472, 0.0
      %v953 = vmax.f32 %v473, 0.0
      %v954 = vmax.f32 %v474, 0.0
      %v955 = vmax.f32 %v475, 0.0
      %v956 = vmax.f32 %v476, 0.0
      %v957 = vmax.f32 %v477, 0.0
      %v958 = vmax.f32 %v478, 0.0
      %v959 = vmax.f32 %v479, 0.0
      %v960 = vmax.f32 %v480, 0.0
      %v961 = vmax.f32 %v481, 0.0
      %v962 = vmax.f32 %v482, 0.0
      %v963 = vmin.f32 %v931, 17.0
      %v964 = vmin.f32 %v932, 17.0
      %v965 = vmin.f32 %v933, 17.0
      %v966 = vmin.f32 %v934, 17.0
      %v967 = vmin.f32 %v935, 17.0
      %v968 = vmin.f32 %v936, 17.0
      %v969 = vmin.f32 %v937, 17.0
      %v970 = vmin.f32 %v938, 17.0
      %v971 = vmin.f32 %v939, 17.0
      %v972 = vmin.f32 %v940, 17.0
      %v973 = vmin.f32 %v941, 17.0
      %v974 = vmin.f32 %v942, 17.0
      %v975 = vmin.f32 %v943, 17.0
      %v976 = vmin.f32 %v944, 17.0
      %v977 = vmin.f32 %v945, 17.0
      %v978 = vmin.f32 %v946, 17.0
      %v979 = vmin.f32 %v947, 17.0
      %v980 = vmin.f32 %v948, 17.0
      %v981 = vmin.f32 %v949, 17.0
      %v982 = vmin.f32 %v950, 17.0
      %v983 = vmin.f32 %v951, 17.0
      %v984 = vmin.f32 %v952, 17.0
      %v985 = vmin.f32 %v953, 17.0
      %v986 = vmin.f32 %v954, 17.0
      %v987 = vmin.f32 %v955, 17.0
      %v988 = vmin.f32 %v956, 17.0
      %v989 = vmin.f32 %v957, 17.0
      %v990 = vmin.f32 %v958, 17.0
      %v991 = vmin.f32 %v959, 17.0
      %v992 = vmin.f32 %v960, 17.0
      %v993 = vmin.f32 %v961, 17.0
      %v994 = vmin.f32 %v962, 17.0
      %v995 = vsub.f32 %v579, %v899
      %v996 = vsub.f32 %v580, %v900
      %v997 = vsub.f32 %v581, %v901
      %v998 = vsub.f32 %v582, %v902
      %v999 = vsub.f32 %v583, %v903
      %v1000 = vsub.f32 %v584, %v904
      %v1001 = vsub.f32 %v585, %v905
      %v1002 = vsub.f32 %v586, %v906
      %v1003 = vsub.f32 %v587, %v907
      %v1004 = vsub.f32 %v588, %v908
      %v1005 = vsub.f32 %v589, %v909
      %v1006 = vsub.f32 %v590, %v910
      %v1007 = vsub.f32 %v591, %v911
      %v1008 = vsub.f32 %v592, %v912
      %v1009 = vsub.f32 %v593, %v913
      %v1010 = vsub.f32 %v594, %v914
      %v1011 = vsub.f32 %v595, %v915
      %v1012 = vsub.f32 %v596, %v916
      %v1013 = vsub.f32 %v597, %v917
      %v1014 = vsub.f32 %v598, %v918
      %v1015 = vsub.f32 %v599, %v919
      %v1016 = vsub.f32 %v600, %v920
      %v1017 = vsub.f32 %v601, %v921
      %v1018 = vsub.f32 %v602, %v922
      %v1019 = vsub.f32 %v603, %v923
      %v1020 = vsub.f32 %v604, %v924
      %v1021 = vsub.f32 %v605, %v925
      %v1022 = vsub.f32 %v606, %v926
      %v1023 = vsub.f32 %v607, %v927
      %v1024 = vsub.f32 %v608, %v928
      %v1025 = vsub.f32 %v609, %v929
      %v1026 = vsub.f32 %v610, %v930
      %v1027 = vadd.f32 %v995, 1.0
      %v1028 = vadd.f32 %v996, 1.0
      %v1029 = vadd.f32 %v997, 1.0
      %v1030 = vadd.f32 %v998, 1.0
      %v1031 = vadd.f32 %v999, 1.0
      %v1032 = vadd.f32 %v1000, 1.0
      %v1033 = vadd.f32 %v1001, 1.0
      %v1034 = vadd.f32 %v1002, 1.0
      %v1035 = vadd.f32 %v1003, 1.0
      %v1036 = vadd.f32 %v1004, 1.0
      %v1037 = vadd.f32 %v1005, 1.0
      %v1038 = vadd.f32 %v1006, 1.0
      %v1039 = vadd.f32 %v1007, 1.0
      %v1040 = vadd.f32 %v1008, 1.0
      %v1041 = vadd.f32 %v1009, 1.0
      %v1042 = vadd.f32 %v1010, 1.0
      %v1043 = vadd.f32 %v1011, 1.0
      %v1044 = vadd.f32 %v1012, 1.0
      %v1045 = vadd.f32 %v1013, 1.0
      %v1046 = vadd.f32 %v1014, 1.0
      %v1047 = vadd.f32 %v1015, 1.0
      %v1048 = vadd.f32 %v1016, 1.0
      %v1049 = vadd.f32 %v1017, 1.0
      %v1050 = vadd.f32 %v1018, 1.0
      %v1051 = vadd.f32 %v1019, 1.0
      %v1052 = vadd.f32 %v1020, 1.0
      %v1053 = vadd.f32 %v1021, 1.0
      %v1054 = vadd.f32 %v1022, 1.0
      %v1055 = vadd.f32 %v1023, 1.0
      %v1056 = vadd.f32 %v1024, 1.0
      %v1057 = vadd.f32 %v1025, 1.0
      %v1058 = vadd.f32 %v1026, 1.0
      %v1059 = vsub.f32 %v739, %v899
      %v1060 = vsub.f32 %v740, %v900
      %v1061 = vsub.f32 %v741, %v901
      %v1062 = vsub.f32 %v742, %v902
      %v1063 = vsub.f32 %v743, %v903
      %v1064 = vsub.f32 %v744, %v904
      %v1065 = vsub.f32 %v745, %v905
      %v1066 = vsub.f32 %v746, %v906
      %v1067 = vsub.f32 %v747, %v907
      %v1068 = vsub.f32 %v748, %v908
      %v1069 = vsub.f32 %v749, %v909
      %v1070 = vsub.f32 %v750, %v910
      %v1071 = vsub.f32 %v751, %v911
      %v1072 = vsub.f32 %v752, %v912
      %v1073 = vsub.f32 %v753, %v913
      %v1074 = vsub.f32 %v754, %v914
      %v1075 = vsub.f32 %v755, %v915
      %v1076 = vsub.f32 %v756, %v916
      %v1077 = vsub.f32 %v757, %v917
      %v1078 = vsub.f32 %v758, %v918
      %v1079 = vsub.f32 %v759, %v919
      %v1080 = vsub.f32 %v760, %v920
      %v1081 = vsub.f32 %v761, %v921
      %v1082 = vsub.f32 %v762, %v922
      %v1083 = vsub.f32 %v763, %v923
      %v1084 = vsub.f32 %v764, %v924
      %v1085 = vsub.f32 %v765, %v925
      %v1086 = vsub.f32 %v766, %v926
      %v1087 = vsub.f32 %v767, %v927
      %v1088 = vsub.f32 %v768, %v928
      %v1089 = vsub.f32 %v769, %v929
      %v1090 = vsub.f32 %v770, %v930
      %v1091 = vsub.f32 1.0, %v1059
      %v1092 = vsub.f32 1.0, %v1060
      %v1093 = vsub.f32 1.0, %v1061
      %v1094 = vsub.f32 1.0, %v1062
      %v1095 = vsub.f32 1.0, %v1063
      %v1096 = vsub.f32 1.0, %v1064
      %v1097 = vsub.f32 1.0, %v1065
      %v1098 = vsub.f32 1.0, %v1066
      %v1099 = vsub.f32 1.0, %v1067
      %v1100 = vsub.f32 1.0, %v1068
      %v1101 = vsub.f32 1.0, %v1069
      %v1102 = vsub.f32 1.0, %v1070
      %v1103 = vsub.f32 1.0, %v1071
      %v1104 = vsub.f32 1.0, %v1072
      %v1105 = vsub.f32 1.0, %v1073
      %v1106 = vsub.f32 1.0, %v1074
      %v1107 = vsub.f32 1.0, %v1075
      %v1108 = vsub.f32 1.0, %v1076
      %v1109 = vsub.f32 1.0, %v1077
      %v1110 = vsub.f32 1.0, %v1078
      %v1111 = vsub.f32 1.0, %v1079
      %v1112 = vsub.f32 1.0, %v1080
      %v1113 = vsub.f32 1.0, %v1081
      %v1114 = vsub.f32 1.0, %v1082
      %v1115 = vsub.f32 1.0, %v1083
      %v1116 = vsub.f32 1.0, %v1084
      %v1117 = vsub.f32 1.0, %v1085
      %v1118 = vsub.f32 1.0, %v1086
      %v1119 = vsub.f32 1.0, %v1087
      %v1120 = vsub.f32 1.0, %v1088
      %v1121 = vsub.f32 1.0, %v1089
      %v1122 = vsub.f32 1.0, %v1090
      %v1123 = vsub.f32 %v643, %v963
      %v1124 = vsub.f32 %v644, %v964
      %v1125 = vsub.f32 %v645, %v965
      %v1126 = vsub.f32 %v646, %v966
      %v1127 = vsub.f32 %v647, %v967
      %v1128 = vsub.f32 %v648, %v968
      %v1129 = vsub.f32 %v649, %v969
      %v1130 = vsub.f32 %v650, %v970
      %v1131 = vsub.f32 %v651, %v971
      %v1132 = vsub.f32 %v652, %v972
      %v1133 = vsub.f32 %v653, %v973
      %v1134 = vsub.f32 %v654, %v974
      %v1135 = vsub.f32 %v655, %v975
      %v1136 = vsub.f32 %v656, %v976
      %v1137 = vsub.f32 %v657, %v977
      %v1138 = vsub.f32 %v658, %v978
      %v1139 = vsub.f32 %v659, %v979
      %v1140 = vsub.f32 %v660, %v980
      %v1141 = vsub.f32 %v661, %v981
      %v1142 = vsub.f32 %v662, %v982
      %v1143 = vsub.f32 %v663, %v983
      %v1144 = vsub.f32 %v664, %v984
      %v1145 = vsub.f32 %v665, %v985
      %v1146 = vsub.f32 %v666, %v986
      %v1147 = vsub.f32 %v667, %v987
      %v1148 = vsub.f32 %v668, %v988
      %v1149 = vsub.f32 %v669, %v989
      %v1150 = vsub.f32 %v670, %v990
      %v1151 = vsub.f32 %v671, %v991
      %v1152 = vsub.f32 %v672, %v992
      %v1153 = vsub.f32 %v673, %v993
      %v1154 = vsub.f32 %v674, %v994
      %v1155 = vadd.f32 %v1123, 1.0
      %v1156 = vadd.f32 %v1124, 1.0
      %v1157 = vadd.f32 %v1125, 1.0
      %v1158 = vadd.f32 %v1126, 1.0
      %v1159 = vadd.f32 %v1127, 1.0
      %v1160 = vadd.f32 %v1128, 1.0
      %v1161 = vadd.f32 %v1129, 1.0
      %v1162 = vadd.f32 %v1130, 1.0
      %v1163 = vadd.f32 %v1131, 1.0
      %v1164 = vadd.f32 %v1132, 1.0
      %v1165 = vadd.f32 %v1133, 1.0
      %v1166 = vadd.f32 %v1134, 1.0
      %v1167 = vadd.f32 %v1135, 1.0
      %v1168 = vadd.f32 %v1136, 1.0
      %v1169 = vadd.f32 %v1137, 1.0
      %v1170 = vadd.f32 %v1138, 1.0
      %v1171 = vadd.f32 %v1139, 1.0
      %v1172 = vadd.f32 %v1140, 1.0
      %v1173 = vadd.f32 %v1141, 1.0
      %v1174 = vadd.f32 %v1142, 1.0
      %v1175 = vadd.f32 %v1143, 1.0
      %v1176 = vadd.f32 %v1144, 1.0
      %v1177 = vadd.f32 %v1145, 1.0
      %v1178 = vadd.f32 %v1146, 1.0
      %v1179 = vadd.f32 %v1147, 1.0
      %v1180 = vadd.f32 %v1148, 1.0
      %v1181 = vadd.f32 %v1149, 1.0
      %v1182 = vadd.f32 %v1150, 1.0
      %v1183 = vadd.f32 %v1151, 1.0
      %v1184 = vadd.f32 %v1152, 1.0
      %v1185 = vadd.f32 %v1153, 1.0
      %v1186 = vadd.f32 %v1154, 1.0
      %v1187 = vsub.f32 %v835, %v963
      %v1188 = vsub.f32 %v836, %v964
      %v1189 = vsub.f32 %v837, %v965
      %v1190 = vsub.f32 %v838, %v966
      %v1191 = vsub.f32 %v839, %v967
      %v1192 = vsub.f32 %v840, %v968
      %v1193 = vsub.f32 %v841, %v969
      %v1194 = vsub.f32 %v842, %v970
      %v1195 = vsub.f32 %v843, %v971
      %v1196 = vsub.f32 %v844, %v972
      %v1197 = vsub.f32 %v845, %v973
      %v1198 = vsub.f32 %v846, %v974
      %v1199 = vsub.f32 %v847, %v975
      %v1200 = vsub.f32 %v848, %v976
      %v1201 = vsub.f32 %v849, %v977
      %v1202 = vsub.f32 %v850, %v978
      %v1203 = vsub.f32 %v851, %v979
      %v1204 = vsub.f32 %v852, %v980
      %v1205 = vsub.f32 %v853, %v981
      %v1206 = vsub.f32 %v854, %v982
      %v1207 = vsub.f32 %v855, %v983
      %v1208 = vsub.f32 %v856, %v984
      %v1209 = vsub.f32 %v857, %v985
      %v1210 = vsub.f32 %v858, %v986
      %v1211 = vsub.f32 %v859, %v987
      %v1212 = vsub.f32 %v860, %v988
      %v1213 = vsub.f32 %v861, %v989
      %v1214 = vsub.f32 %v862, %v990
      %v1215 = vsub.f32 %v863, %v991
      %v1216 = vsub.f32 %v864, %v992
      %v1217 = vsub.f32 %v865, %v993
      %v1218 = vsub.f32 %v866, %v994
      %v1219 = vsub.f32 1.0, %v1187
      %v1220 = vsub.f32 1.0, %v1188
      %v1221 = vsub.f32 1.0, %v1189
      %v1222 = vsub.f32 1.0, %v1190
      %v1223 = vsub.f32 1.0, %v1191
      %v1224 = vsub.f32 1.0, %v1192
      %v1225 = vsub.f32 1.0, %v1193
      %v1226 = vsub.f32 1.0, %v1194
      %v1227 = vsub.f32 1.0, %v1195
      %v1228 = vsub.f32 1.0, %v1196
      %v1229 = vsub.f32 1.0, %v1197
      %v1230 = vsub.f32 1.0, %v1198
      %v1231 = vsub.f32 1.0, %v1199
      %v1232 = vsub.f32 1.0, %v1200
      %v1233 = vsub.f32 1.0, %v1201
      %v1234 = vsub.f32 1.0, %v1202
      %v1235 = vsub.f32 1.0, %v1203
      %v1236 = vsub.f32 1.0, %v1204
      %v1237 = vsub.f32 1.0, %v1205
      %v1238 = vsub.f32 1.0, %v1206
      %v1239 = vsub.f32 1.0, %v1207
      %v1240 = vsub.f32 1.0, %v1208
      %v1241 = vsub.f32 1.0, %v1209
      %v1242 = vsub.f32 1.0, %v1210
      %v1243 = vsub.f32 1.0, %v1211
      %v1244 = vsub.f32 1.0, %v1212
      %v1245 = vsub.f32 1.0, %v1213
      %v1246 = vsub.f32 1.0, %v1214
      %v1247 = vsub.f32 1.0, %v1215
      %v1248 = vsub.f32 1.0, %v1216
      %v1249 = vsub.f32 1.0, %v1217
      %v1250 = vsub.f32 1.0, %v1218
      %v1251 = vld [vmem:[%s6] sm:$0xff]
      %v1252 = vld [vmem:[%s6 + $0x8] sm:$0x1]
      %v1253 = vmul.f32 %v1027, %v1155
      %v1254 = vmul.f32 %v1028, %v1156
      %v1255 = vmul.f32 %v1029, %v1157
      %v1256 = vmul.f32 %v1030, %v1158
      %v1257 = vmul.f32 %v1031, %v1159
      %v1258 = vmul.f32 %v1032, %v1160
      %v1259 = vmul.f32 %v1033, %v1161
      %v1260 = vmul.f32 %v1034, %v1162
      %v1261 = vmul.f32 %v1035, %v1163
      %v1262 = vmul.f32 %v1036, %v1164
      %v1263 = vmul.f32 %v1037, %v1165
      %v1264 = vmul.f32 %v1038, %v1166
      %v1265 = vmul.f32 %v1039, %v1167
      %v1266 = vmul.f32 %v1040, %v1168
      %v1267 = vmul.f32 %v1041, %v1169
      %v1268 = vmul.f32 %v1042, %v1170
      %v1269 = vmul.f32 %v1043, %v1171
      %v1270 = vmul.f32 %v1044, %v1172
      %v1271 = vmul.f32 %v1045, %v1173
      %v1272 = vmul.f32 %v1046, %v1174
      %v1273 = vmul.f32 %v1047, %v1175
      %v1274 = vmul.f32 %v1048, %v1176
      %v1275 = vmul.f32 %v1049, %v1177
      %v1276 = vmul.f32 %v1050, %v1178
      %v1277 = vmul.f32 %v1051, %v1179
      %v1278 = vmul.f32 %v1052, %v1180
      %v1279 = vmul.f32 %v1053, %v1181
      %v1280 = vmul.f32 %v1054, %v1182
      %v1281 = vmul.f32 %v1055, %v1183
      %v1282 = vmul.f32 %v1056, %v1184
      %v1283 = vmul.f32 %v1057, %v1185
      %v1284 = vmul.f32 %v1058, %v1186
      %vm1285 = vcmask 72704
      %v1287 = vsel %vm1285, %v1253, 0
      %v1290 = vsel %vm1285, %v1254, 0
      %v1293 = vsel %vm1285, %v1255, 0
      %v1296 = vsel %vm1285, %v1256, 0
      %v1299 = vsel %vm1285, %v1257, 0
      %v1302 = vsel %vm1285, %v1258, 0
      %v1305 = vsel %vm1285, %v1259, 0
      %v1308 = vsel %vm1285, %v1260, 0
      %v1311 = vsel %vm1285, %v1261, 0
      %v1314 = vsel %vm1285, %v1262, 0
      %v1317 = vsel %vm1285, %v1263, 0
      %v1320 = vsel %vm1285, %v1264, 0
      %v1323 = vsel %vm1285, %v1265, 0
      %v1326 = vsel %vm1285, %v1266, 0
      %v1329 = vsel %vm1285, %v1267, 0
      %v1332 = vsel %vm1285, %v1268, 0
      %v1335 = vsel %vm1285, %v1269, 0
      %v1338 = vsel %vm1285, %v1270, 0
      %v1341 = vsel %vm1285, %v1271, 0
      %v1344 = vsel %vm1285, %v1272, 0
      %v1347 = vsel %vm1285, %v1273, 0
      %v1350 = vsel %vm1285, %v1274, 0
      %v1353 = vsel %vm1285, %v1275, 0
      %v1356 = vsel %vm1285, %v1276, 0
      %v1359 = vsel %vm1285, %v1277, 0
      %v1362 = vsel %vm1285, %v1278, 0
      %v1365 = vsel %vm1285, %v1279, 0
      %v1368 = vsel %vm1285, %v1280, 0
      %v1371 = vsel %vm1285, %v1281, 0
      %v1374 = vsel %vm1285, %v1282, 0
      %v1377 = vsel %vm1285, %v1283, 0
      %v1380 = vsel %vm1285, %v1284, 0
      %vm1382 = vcmask 1040384
      %v1384 = vsel %vm1382, %v1252, 0
      %1386 = vmatpush.msra.mxu0 0.0
      %1387 = vmatpush.msra.mxu0 0.0
      %1388 = vmatpush.msra.mxu0 0.0
      %1389 = vmatpush.msra.mxu0 0.0
      %1390 = vmatpush.msra.mxu0 0.0
      %1391 = vmatpush.msra.mxu0 0.0
      %1392 = vmatpush.msra.mxu0 0.0
      %1393 = vmatpush.msra.mxu0 0.0
      %1394 = vmatpush.msra.mxu0 0.0
      %1395 = vmatpush.msra.mxu0 0.0
      %1396 = vmatpush.msra.mxu0 0.0
      %1397 = vmatpush.msra.mxu0 0.0
      %1398 = vmatpush.msra.mxu0 0.0
      %1399 = vmatpush.msra.mxu0 0.0
      %1400 = vmatpush.msra.mxu0 %v1384
      %1401 = vmatpush.msra.mxu0 %v1251
      %1402 = vmatmul.f32.gmra.mxu0 %v1287
      %v1403 = vpop.f32.mrf.mxu0
      %v1404 = vadd.f32 0.0, %v1403
      %1405 = vmatmul.f32.gmra.mxu0 %v1290
      %v1406 = vpop.f32.mrf.mxu0
      %v1407 = vadd.f32 0.0, %v1406
      %1408 = vmatmul.f32.gmra.mxu0 %v1293
      %v1409 = vpop.f32.mrf.mxu0
      %v1410 = vadd.f32 0.0, %v1409
      %1411 = vmatmul.f32.gmra.mxu0 %v1296
      %v1412 = vpop.f32.mrf.mxu0
      %v1413 = vadd.f32 0.0, %v1412
      %1414 = vmatmul.f32.gmra.mxu0 %v1299
      %v1415 = vpop.f32.mrf.mxu0
      %v1416 = vadd.f32 0.0, %v1415
      %1417 = vmatmul.f32.gmra.mxu0 %v1302
      %v1418 = vpop.f32.mrf.mxu0
      %v1419 = vadd.f32 0.0, %v1418
      %1420 = vmatmul.f32.gmra.mxu0 %v1305
      %v1421 = vpop.f32.mrf.mxu0
      %v1422 = vadd.f32 0.0, %v1421
      %1423 = vmatmul.f32.gmra.mxu0 %v1308
      %v1424 = vpop.f32.mrf.mxu0
      %v1425 = vadd.f32 0.0, %v1424
      %1426 = vmatmul.f32.gmra.mxu0 %v1311
      %v1427 = vpop.f32.mrf.mxu0
      %v1428 = vadd.f32 0.0, %v1427
      %1429 = vmatmul.f32.gmra.mxu0 %v1314
      %v1430 = vpop.f32.mrf.mxu0
      %v1431 = vadd.f32 0.0, %v1430
      %1432 = vmatmul.f32.gmra.mxu0 %v1317
      %v1433 = vpop.f32.mrf.mxu0
      %v1434 = vadd.f32 0.0, %v1433
      %1435 = vmatmul.f32.gmra.mxu0 %v1320
      %v1436 = vpop.f32.mrf.mxu0
      %v1437 = vadd.f32 0.0, %v1436
      %1438 = vmatmul.f32.gmra.mxu0 %v1323
      %v1439 = vpop.f32.mrf.mxu0
      %v1440 = vadd.f32 0.0, %v1439
      %1441 = vmatmul.f32.gmra.mxu0 %v1326
      %v1442 = vpop.f32.mrf.mxu0
      %v1443 = vadd.f32 0.0, %v1442
      %1444 = vmatmul.f32.gmra.mxu0 %v1329
      %v1445 = vpop.f32.mrf.mxu0
      %v1446 = vadd.f32 0.0, %v1445
      %1447 = vmatmul.f32.gmra.mxu0 %v1332
      %v1448 = vpop.f32.mrf.mxu0
      %v1449 = vadd.f32 0.0, %v1448
      %1450 = vmatmul.f32.gmra.mxu0 %v1335
      %v1451 = vpop.f32.mrf.mxu0
      %v1452 = vadd.f32 0.0, %v1451
      %1453 = vmatmul.f32.gmra.mxu0 %v1338
      %v1454 = vpop.f32.mrf.mxu0
      %v1455 = vadd.f32 0.0, %v1454
      %1456 = vmatmul.f32.gmra.mxu0 %v1341
      %v1457 = vpop.f32.mrf.mxu0
      %v1458 = vadd.f32 0.0, %v1457
      %1459 = vmatmul.f32.gmra.mxu0 %v1344
      %v1460 = vpop.f32.mrf.mxu0
      %v1461 = vadd.f32 0.0, %v1460
      %1462 = vmatmul.f32.gmra.mxu0 %v1347
      %v1463 = vpop.f32.mrf.mxu0
      %v1464 = vadd.f32 0.0, %v1463
      %1465 = vmatmul.f32.gmra.mxu0 %v1350
      %v1466 = vpop.f32.mrf.mxu0
      %v1467 = vadd.f32 0.0, %v1466
      %1468 = vmatmul.f32.gmra.mxu0 %v1353
      %v1469 = vpop.f32.mrf.mxu0
      %v1470 = vadd.f32 0.0, %v1469
      %1471 = vmatmul.f32.gmra.mxu0 %v1356
      %v1472 = vpop.f32.mrf.mxu0
      %v1473 = vadd.f32 0.0, %v1472
      %1474 = vmatmul.f32.gmra.mxu0 %v1359
      %v1475 = vpop.f32.mrf.mxu0
      %v1476 = vadd.f32 0.0, %v1475
      %1477 = vmatmul.f32.gmra.mxu0 %v1362
      %v1478 = vpop.f32.mrf.mxu0
      %v1479 = vadd.f32 0.0, %v1478
      %1480 = vmatmul.f32.gmra.mxu0 %v1365
      %v1481 = vpop.f32.mrf.mxu0
      %v1482 = vadd.f32 0.0, %v1481
      %1483 = vmatmul.f32.gmra.mxu0 %v1368
      %v1484 = vpop.f32.mrf.mxu0
      %v1485 = vadd.f32 0.0, %v1484
      %1486 = vmatmul.f32.gmra.mxu0 %v1371
      %v1487 = vpop.f32.mrf.mxu0
      %v1488 = vadd.f32 0.0, %v1487
      %1489 = vmatmul.f32.gmra.mxu0 %v1374
      %v1490 = vpop.f32.mrf.mxu0
      %v1491 = vadd.f32 0.0, %v1490
      %1492 = vmatmul.f32.gmra.mxu0 %v1377
      %v1493 = vpop.f32.mrf.mxu0
      %v1494 = vadd.f32 0.0, %v1493
      %1495 = vmatmul.f32.gmra.mxu0 %v1380
      %v1496 = vpop.f32.mrf.mxu0
      %v1497 = vadd.f32 0.0, %v1496
      %1498 = vdwg.mxu0
      %v1499 = vld [vmem:[%s393] sm:$0xff]
      %v1500 = vld [vmem:[%s393 + $0x8] sm:$0xff]
      %v1501 = vld [vmem:[%s393 + $0x10] sm:$0xff]
      %v1502 = vld [vmem:[%s393 + $0x18] sm:$0xff]
      %v1503 = vld [vmem:[%s393 + $0x20] sm:$0xff]
      %v1504 = vld [vmem:[%s393 + $0x28] sm:$0xff]
      %v1505 = vld [vmem:[%s393 + $0x30] sm:$0xff]
      %v1506 = vld [vmem:[%s393 + $0x38] sm:$0xff]
      %v1507 = vld [vmem:[%s393 + $0x40] sm:$0xff]
      %v1508 = vld [vmem:[%s393 + $0x48] sm:$0xff]
      %v1509 = vld [vmem:[%s393 + $0x50] sm:$0xff]
      %v1510 = vld [vmem:[%s393 + $0x58] sm:$0xff]
      %v1511 = vld [vmem:[%s393 + $0x60] sm:$0xff]
      %v1512 = vld [vmem:[%s393 + $0x68] sm:$0xff]
      %v1513 = vld [vmem:[%s393 + $0x70] sm:$0xff]
      %v1514 = vld [vmem:[%s393 + $0x78] sm:$0xff]
      %v1515 = vld [vmem:[%s393 + $0x80] sm:$0xff]
      %v1516 = vld [vmem:[%s393 + $0x88] sm:$0xff]
      %v1517 = vld [vmem:[%s393 + $0x90] sm:$0xff]
      %v1518 = vld [vmem:[%s393 + $0x98] sm:$0xff]
      %v1519 = vld [vmem:[%s393 + $0xa0] sm:$0xff]
      %v1520 = vld [vmem:[%s393 + $0xa8] sm:$0xff]
      %v1521 = vld [vmem:[%s393 + $0xb0] sm:$0xff]
      %v1522 = vld [vmem:[%s393 + $0xb8] sm:$0xff]
      %v1523 = vld [vmem:[%s393 + $0xc0] sm:$0xff]
      %v1524 = vld [vmem:[%s393 + $0xc8] sm:$0xff]
      %v1525 = vld [vmem:[%s393 + $0xd0] sm:$0xff]
      %v1526 = vld [vmem:[%s393 + $0xd8] sm:$0xff]
      %v1527 = vld [vmem:[%s393 + $0xe0] sm:$0xff]
      %v1528 = vld [vmem:[%s393 + $0xe8] sm:$0xff]
      %v1529 = vld [vmem:[%s393 + $0xf0] sm:$0xff]
      %v1530 = vld [vmem:[%s393 + $0xf8] sm:$0xff]
      %v1531 = vmul.f32 %v1404, %v1499
      %v1532 = vmul.f32 %v1407, %v1500
      %v1533 = vmul.f32 %v1410, %v1501
      %v1534 = vmul.f32 %v1413, %v1502
      %v1535 = vmul.f32 %v1416, %v1503
      %v1536 = vmul.f32 %v1419, %v1504
      %v1537 = vmul.f32 %v1422, %v1505
      %v1538 = vmul.f32 %v1425, %v1506
      %v1539 = vmul.f32 %v1428, %v1507
      %v1540 = vmul.f32 %v1431, %v1508
      %v1541 = vmul.f32 %v1434, %v1509
      %v1542 = vmul.f32 %v1437, %v1510
      %v1543 = vmul.f32 %v1440, %v1511
      %v1544 = vmul.f32 %v1443, %v1512
      %v1545 = vmul.f32 %v1446, %v1513
      %v1546 = vmul.f32 %v1449, %v1514
      %v1547 = vmul.f32 %v1452, %v1515
      %v1548 = vmul.f32 %v1455, %v1516
      %v1549 = vmul.f32 %v1458, %v1517
      %v1550 = vmul.f32 %v1461, %v1518
      %v1551 = vmul.f32 %v1464, %v1519
      %v1552 = vmul.f32 %v1467, %v1520
      %v1553 = vmul.f32 %v1470, %v1521
      %v1554 = vmul.f32 %v1473, %v1522
      %v1555 = vmul.f32 %v1476, %v1523
      %v1556 = vmul.f32 %v1479, %v1524
      %v1557 = vmul.f32 %v1482, %v1525
      %v1558 = vmul.f32 %v1485, %v1526
      %v1559 = vmul.f32 %v1488, %v1527
      %v1560 = vmul.f32 %v1491, %v1528
      %v1561 = vmul.f32 %v1494, %v1529
      %v1562 = vmul.f32 %v1497, %v1530
      %v1563 = vmul.f32 %v1091, %v1219
      %v1564 = vmul.f32 %v1092, %v1220
      %v1565 = vmul.f32 %v1093, %v1221
      %v1566 = vmul.f32 %v1094, %v1222
      %v1567 = vmul.f32 %v1095, %v1223
      %v1568 = vmul.f32 %v1096, %v1224
      %v1569 = vmul.f32 %v1097, %v1225
      %v1570 = vmul.f32 %v1098, %v1226
      %v1571 = vmul.f32 %v1099, %v1227
      %v1572 = vmul.f32 %v1100, %v1228
      %v1573 = vmul.f32 %v1101, %v1229
      %v1574 = vmul.f32 %v1102, %v1230
      %v1575 = vmul.f32 %v1103, %v1231
      %v1576 = vmul.f32 %v1104, %v1232
      %v1577 = vmul.f32 %v1105, %v1233
      %v1578 = vmul.f32 %v1106, %v1234
      %v1579 = vmul.f32 %v1107, %v1235
      %v1580 = vmul.f32 %v1108, %v1236
      %v1581 = vmul.f32 %v1109, %v1237
      %v1582 = vmul.f32 %v1110, %v1238
      %v1583 = vmul.f32 %v1111, %v1239
      %v1584 = vmul.f32 %v1112, %v1240
      %v1585 = vmul.f32 %v1113, %v1241
      %v1586 = vmul.f32 %v1114, %v1242
      %v1587 = vmul.f32 %v1115, %v1243
      %v1588 = vmul.f32 %v1116, %v1244
      %v1589 = vmul.f32 %v1117, %v1245
      %v1590 = vmul.f32 %v1118, %v1246
      %v1591 = vmul.f32 %v1119, %v1247
      %v1592 = vmul.f32 %v1120, %v1248
      %v1593 = vmul.f32 %v1121, %v1249
      %v1594 = vmul.f32 %v1122, %v1250
      %v1596 = vsel %vm1285, %v1563, 0
      %v1599 = vsel %vm1285, %v1564, 0
      %v1602 = vsel %vm1285, %v1565, 0
      %v1605 = vsel %vm1285, %v1566, 0
      %v1608 = vsel %vm1285, %v1567, 0
      %v1611 = vsel %vm1285, %v1568, 0
      %v1614 = vsel %vm1285, %v1569, 0
      %v1617 = vsel %vm1285, %v1570, 0
      %v1620 = vsel %vm1285, %v1571, 0
      %v1623 = vsel %vm1285, %v1572, 0
      %v1626 = vsel %vm1285, %v1573, 0
      %v1629 = vsel %vm1285, %v1574, 0
      %v1632 = vsel %vm1285, %v1575, 0
      %v1635 = vsel %vm1285, %v1576, 0
      %v1638 = vsel %vm1285, %v1577, 0
      %v1641 = vsel %vm1285, %v1578, 0
      %v1644 = vsel %vm1285, %v1579, 0
      %v1647 = vsel %vm1285, %v1580, 0
      %v1650 = vsel %vm1285, %v1581, 0
      %v1653 = vsel %vm1285, %v1582, 0
      %v1656 = vsel %vm1285, %v1583, 0
      %v1659 = vsel %vm1285, %v1584, 0
      %v1662 = vsel %vm1285, %v1585, 0
      %v1665 = vsel %vm1285, %v1586, 0
      %v1668 = vsel %vm1285, %v1587, 0
      %v1671 = vsel %vm1285, %v1588, 0
      %v1674 = vsel %vm1285, %v1589, 0
      %v1677 = vsel %vm1285, %v1590, 0
      %v1680 = vsel %vm1285, %v1591, 0
      %v1683 = vsel %vm1285, %v1592, 0
      %v1686 = vsel %vm1285, %v1593, 0
      %v1689 = vsel %vm1285, %v1594, 0
      %1691 = vmatpush.msra.mxu0 0.0
      %1692 = vmatpush.msra.mxu0 0.0
      %1693 = vmatpush.msra.mxu0 0.0
      %1694 = vmatpush.msra.mxu0 0.0
      %1695 = vmatpush.msra.mxu0 0.0
      %1696 = vmatpush.msra.mxu0 0.0
      %1697 = vmatpush.msra.mxu0 0.0
      %1698 = vmatpush.msra.mxu0 0.0
      %1699 = vmatpush.msra.mxu0 0.0
      %1700 = vmatpush.msra.mxu0 0.0
      %1701 = vmatpush.msra.mxu0 0.0
      %1702 = vmatpush.msra.mxu0 0.0
      %1703 = vmatpush.msra.mxu0 0.0
      %1704 = vmatpush.msra.mxu0 0.0
      %1705 = vmatpush.msra.mxu0 %v1384
      %1706 = vmatpush.msra.mxu0 %v1251
      %1707 = vmatmul.f32.gmra.mxu0 %v1596
      %v1708 = vpop.f32.mrf.mxu0
      %v1709 = vadd.f32 0.0, %v1708
      %1710 = vmatmul.f32.gmra.mxu0 %v1599
      %v1711 = vpop.f32.mrf.mxu0
      %v1712 = vadd.f32 0.0, %v1711
      %1713 = vmatmul.f32.gmra.mxu0 %v1602
      %v1714 = vpop.f32.mrf.mxu0
      %v1715 = vadd.f32 0.0, %v1714
      %1716 = vmatmul.f32.gmra.mxu0 %v1605
      %v1717 = vpop.f32.mrf.mxu0
      %v1718 = vadd.f32 0.0, %v1717
      %1719 = vmatmul.f32.gmra.mxu0 %v1608
      %v1720 = vpop.f32.mrf.mxu0
      %v1721 = vadd.f32 0.0, %v1720
      %1722 = vmatmul.f32.gmra.mxu0 %v1611
      %v1723 = vpop.f32.mrf.mxu0
      %v1724 = vadd.f32 0.0, %v1723
      %1725 = vmatmul.f32.gmra.mxu0 %v1614
      %v1726 = vpop.f32.mrf.mxu0
      %v1727 = vadd.f32 0.0, %v1726
      %1728 = vmatmul.f32.gmra.mxu0 %v1617
      %v1729 = vpop.f32.mrf.mxu0
      %v1730 = vadd.f32 0.0, %v1729
      %1731 = vmatmul.f32.gmra.mxu0 %v1620
      %v1732 = vpop.f32.mrf.mxu0
      %v1733 = vadd.f32 0.0, %v1732
      %1734 = vmatmul.f32.gmra.mxu0 %v1623
      %v1735 = vpop.f32.mrf.mxu0
      %v1736 = vadd.f32 0.0, %v1735
      %1737 = vmatmul.f32.gmra.mxu0 %v1626
      %v1738 = vpop.f32.mrf.mxu0
      %v1739 = vadd.f32 0.0, %v1738
      %1740 = vmatmul.f32.gmra.mxu0 %v1629
      %v1741 = vpop.f32.mrf.mxu0
      %v1742 = vadd.f32 0.0, %v1741
      %1743 = vmatmul.f32.gmra.mxu0 %v1632
      %v1744 = vpop.f32.mrf.mxu0
      %v1745 = vadd.f32 0.0, %v1744
      %1746 = vmatmul.f32.gmra.mxu0 %v1635
      %v1747 = vpop.f32.mrf.mxu0
      %v1748 = vadd.f32 0.0, %v1747
      %1749 = vmatmul.f32.gmra.mxu0 %v1638
      %v1750 = vpop.f32.mrf.mxu0
      %v1751 = vadd.f32 0.0, %v1750
      %1752 = vmatmul.f32.gmra.mxu0 %v1641
      %v1753 = vpop.f32.mrf.mxu0
      %v1754 = vadd.f32 0.0, %v1753
      %1755 = vmatmul.f32.gmra.mxu0 %v1644
      %v1756 = vpop.f32.mrf.mxu0
      %v1757 = vadd.f32 0.0, %v1756
      %1758 = vmatmul.f32.gmra.mxu0 %v1647
      %v1759 = vpop.f32.mrf.mxu0
      %v1760 = vadd.f32 0.0, %v1759
      %1761 = vmatmul.f32.gmra.mxu0 %v1650
      %v1762 = vpop.f32.mrf.mxu0
      %v1763 = vadd.f32 0.0, %v1762
      %1764 = vmatmul.f32.gmra.mxu0 %v1653
      %v1765 = vpop.f32.mrf.mxu0
      %v1766 = vadd.f32 0.0, %v1765
      %1767 = vmatmul.f32.gmra.mxu0 %v1656
      %v1768 = vpop.f32.mrf.mxu0
      %v1769 = vadd.f32 0.0, %v1768
      %1770 = vmatmul.f32.gmra.mxu0 %v1659
      %v1771 = vpop.f32.mrf.mxu0
      %v1772 = vadd.f32 0.0, %v1771
      %1773 = vmatmul.f32.gmra.mxu0 %v1662
      %v1774 = vpop.f32.mrf.mxu0
      %v1775 = vadd.f32 0.0, %v1774
      %1776 = vmatmul.f32.gmra.mxu0 %v1665
      %v1777 = vpop.f32.mrf.mxu0
      %v1778 = vadd.f32 0.0, %v1777
      %1779 = vmatmul.f32.gmra.mxu0 %v1668
      %v1780 = vpop.f32.mrf.mxu0
      %v1781 = vadd.f32 0.0, %v1780
      %1782 = vmatmul.f32.gmra.mxu0 %v1671
      %v1783 = vpop.f32.mrf.mxu0
      %v1784 = vadd.f32 0.0, %v1783
      %1785 = vmatmul.f32.gmra.mxu0 %v1674
      %v1786 = vpop.f32.mrf.mxu0
      %v1787 = vadd.f32 0.0, %v1786
      %1788 = vmatmul.f32.gmra.mxu0 %v1677
      %v1789 = vpop.f32.mrf.mxu0
      %v1790 = vadd.f32 0.0, %v1789
      %1791 = vmatmul.f32.gmra.mxu0 %v1680
      %v1792 = vpop.f32.mrf.mxu0
      %v1793 = vadd.f32 0.0, %v1792
      %1794 = vmatmul.f32.gmra.mxu0 %v1683
      %v1795 = vpop.f32.mrf.mxu0
      %v1796 = vadd.f32 0.0, %v1795
      %1797 = vmatmul.f32.gmra.mxu0 %v1686
      %v1798 = vpop.f32.mrf.mxu0
      %v1799 = vadd.f32 0.0, %v1798
      %1800 = vmatmul.f32.gmra.mxu0 %v1689
      %v1801 = vpop.f32.mrf.mxu0
      %v1802 = vadd.f32 0.0, %v1801
      %1803 = vdwg.mxu0
      %v1804 = vld [vmem:[%s399] sm:$0xff]
      %v1805 = vld [vmem:[%s399 + $0x8] sm:$0xff]
      %v1806 = vld [vmem:[%s399 + $0x10] sm:$0xff]
      %v1807 = vld [vmem:[%s399 + $0x18] sm:$0xff]
      %v1808 = vld [vmem:[%s399 + $0x20] sm:$0xff]
      %v1809 = vld [vmem:[%s399 + $0x28] sm:$0xff]
      %v1810 = vld [vmem:[%s399 + $0x30] sm:$0xff]
      %v1811 = vld [vmem:[%s399 + $0x38] sm:$0xff]
      %v1812 = vld [vmem:[%s399 + $0x40] sm:$0xff]
      %v1813 = vld [vmem:[%s399 + $0x48] sm:$0xff]
      %v1814 = vld [vmem:[%s399 + $0x50] sm:$0xff]
      %v1815 = vld [vmem:[%s399 + $0x58] sm:$0xff]
      %v1816 = vld [vmem:[%s399 + $0x60] sm:$0xff]
      %v1817 = vld [vmem:[%s399 + $0x68] sm:$0xff]
      %v1818 = vld [vmem:[%s399 + $0x70] sm:$0xff]
      %v1819 = vld [vmem:[%s399 + $0x78] sm:$0xff]
      %v1820 = vld [vmem:[%s399 + $0x80] sm:$0xff]
      %v1821 = vld [vmem:[%s399 + $0x88] sm:$0xff]
      %v1822 = vld [vmem:[%s399 + $0x90] sm:$0xff]
      %v1823 = vld [vmem:[%s399 + $0x98] sm:$0xff]
      %v1824 = vld [vmem:[%s399 + $0xa0] sm:$0xff]
      %v1825 = vld [vmem:[%s399 + $0xa8] sm:$0xff]
      %v1826 = vld [vmem:[%s399 + $0xb0] sm:$0xff]
      %v1827 = vld [vmem:[%s399 + $0xb8] sm:$0xff]
      %v1828 = vld [vmem:[%s399 + $0xc0] sm:$0xff]
      %v1829 = vld [vmem:[%s399 + $0xc8] sm:$0xff]
      %v1830 = vld [vmem:[%s399 + $0xd0] sm:$0xff]
      %v1831 = vld [vmem:[%s399 + $0xd8] sm:$0xff]
      %v1832 = vld [vmem:[%s399 + $0xe0] sm:$0xff]
      %v1833 = vld [vmem:[%s399 + $0xe8] sm:$0xff]
      %v1834 = vld [vmem:[%s399 + $0xf0] sm:$0xff]
      %v1835 = vld [vmem:[%s399 + $0xf8] sm:$0xff]
      %v1836 = vmul.f32 %v1709, %v1804
      %v1837 = vmul.f32 %v1712, %v1805
      %v1838 = vmul.f32 %v1715, %v1806
      %v1839 = vmul.f32 %v1718, %v1807
      %v1840 = vmul.f32 %v1721, %v1808
      %v1841 = vmul.f32 %v1724, %v1809
      %v1842 = vmul.f32 %v1727, %v1810
      %v1843 = vmul.f32 %v1730, %v1811
      %v1844 = vmul.f32 %v1733, %v1812
      %v1845 = vmul.f32 %v1736, %v1813
      %v1846 = vmul.f32 %v1739, %v1814
      %v1847 = vmul.f32 %v1742, %v1815
      %v1848 = vmul.f32 %v1745, %v1816
      %v1849 = vmul.f32 %v1748, %v1817
      %v1850 = vmul.f32 %v1751, %v1818
      %v1851 = vmul.f32 %v1754, %v1819
      %v1852 = vmul.f32 %v1757, %v1820
      %v1853 = vmul.f32 %v1760, %v1821
      %v1854 = vmul.f32 %v1763, %v1822
      %v1855 = vmul.f32 %v1766, %v1823
      %v1856 = vmul.f32 %v1769, %v1824
      %v1857 = vmul.f32 %v1772, %v1825
      %v1858 = vmul.f32 %v1775, %v1826
      %v1859 = vmul.f32 %v1778, %v1827
      %v1860 = vmul.f32 %v1781, %v1828
      %v1861 = vmul.f32 %v1784, %v1829
      %v1862 = vmul.f32 %v1787, %v1830
      %v1863 = vmul.f32 %v1790, %v1831
      %v1864 = vmul.f32 %v1793, %v1832
      %v1865 = vmul.f32 %v1796, %v1833
      %v1866 = vmul.f32 %v1799, %v1834
      %v1867 = vmul.f32 %v1802, %v1835
      %v1868 = vadd.f32 %v1531, %v1836
      %v1869 = vadd.f32 %v1532, %v1837
      %v1870 = vadd.f32 %v1533, %v1838
      %v1871 = vadd.f32 %v1534, %v1839
      %v1872 = vadd.f32 %v1535, %v1840
      %v1873 = vadd.f32 %v1536, %v1841
      %v1874 = vadd.f32 %v1537, %v1842
      %v1875 = vadd.f32 %v1538, %v1843
      %v1876 = vadd.f32 %v1539, %v1844
      %v1877 = vadd.f32 %v1540, %v1845
      %v1878 = vadd.f32 %v1541, %v1846
      %v1879 = vadd.f32 %v1542, %v1847
      %v1880 = vadd.f32 %v1543, %v1848
      %v1881 = vadd.f32 %v1544, %v1849
      %v1882 = vadd.f32 %v1545, %v1850
      %v1883 = vadd.f32 %v1546, %v1851
      %v1884 = vadd.f32 %v1547, %v1852
      %v1885 = vadd.f32 %v1548, %v1853
      %v1886 = vadd.f32 %v1549, %v1854
      %v1887 = vadd.f32 %v1550, %v1855
      %v1888 = vadd.f32 %v1551, %v1856
      %v1889 = vadd.f32 %v1552, %v1857
      %v1890 = vadd.f32 %v1553, %v1858
      %v1891 = vadd.f32 %v1554, %v1859
      %v1892 = vadd.f32 %v1555, %v1860
      %v1893 = vadd.f32 %v1556, %v1861
      %v1894 = vadd.f32 %v1557, %v1862
      %v1895 = vadd.f32 %v1558, %v1863
      %v1896 = vadd.f32 %v1559, %v1864
      %v1897 = vadd.f32 %v1560, %v1865
      %v1898 = vadd.f32 %v1561, %v1866
      %v1899 = vadd.f32 %v1562, %v1867
      %v1900 = vmul.f32 %v1027, %v1219
      %v1901 = vmul.f32 %v1028, %v1220
      %v1902 = vmul.f32 %v1029, %v1221
      %v1903 = vmul.f32 %v1030, %v1222
      %v1904 = vmul.f32 %v1031, %v1223
      %v1905 = vmul.f32 %v1032, %v1224
      %v1906 = vmul.f32 %v1033, %v1225
      %v1907 = vmul.f32 %v1034, %v1226
      %v1908 = vmul.f32 %v1035, %v1227
      %v1909 = vmul.f32 %v1036, %v1228
      %v1910 = vmul.f32 %v1037, %v1229
      %v1911 = vmul.f32 %v1038, %v1230
      %v1912 = vmul.f32 %v1039, %v1231
      %v1913 = vmul.f32 %v1040, %v1232
      %v1914 = vmul.f32 %v1041, %v1233
      %v1915 = vmul.f32 %v1042, %v1234
      %v1916 = vmul.f32 %v1043, %v1235
      %v1917 = vmul.f32 %v1044, %v1236
      %v1918 = vmul.f32 %v1045, %v1237
      %v1919 = vmul.f32 %v1046, %v1238
      %v1920 = vmul.f32 %v1047, %v1239
      %v1921 = vmul.f32 %v1048, %v1240
      %v1922 = vmul.f32 %v1049, %v1241
      %v1923 = vmul.f32 %v1050, %v1242
      %v1924 = vmul.f32 %v1051, %v1243
      %v1925 = vmul.f32 %v1052, %v1244
      %v1926 = vmul.f32 %v1053, %v1245
      %v1927 = vmul.f32 %v1054, %v1246
      %v1928 = vmul.f32 %v1055, %v1247
      %v1929 = vmul.f32 %v1056, %v1248
      %v1930 = vmul.f32 %v1057, %v1249
      %v1931 = vmul.f32 %v1058, %v1250
      %v1933 = vsel %vm1285, %v1900, 0
      %v1936 = vsel %vm1285, %v1901, 0
      %v1939 = vsel %vm1285, %v1902, 0
      %v1942 = vsel %vm1285, %v1903, 0
      %v1945 = vsel %vm1285, %v1904, 0
      %v1948 = vsel %vm1285, %v1905, 0
      %v1951 = vsel %vm1285, %v1906, 0
      %v1954 = vsel %vm1285, %v1907, 0
      %v1957 = vsel %vm1285, %v1908, 0
      %v1960 = vsel %vm1285, %v1909, 0
      %v1963 = vsel %vm1285, %v1910, 0
      %v1966 = vsel %vm1285, %v1911, 0
      %v1969 = vsel %vm1285, %v1912, 0
      %v1972 = vsel %vm1285, %v1913, 0
      %v1975 = vsel %vm1285, %v1914, 0
      %v1978 = vsel %vm1285, %v1915, 0
      %v1981 = vsel %vm1285, %v1916, 0
      %v1984 = vsel %vm1285, %v1917, 0
      %v1987 = vsel %vm1285, %v1918, 0
      %v1990 = vsel %vm1285, %v1919, 0
      %v1993 = vsel %vm1285, %v1920, 0
      %v1996 = vsel %vm1285, %v1921, 0
      %v1999 = vsel %vm1285, %v1922, 0
      %v2002 = vsel %vm1285, %v1923, 0
      %v2005 = vsel %vm1285, %v1924, 0
      %v2008 = vsel %vm1285, %v1925, 0
      %v2011 = vsel %vm1285, %v1926, 0
      %v2014 = vsel %vm1285, %v1927, 0
      %v2017 = vsel %vm1285, %v1928, 0
      %v2020 = vsel %vm1285, %v1929, 0
      %v2023 = vsel %vm1285, %v1930, 0
      %v2026 = vsel %vm1285, %v1931, 0
      %2028 = vmatpush.msra.mxu0 0.0
      %2029 = vmatpush.msra.mxu0 0.0
      %2030 = vmatpush.msra.mxu0 0.0
      %2031 = vmatpush.msra.mxu0 0.0
      %2032 = vmatpush.msra.mxu0 0.0
      %2033 = vmatpush.msra.mxu0 0.0
      %2034 = vmatpush.msra.mxu0 0.0
      %2035 = vmatpush.msra.mxu0 0.0
      %2036 = vmatpush.msra.mxu0 0.0
      %2037 = vmatpush.msra.mxu0 0.0
      %2038 = vmatpush.msra.mxu0 0.0
      %2039 = vmatpush.msra.mxu0 0.0
      %2040 = vmatpush.msra.mxu0 0.0
      %2041 = vmatpush.msra.mxu0 0.0
      %2042 = vmatpush.msra.mxu0 %v1384
      %2043 = vmatpush.msra.mxu0 %v1251
      %2044 = vmatmul.f32.gmra.mxu0 %v1933
      %v2045 = vpop.f32.mrf.mxu0
      %v2046 = vadd.f32 0.0, %v2045
      %2047 = vmatmul.f32.gmra.mxu0 %v1936
      %v2048 = vpop.f32.mrf.mxu0
      %v2049 = vadd.f32 0.0, %v2048
      %2050 = vmatmul.f32.gmra.mxu0 %v1939
      %v2051 = vpop.f32.mrf.mxu0
      %v2052 = vadd.f32 0.0, %v2051
      %2053 = vmatmul.f32.gmra.mxu0 %v1942
      %v2054 = vpop.f32.mrf.mxu0
      %v2055 = vadd.f32 0.0, %v2054
      %2056 = vmatmul.f32.gmra.mxu0 %v1945
      %v2057 = vpop.f32.mrf.mxu0
      %v2058 = vadd.f32 0.0, %v2057
      %2059 = vmatmul.f32.gmra.mxu0 %v1948
      %v2060 = vpop.f32.mrf.mxu0
      %v2061 = vadd.f32 0.0, %v2060
      %2062 = vmatmul.f32.gmra.mxu0 %v1951
      %v2063 = vpop.f32.mrf.mxu0
      %v2064 = vadd.f32 0.0, %v2063
      %2065 = vmatmul.f32.gmra.mxu0 %v1954
      %v2066 = vpop.f32.mrf.mxu0
      %v2067 = vadd.f32 0.0, %v2066
      %2068 = vmatmul.f32.gmra.mxu0 %v1957
      %v2069 = vpop.f32.mrf.mxu0
      %v2070 = vadd.f32 0.0, %v2069
      %2071 = vmatmul.f32.gmra.mxu0 %v1960
      %v2072 = vpop.f32.mrf.mxu0
      %v2073 = vadd.f32 0.0, %v2072
      %2074 = vmatmul.f32.gmra.mxu0 %v1963
      %v2075 = vpop.f32.mrf.mxu0
      %v2076 = vadd.f32 0.0, %v2075
      %2077 = vmatmul.f32.gmra.mxu0 %v1966
      %v2078 = vpop.f32.mrf.mxu0
      %v2079 = vadd.f32 0.0, %v2078
      %2080 = vmatmul.f32.gmra.mxu0 %v1969
      %v2081 = vpop.f32.mrf.mxu0
      %v2082 = vadd.f32 0.0, %v2081
      %2083 = vmatmul.f32.gmra.mxu0 %v1972
      %v2084 = vpop.f32.mrf.mxu0
      %v2085 = vadd.f32 0.0, %v2084
      %2086 = vmatmul.f32.gmra.mxu0 %v1975
      %v2087 = vpop.f32.mrf.mxu0
      %v2088 = vadd.f32 0.0, %v2087
      %2089 = vmatmul.f32.gmra.mxu0 %v1978
      %v2090 = vpop.f32.mrf.mxu0
      %v2091 = vadd.f32 0.0, %v2090
      %2092 = vmatmul.f32.gmra.mxu0 %v1981
      %v2093 = vpop.f32.mrf.mxu0
      %v2094 = vadd.f32 0.0, %v2093
      %2095 = vmatmul.f32.gmra.mxu0 %v1984
      %v2096 = vpop.f32.mrf.mxu0
      %v2097 = vadd.f32 0.0, %v2096
      %2098 = vmatmul.f32.gmra.mxu0 %v1987
      %v2099 = vpop.f32.mrf.mxu0
      %v2100 = vadd.f32 0.0, %v2099
      %2101 = vmatmul.f32.gmra.mxu0 %v1990
      %v2102 = vpop.f32.mrf.mxu0
      %v2103 = vadd.f32 0.0, %v2102
      %2104 = vmatmul.f32.gmra.mxu0 %v1993
      %v2105 = vpop.f32.mrf.mxu0
      %v2106 = vadd.f32 0.0, %v2105
      %2107 = vmatmul.f32.gmra.mxu0 %v1996
      %v2108 = vpop.f32.mrf.mxu0
      %v2109 = vadd.f32 0.0, %v2108
      %2110 = vmatmul.f32.gmra.mxu0 %v1999
      %v2111 = vpop.f32.mrf.mxu0
      %v2112 = vadd.f32 0.0, %v2111
      %2113 = vmatmul.f32.gmra.mxu0 %v2002
      %v2114 = vpop.f32.mrf.mxu0
      %v2115 = vadd.f32 0.0, %v2114
      %2116 = vmatmul.f32.gmra.mxu0 %v2005
      %v2117 = vpop.f32.mrf.mxu0
      %v2118 = vadd.f32 0.0, %v2117
      %2119 = vmatmul.f32.gmra.mxu0 %v2008
      %v2120 = vpop.f32.mrf.mxu0
      %v2121 = vadd.f32 0.0, %v2120
      %2122 = vmatmul.f32.gmra.mxu0 %v2011
      %v2123 = vpop.f32.mrf.mxu0
      %v2124 = vadd.f32 0.0, %v2123
      %2125 = vmatmul.f32.gmra.mxu0 %v2014
      %v2126 = vpop.f32.mrf.mxu0
      %v2127 = vadd.f32 0.0, %v2126
      %2128 = vmatmul.f32.gmra.mxu0 %v2017
      %v2129 = vpop.f32.mrf.mxu0
      %v2130 = vadd.f32 0.0, %v2129
      %2131 = vmatmul.f32.gmra.mxu0 %v2020
      %v2132 = vpop.f32.mrf.mxu0
      %v2133 = vadd.f32 0.0, %v2132
      %2134 = vmatmul.f32.gmra.mxu0 %v2023
      %v2135 = vpop.f32.mrf.mxu0
      %v2136 = vadd.f32 0.0, %v2135
      %2137 = vmatmul.f32.gmra.mxu0 %v2026
      %v2138 = vpop.f32.mrf.mxu0
      %v2139 = vadd.f32 0.0, %v2138
      %2140 = vdwg.mxu0
      %v2141 = vld [vmem:[%s405] sm:$0xff]
      %v2142 = vld [vmem:[%s405 + $0x8] sm:$0xff]
      %v2143 = vld [vmem:[%s405 + $0x10] sm:$0xff]
      %v2144 = vld [vmem:[%s405 + $0x18] sm:$0xff]
      %v2145 = vld [vmem:[%s405 + $0x20] sm:$0xff]
      %v2146 = vld [vmem:[%s405 + $0x28] sm:$0xff]
      %v2147 = vld [vmem:[%s405 + $0x30] sm:$0xff]
      %v2148 = vld [vmem:[%s405 + $0x38] sm:$0xff]
      %v2149 = vld [vmem:[%s405 + $0x40] sm:$0xff]
      %v2150 = vld [vmem:[%s405 + $0x48] sm:$0xff]
      %v2151 = vld [vmem:[%s405 + $0x50] sm:$0xff]
      %v2152 = vld [vmem:[%s405 + $0x58] sm:$0xff]
      %v2153 = vld [vmem:[%s405 + $0x60] sm:$0xff]
      %v2154 = vld [vmem:[%s405 + $0x68] sm:$0xff]
      %v2155 = vld [vmem:[%s405 + $0x70] sm:$0xff]
      %v2156 = vld [vmem:[%s405 + $0x78] sm:$0xff]
      %v2157 = vld [vmem:[%s405 + $0x80] sm:$0xff]
      %v2158 = vld [vmem:[%s405 + $0x88] sm:$0xff]
      %v2159 = vld [vmem:[%s405 + $0x90] sm:$0xff]
      %v2160 = vld [vmem:[%s405 + $0x98] sm:$0xff]
      %v2161 = vld [vmem:[%s405 + $0xa0] sm:$0xff]
      %v2162 = vld [vmem:[%s405 + $0xa8] sm:$0xff]
      %v2163 = vld [vmem:[%s405 + $0xb0] sm:$0xff]
      %v2164 = vld [vmem:[%s405 + $0xb8] sm:$0xff]
      %v2165 = vld [vmem:[%s405 + $0xc0] sm:$0xff]
      %v2166 = vld [vmem:[%s405 + $0xc8] sm:$0xff]
      %v2167 = vld [vmem:[%s405 + $0xd0] sm:$0xff]
      %v2168 = vld [vmem:[%s405 + $0xd8] sm:$0xff]
      %v2169 = vld [vmem:[%s405 + $0xe0] sm:$0xff]
      %v2170 = vld [vmem:[%s405 + $0xe8] sm:$0xff]
      %v2171 = vld [vmem:[%s405 + $0xf0] sm:$0xff]
      %v2172 = vld [vmem:[%s405 + $0xf8] sm:$0xff]
      %v2173 = vmul.f32 %v2046, %v2141
      %v2174 = vmul.f32 %v2049, %v2142
      %v2175 = vmul.f32 %v2052, %v2143
      %v2176 = vmul.f32 %v2055, %v2144
      %v2177 = vmul.f32 %v2058, %v2145
      %v2178 = vmul.f32 %v2061, %v2146
      %v2179 = vmul.f32 %v2064, %v2147
      %v2180 = vmul.f32 %v2067, %v2148
      %v2181 = vmul.f32 %v2070, %v2149
      %v2182 = vmul.f32 %v2073, %v2150
      %v2183 = vmul.f32 %v2076, %v2151
      %v2184 = vmul.f32 %v2079, %v2152
      %v2185 = vmul.f32 %v2082, %v2153
      %v2186 = vmul.f32 %v2085, %v2154
      %v2187 = vmul.f32 %v2088, %v2155
      %v2188 = vmul.f32 %v2091, %v2156
      %v2189 = vmul.f32 %v2094, %v2157
      %v2190 = vmul.f32 %v2097, %v2158
      %v2191 = vmul.f32 %v2100, %v2159
      %v2192 = vmul.f32 %v2103, %v2160
      %v2193 = vmul.f32 %v2106, %v2161
      %v2194 = vmul.f32 %v2109, %v2162
      %v2195 = vmul.f32 %v2112, %v2163
      %v2196 = vmul.f32 %v2115, %v2164
      %v2197 = vmul.f32 %v2118, %v2165
      %v2198 = vmul.f32 %v2121, %v2166
      %v2199 = vmul.f32 %v2124, %v2167
      %v2200 = vmul.f32 %v2127, %v2168
      %v2201 = vmul.f32 %v2130, %v2169
      %v2202 = vmul.f32 %v2133, %v2170
      %v2203 = vmul.f32 %v2136, %v2171
      %v2204 = vmul.f32 %v2139, %v2172
      %v2205 = vadd.f32 %v1868, %v2173
      %v2206 = vadd.f32 %v1869, %v2174
      %v2207 = vadd.f32 %v1870, %v2175
      %v2208 = vadd.f32 %v1871, %v2176
      %v2209 = vadd.f32 %v1872, %v2177
      %v2210 = vadd.f32 %v1873, %v2178
      %v2211 = vadd.f32 %v1874, %v2179
      %v2212 = vadd.f32 %v1875, %v2180
      %v2213 = vadd.f32 %v1876, %v2181
      %v2214 = vadd.f32 %v1877, %v2182
      %v2215 = vadd.f32 %v1878, %v2183
      %v2216 = vadd.f32 %v1879, %v2184
      %v2217 = vadd.f32 %v1880, %v2185
      %v2218 = vadd.f32 %v1881, %v2186
      %v2219 = vadd.f32 %v1882, %v2187
      %v2220 = vadd.f32 %v1883, %v2188
      %v2221 = vadd.f32 %v1884, %v2189
      %v2222 = vadd.f32 %v1885, %v2190
      %v2223 = vadd.f32 %v1886, %v2191
      %v2224 = vadd.f32 %v1887, %v2192
      %v2225 = vadd.f32 %v1888, %v2193
      %v2226 = vadd.f32 %v1889, %v2194
      %v2227 = vadd.f32 %v1890, %v2195
      %v2228 = vadd.f32 %v1891, %v2196
      %v2229 = vadd.f32 %v1892, %v2197
      %v2230 = vadd.f32 %v1893, %v2198
      %v2231 = vadd.f32 %v1894, %v2199
      %v2232 = vadd.f32 %v1895, %v2200
      %v2233 = vadd.f32 %v1896, %v2201
      %v2234 = vadd.f32 %v1897, %v2202
      %v2235 = vadd.f32 %v1898, %v2203
      %v2236 = vadd.f32 %v1899, %v2204
      %v2237 = vmul.f32 %v1091, %v1155
      %v2238 = vmul.f32 %v1092, %v1156
      %v2239 = vmul.f32 %v1093, %v1157
      %v2240 = vmul.f32 %v1094, %v1158
      %v2241 = vmul.f32 %v1095, %v1159
      %v2242 = vmul.f32 %v1096, %v1160
      %v2243 = vmul.f32 %v1097, %v1161
      %v2244 = vmul.f32 %v1098, %v1162
      %v2245 = vmul.f32 %v1099, %v1163
      %v2246 = vmul.f32 %v1100, %v1164
      %v2247 = vmul.f32 %v1101, %v1165
      %v2248 = vmul.f32 %v1102, %v1166
      %v2249 = vmul.f32 %v1103, %v1167
      %v2250 = vmul.f32 %v1104, %v1168
      %v2251 = vmul.f32 %v1105, %v1169
      %v2252 = vmul.f32 %v1106, %v1170
      %v2253 = vmul.f32 %v1107, %v1171
      %v2254 = vmul.f32 %v1108, %v1172
      %v2255 = vmul.f32 %v1109, %v1173
      %v2256 = vmul.f32 %v1110, %v1174
      %v2257 = vmul.f32 %v1111, %v1175
      %v2258 = vmul.f32 %v1112, %v1176
      %v2259 = vmul.f32 %v1113, %v1177
      %v2260 = vmul.f32 %v1114, %v1178
      %v2261 = vmul.f32 %v1115, %v1179
      %v2262 = vmul.f32 %v1116, %v1180
      %v2263 = vmul.f32 %v1117, %v1181
      %v2264 = vmul.f32 %v1118, %v1182
      %v2265 = vmul.f32 %v1119, %v1183
      %v2266 = vmul.f32 %v1120, %v1184
      %v2267 = vmul.f32 %v1121, %v1185
      %v2268 = vmul.f32 %v1122, %v1186
      %v2270 = vsel %vm1285, %v2237, 0
      %v2273 = vsel %vm1285, %v2238, 0
      %v2276 = vsel %vm1285, %v2239, 0
      %v2279 = vsel %vm1285, %v2240, 0
      %v2282 = vsel %vm1285, %v2241, 0
      %v2285 = vsel %vm1285, %v2242, 0
      %v2288 = vsel %vm1285, %v2243, 0
      %v2291 = vsel %vm1285, %v2244, 0
      %v2294 = vsel %vm1285, %v2245, 0
      %v2297 = vsel %vm1285, %v2246, 0
      %v2300 = vsel %vm1285, %v2247, 0
      %v2303 = vsel %vm1285, %v2248, 0
      %v2306 = vsel %vm1285, %v2249, 0
      %v2309 = vsel %vm1285, %v2250, 0
      %v2312 = vsel %vm1285, %v2251, 0
      %v2315 = vsel %vm1285, %v2252, 0
      %v2318 = vsel %vm1285, %v2253, 0
      %v2321 = vsel %vm1285, %v2254, 0
      %v2324 = vsel %vm1285, %v2255, 0
      %v2327 = vsel %vm1285, %v2256, 0
      %v2330 = vsel %vm1285, %v2257, 0
      %v2333 = vsel %vm1285, %v2258, 0
      %v2336 = vsel %vm1285, %v2259, 0
      %v2339 = vsel %vm1285, %v2260, 0
      %v2342 = vsel %vm1285, %v2261, 0
      %v2345 = vsel %vm1285, %v2262, 0
      %v2348 = vsel %vm1285, %v2263, 0
      %v2351 = vsel %vm1285, %v2264, 0
      %v2354 = vsel %vm1285, %v2265, 0
      %v2357 = vsel %vm1285, %v2266, 0
      %v2360 = vsel %vm1285, %v2267, 0
      %v2363 = vsel %vm1285, %v2268, 0
      %2365 = vmatpush.msra.mxu0 0.0
      %2366 = vmatpush.msra.mxu0 0.0
      %2367 = vmatpush.msra.mxu0 0.0
      %2368 = vmatpush.msra.mxu0 0.0
      %2369 = vmatpush.msra.mxu0 0.0
      %2370 = vmatpush.msra.mxu0 0.0
      %2371 = vmatpush.msra.mxu0 0.0
      %2372 = vmatpush.msra.mxu0 0.0
      %2373 = vmatpush.msra.mxu0 0.0
      %2374 = vmatpush.msra.mxu0 0.0
      %2375 = vmatpush.msra.mxu0 0.0
      %2376 = vmatpush.msra.mxu0 0.0
      %2377 = vmatpush.msra.mxu0 0.0
      %2378 = vmatpush.msra.mxu0 0.0
      %2379 = vmatpush.msra.mxu0 %v1384
      %2380 = vmatpush.msra.mxu0 %v1251
      %2381 = vmatmul.f32.gmra.mxu0 %v2270
      %v2382 = vpop.f32.mrf.mxu0
      %v2383 = vadd.f32 0.0, %v2382
      %2384 = vmatmul.f32.gmra.mxu0 %v2273
      %v2385 = vpop.f32.mrf.mxu0
      %v2386 = vadd.f32 0.0, %v2385
      %2387 = vmatmul.f32.gmra.mxu0 %v2276
      %v2388 = vpop.f32.mrf.mxu0
      %v2389 = vadd.f32 0.0, %v2388
      %2390 = vmatmul.f32.gmra.mxu0 %v2279
      %v2391 = vpop.f32.mrf.mxu0
      %v2392 = vadd.f32 0.0, %v2391
      %2393 = vmatmul.f32.gmra.mxu0 %v2282
      %v2394 = vpop.f32.mrf.mxu0
      %v2395 = vadd.f32 0.0, %v2394
      %2396 = vmatmul.f32.gmra.mxu0 %v2285
      %v2397 = vpop.f32.mrf.mxu0
      %v2398 = vadd.f32 0.0, %v2397
      %2399 = vmatmul.f32.gmra.mxu0 %v2288
      %v2400 = vpop.f32.mrf.mxu0
      %v2401 = vadd.f32 0.0, %v2400
      %2402 = vmatmul.f32.gmra.mxu0 %v2291
      %v2403 = vpop.f32.mrf.mxu0
      %v2404 = vadd.f32 0.0, %v2403
      %2405 = vmatmul.f32.gmra.mxu0 %v2294
      %v2406 = vpop.f32.mrf.mxu0
      %v2407 = vadd.f32 0.0, %v2406
      %2408 = vmatmul.f32.gmra.mxu0 %v2297
      %v2409 = vpop.f32.mrf.mxu0
      %v2410 = vadd.f32 0.0, %v2409
      %2411 = vmatmul.f32.gmra.mxu0 %v2300
      %v2412 = vpop.f32.mrf.mxu0
      %v2413 = vadd.f32 0.0, %v2412
      %2414 = vmatmul.f32.gmra.mxu0 %v2303
      %v2415 = vpop.f32.mrf.mxu0
      %v2416 = vadd.f32 0.0, %v2415
      %2417 = vmatmul.f32.gmra.mxu0 %v2306
      %v2418 = vpop.f32.mrf.mxu0
      %v2419 = vadd.f32 0.0, %v2418
      %2420 = vmatmul.f32.gmra.mxu0 %v2309
      %v2421 = vpop.f32.mrf.mxu0
      %v2422 = vadd.f32 0.0, %v2421
      %2423 = vmatmul.f32.gmra.mxu0 %v2312
      %v2424 = vpop.f32.mrf.mxu0
      %v2425 = vadd.f32 0.0, %v2424
      %2426 = vmatmul.f32.gmra.mxu0 %v2315
      %v2427 = vpop.f32.mrf.mxu0
      %v2428 = vadd.f32 0.0, %v2427
      %2429 = vmatmul.f32.gmra.mxu0 %v2318
      %v2430 = vpop.f32.mrf.mxu0
      %v2431 = vadd.f32 0.0, %v2430
      %2432 = vmatmul.f32.gmra.mxu0 %v2321
      %v2433 = vpop.f32.mrf.mxu0
      %v2434 = vadd.f32 0.0, %v2433
      %2435 = vmatmul.f32.gmra.mxu0 %v2324
      %v2436 = vpop.f32.mrf.mxu0
      %v2437 = vadd.f32 0.0, %v2436
      %2438 = vmatmul.f32.gmra.mxu0 %v2327
      %v2439 = vpop.f32.mrf.mxu0
      %v2440 = vadd.f32 0.0, %v2439
      %2441 = vmatmul.f32.gmra.mxu0 %v2330
      %v2442 = vpop.f32.mrf.mxu0
      %v2443 = vadd.f32 0.0, %v2442
      %2444 = vmatmul.f32.gmra.mxu0 %v2333
      %v2445 = vpop.f32.mrf.mxu0
      %v2446 = vadd.f32 0.0, %v2445
      %2447 = vmatmul.f32.gmra.mxu0 %v2336
      %v2448 = vpop.f32.mrf.mxu0
      %v2449 = vadd.f32 0.0, %v2448
      %2450 = vmatmul.f32.gmra.mxu0 %v2339
      %v2451 = vpop.f32.mrf.mxu0
      %v2452 = vadd.f32 0.0, %v2451
      %2453 = vmatmul.f32.gmra.mxu0 %v2342
      %v2454 = vpop.f32.mrf.mxu0
      %v2455 = vadd.f32 0.0, %v2454
      %2456 = vmatmul.f32.gmra.mxu0 %v2345
      %v2457 = vpop.f32.mrf.mxu0
      %v2458 = vadd.f32 0.0, %v2457
      %2459 = vmatmul.f32.gmra.mxu0 %v2348
      %v2460 = vpop.f32.mrf.mxu0
      %v2461 = vadd.f32 0.0, %v2460
      %2462 = vmatmul.f32.gmra.mxu0 %v2351
      %v2463 = vpop.f32.mrf.mxu0
      %v2464 = vadd.f32 0.0, %v2463
      %2465 = vmatmul.f32.gmra.mxu0 %v2354
      %v2466 = vpop.f32.mrf.mxu0
      %v2467 = vadd.f32 0.0, %v2466
      %2468 = vmatmul.f32.gmra.mxu0 %v2357
      %v2469 = vpop.f32.mrf.mxu0
      %v2470 = vadd.f32 0.0, %v2469
      %2471 = vmatmul.f32.gmra.mxu0 %v2360
      %v2472 = vpop.f32.mrf.mxu0
      %v2473 = vadd.f32 0.0, %v2472
      %2474 = vmatmul.f32.gmra.mxu0 %v2363
      %v2475 = vpop.f32.mrf.mxu0
      %v2476 = vadd.f32 0.0, %v2475
      %2477 = vdwg.mxu0
      %v2478 = vld [vmem:[%s411] sm:$0xff]
      %v2479 = vld [vmem:[%s411 + $0x8] sm:$0xff]
      %v2480 = vld [vmem:[%s411 + $0x10] sm:$0xff]
      %v2481 = vld [vmem:[%s411 + $0x18] sm:$0xff]
      %v2482 = vld [vmem:[%s411 + $0x20] sm:$0xff]
      %v2483 = vld [vmem:[%s411 + $0x28] sm:$0xff]
      %v2484 = vld [vmem:[%s411 + $0x30] sm:$0xff]
      %v2485 = vld [vmem:[%s411 + $0x38] sm:$0xff]
      %v2486 = vld [vmem:[%s411 + $0x40] sm:$0xff]
      %v2487 = vld [vmem:[%s411 + $0x48] sm:$0xff]
      %v2488 = vld [vmem:[%s411 + $0x50] sm:$0xff]
      %v2489 = vld [vmem:[%s411 + $0x58] sm:$0xff]
      %v2490 = vld [vmem:[%s411 + $0x60] sm:$0xff]
      %v2491 = vld [vmem:[%s411 + $0x68] sm:$0xff]
      %v2492 = vld [vmem:[%s411 + $0x70] sm:$0xff]
      %v2493 = vld [vmem:[%s411 + $0x78] sm:$0xff]
      %v2494 = vld [vmem:[%s411 + $0x80] sm:$0xff]
      %v2495 = vld [vmem:[%s411 + $0x88] sm:$0xff]
      %v2496 = vld [vmem:[%s411 + $0x90] sm:$0xff]
      %v2497 = vld [vmem:[%s411 + $0x98] sm:$0xff]
      %v2498 = vld [vmem:[%s411 + $0xa0] sm:$0xff]
      %v2499 = vld [vmem:[%s411 + $0xa8] sm:$0xff]
      %v2500 = vld [vmem:[%s411 + $0xb0] sm:$0xff]
      %v2501 = vld [vmem:[%s411 + $0xb8] sm:$0xff]
      %v2502 = vld [vmem:[%s411 + $0xc0] sm:$0xff]
      %v2503 = vld [vmem:[%s411 + $0xc8] sm:$0xff]
      %v2504 = vld [vmem:[%s411 + $0xd0] sm:$0xff]
      %v2505 = vld [vmem:[%s411 + $0xd8] sm:$0xff]
      %v2506 = vld [vmem:[%s411 + $0xe0] sm:$0xff]
      %v2507 = vld [vmem:[%s411 + $0xe8] sm:$0xff]
      %v2508 = vld [vmem:[%s411 + $0xf0] sm:$0xff]
      %v2509 = vld [vmem:[%s411 + $0xf8] sm:$0xff]
      %v2510 = vmul.f32 %v2383, %v2478
      %v2511 = vmul.f32 %v2386, %v2479
      %v2512 = vmul.f32 %v2389, %v2480
      %v2513 = vmul.f32 %v2392, %v2481
      %v2514 = vmul.f32 %v2395, %v2482
      %v2515 = vmul.f32 %v2398, %v2483
      %v2516 = vmul.f32 %v2401, %v2484
      %v2517 = vmul.f32 %v2404, %v2485
      %v2518 = vmul.f32 %v2407, %v2486
      %v2519 = vmul.f32 %v2410, %v2487
      %v2520 = vmul.f32 %v2413, %v2488
      %v2521 = vmul.f32 %v2416, %v2489
      %v2522 = vmul.f32 %v2419, %v2490
      %v2523 = vmul.f32 %v2422, %v2491
      %v2524 = vmul.f32 %v2425, %v2492
      %v2525 = vmul.f32 %v2428, %v2493
      %v2526 = vmul.f32 %v2431, %v2494
      %v2527 = vmul.f32 %v2434, %v2495
      %v2528 = vmul.f32 %v2437, %v2496
      %v2529 = vmul.f32 %v2440, %v2497
      %v2530 = vmul.f32 %v2443, %v2498
      %v2531 = vmul.f32 %v2446, %v2499
      %v2532 = vmul.f32 %v2449, %v2500
      %v2533 = vmul.f32 %v2452, %v2501
      %v2534 = vmul.f32 %v2455, %v2502
      %v2535 = vmul.f32 %v2458, %v2503
      %v2536 = vmul.f32 %v2461, %v2504
      %v2537 = vmul.f32 %v2464, %v2505
      %v2538 = vmul.f32 %v2467, %v2506
      %v2539 = vmul.f32 %v2470, %v2507
      %v2540 = vmul.f32 %v2473, %v2508
      %v2541 = vmul.f32 %v2476, %v2509
      %v2542 = vadd.f32 %v2205, %v2510
      %v2543 = vadd.f32 %v2206, %v2511
      %v2544 = vadd.f32 %v2207, %v2512
      %v2545 = vadd.f32 %v2208, %v2513
      %v2546 = vadd.f32 %v2209, %v2514
      %v2547 = vadd.f32 %v2210, %v2515
      %v2548 = vadd.f32 %v2211, %v2516
      %v2549 = vadd.f32 %v2212, %v2517
      %v2550 = vadd.f32 %v2213, %v2518
      %v2551 = vadd.f32 %v2214, %v2519
      %v2552 = vadd.f32 %v2215, %v2520
      %v2553 = vadd.f32 %v2216, %v2521
      %v2554 = vadd.f32 %v2217, %v2522
      %v2555 = vadd.f32 %v2218, %v2523
      %v2556 = vadd.f32 %v2219, %v2524
      %v2557 = vadd.f32 %v2220, %v2525
      %v2558 = vadd.f32 %v2221, %v2526
      %v2559 = vadd.f32 %v2222, %v2527
      %v2560 = vadd.f32 %v2223, %v2528
      %v2561 = vadd.f32 %v2224, %v2529
      %v2562 = vadd.f32 %v2225, %v2530
      %v2563 = vadd.f32 %v2226, %v2531
      %v2564 = vadd.f32 %v2227, %v2532
      %v2565 = vadd.f32 %v2228, %v2533
      %v2566 = vadd.f32 %v2229, %v2534
      %v2567 = vadd.f32 %v2230, %v2535
      %v2568 = vadd.f32 %v2231, %v2536
      %v2569 = vadd.f32 %v2232, %v2537
      %v2570 = vadd.f32 %v2233, %v2538
      %v2571 = vadd.f32 %v2234, %v2539
      %v2572 = vadd.f32 %v2235, %v2540
      %v2573 = vadd.f32 %v2236, %v2541
      %v2574 = vld [vmem:[%s7] sm:$0xff]
      %v2575 = vld [vmem:[%s7 + $0x8] sm:$0xff]
      %v2576 = vld [vmem:[%s7 + $0x10] sm:$0xff]
      %v2577 = vld [vmem:[%s7 + $0x18] sm:$0xff]
      %v2578 = vld [vmem:[%s7 + $0x20] sm:$0xf]
      %vm2579 = vcmask 293888
      %v2581 = vsel %vm2579, %v2542, 0
      %v2584 = vsel %vm2579, %v2543, 0
      %v2587 = vsel %vm2579, %v2544, 0
      %v2590 = vsel %vm2579, %v2545, 0
      %v2593 = vsel %vm2579, %v2546, 0
      %v2596 = vsel %vm2579, %v2547, 0
      %v2599 = vsel %vm2579, %v2548, 0
      %v2602 = vsel %vm2579, %v2549, 0
      %v2605 = vsel %vm2579, %v2550, 0
      %v2608 = vsel %vm2579, %v2551, 0
      %v2611 = vsel %vm2579, %v2552, 0
      %v2614 = vsel %vm2579, %v2553, 0
      %v2617 = vsel %vm2579, %v2554, 0
      %v2620 = vsel %vm2579, %v2555, 0
      %v2623 = vsel %vm2579, %v2556, 0
      %v2626 = vsel %vm2579, %v2557, 0
      %v2629 = vsel %vm2579, %v2558, 0
      %v2632 = vsel %vm2579, %v2559, 0
      %v2635 = vsel %vm2579, %v2560, 0
      %v2638 = vsel %vm2579, %v2561, 0
      %v2641 = vsel %vm2579, %v2562, 0
      %v2644 = vsel %vm2579, %v2563, 0
      %v2647 = vsel %vm2579, %v2564, 0
      %v2650 = vsel %vm2579, %v2565, 0
      %v2653 = vsel %vm2579, %v2566, 0
      %v2656 = vsel %vm2579, %v2567, 0
      %v2659 = vsel %vm2579, %v2568, 0
      %v2662 = vsel %vm2579, %v2569, 0
      %v2665 = vsel %vm2579, %v2570, 0
      %v2668 = vsel %vm2579, %v2571, 0
      %v2671 = vsel %vm2579, %v2572, 0
      %v2674 = vsel %vm2579, %v2573, 0
      %vm2676 = vcmask 1043456
      %v2678 = vsel %vm2676, %v2578, 0
      %2680 = vmatpush.msra.mxu0 0.0
      %2681 = vmatpush.msra.mxu0 0.0
      %2682 = vmatpush.msra.mxu0 0.0
      %2683 = vmatpush.msra.mxu0 0.0
      %2684 = vmatpush.msra.mxu0 0.0
      %2685 = vmatpush.msra.mxu0 0.0
      %2686 = vmatpush.msra.mxu0 0.0
      %2687 = vmatpush.msra.mxu0 0.0
      %2688 = vmatpush.msra.mxu0 0.0
      %2689 = vmatpush.msra.mxu0 0.0
      %2690 = vmatpush.msra.mxu0 0.0
      %2691 = vmatpush.msra.mxu0 %v2678
      %2692 = vmatpush.msra.mxu0 %v2577
      %2693 = vmatpush.msra.mxu0 %v2576
      %2694 = vmatpush.msra.mxu0 %v2575
      %2695 = vmatpush.msra.mxu0 %v2574
      %2696 = vmatmul.f32.gmra.mxu0 %v2581
      %v2697 = vpop.f32.mrf.mxu0
      %v2698 = vadd.f32 0.0, %v2697
      %2699 = vmatmul.f32.gmra.mxu0 %v2584
      %v2700 = vpop.f32.mrf.mxu0
      %v2701 = vadd.f32 0.0, %v2700
      %2702 = vmatmul.f32.gmra.mxu0 %v2587
      %v2703 = vpop.f32.mrf.mxu0
      %v2704 = vadd.f32 0.0, %v2703
      %2705 = vmatmul.f32.gmra.mxu0 %v2590
      %v2706 = vpop.f32.mrf.mxu0
      %v2707 = vadd.f32 0.0, %v2706
      %2708 = vmatmul.f32.gmra.mxu0 %v2593
      %v2709 = vpop.f32.mrf.mxu0
      %v2710 = vadd.f32 0.0, %v2709
      %2711 = vmatmul.f32.gmra.mxu0 %v2596
      %v2712 = vpop.f32.mrf.mxu0
      %v2713 = vadd.f32 0.0, %v2712
      %2714 = vmatmul.f32.gmra.mxu0 %v2599
      %v2715 = vpop.f32.mrf.mxu0
      %v2716 = vadd.f32 0.0, %v2715
      %2717 = vmatmul.f32.gmra.mxu0 %v2602
      %v2718 = vpop.f32.mrf.mxu0
      %v2719 = vadd.f32 0.0, %v2718
      %2720 = vmatmul.f32.gmra.mxu0 %v2605
      %v2721 = vpop.f32.mrf.mxu0
      %v2722 = vadd.f32 0.0, %v2721
      %2723 = vmatmul.f32.gmra.mxu0 %v2608
      %v2724 = vpop.f32.mrf.mxu0
      %v2725 = vadd.f32 0.0, %v2724
      %2726 = vmatmul.f32.gmra.mxu0 %v2611
      %v2727 = vpop.f32.mrf.mxu0
      %v2728 = vadd.f32 0.0, %v2727
      %2729 = vmatmul.f32.gmra.mxu0 %v2614
      %v2730 = vpop.f32.mrf.mxu0
      %v2731 = vadd.f32 0.0, %v2730
      %2732 = vmatmul.f32.gmra.mxu0 %v2617
      %v2733 = vpop.f32.mrf.mxu0
      %v2734 = vadd.f32 0.0, %v2733
      %2735 = vmatmul.f32.gmra.mxu0 %v2620
      %v2736 = vpop.f32.mrf.mxu0
      %v2737 = vadd.f32 0.0, %v2736
      %2738 = vmatmul.f32.gmra.mxu0 %v2623
      %v2739 = vpop.f32.mrf.mxu0
      %v2740 = vadd.f32 0.0, %v2739
      %2741 = vmatmul.f32.gmra.mxu0 %v2626
      %v2742 = vpop.f32.mrf.mxu0
      %v2743 = vadd.f32 0.0, %v2742
      %2744 = vmatmul.f32.gmra.mxu0 %v2629
      %v2745 = vpop.f32.mrf.mxu0
      %v2746 = vadd.f32 0.0, %v2745
      %2747 = vmatmul.f32.gmra.mxu0 %v2632
      %v2748 = vpop.f32.mrf.mxu0
      %v2749 = vadd.f32 0.0, %v2748
      %2750 = vmatmul.f32.gmra.mxu0 %v2635
      %v2751 = vpop.f32.mrf.mxu0
      %v2752 = vadd.f32 0.0, %v2751
      %2753 = vmatmul.f32.gmra.mxu0 %v2638
      %v2754 = vpop.f32.mrf.mxu0
      %v2755 = vadd.f32 0.0, %v2754
      %2756 = vmatmul.f32.gmra.mxu0 %v2641
      %v2757 = vpop.f32.mrf.mxu0
      %v2758 = vadd.f32 0.0, %v2757
      %2759 = vmatmul.f32.gmra.mxu0 %v2644
      %v2760 = vpop.f32.mrf.mxu0
      %v2761 = vadd.f32 0.0, %v2760
      %2762 = vmatmul.f32.gmra.mxu0 %v2647
      %v2763 = vpop.f32.mrf.mxu0
      %v2764 = vadd.f32 0.0, %v2763
      %2765 = vmatmul.f32.gmra.mxu0 %v2650
      %v2766 = vpop.f32.mrf.mxu0
      %v2767 = vadd.f32 0.0, %v2766
      %2768 = vmatmul.f32.gmra.mxu0 %v2653
      %v2769 = vpop.f32.mrf.mxu0
      %v2770 = vadd.f32 0.0, %v2769
      %2771 = vmatmul.f32.gmra.mxu0 %v2656
      %v2772 = vpop.f32.mrf.mxu0
      %v2773 = vadd.f32 0.0, %v2772
      %2774 = vmatmul.f32.gmra.mxu0 %v2659
      %v2775 = vpop.f32.mrf.mxu0
      %v2776 = vadd.f32 0.0, %v2775
      %2777 = vmatmul.f32.gmra.mxu0 %v2662
      %v2778 = vpop.f32.mrf.mxu0
      %v2779 = vadd.f32 0.0, %v2778
      %2780 = vmatmul.f32.gmra.mxu0 %v2665
      %v2781 = vpop.f32.mrf.mxu0
      %v2782 = vadd.f32 0.0, %v2781
      %2783 = vmatmul.f32.gmra.mxu0 %v2668
      %v2784 = vpop.f32.mrf.mxu0
      %v2785 = vadd.f32 0.0, %v2784
      %2786 = vmatmul.f32.gmra.mxu0 %v2671
      %v2787 = vpop.f32.mrf.mxu0
      %v2788 = vadd.f32 0.0, %v2787
      %2789 = vmatmul.f32.gmra.mxu0 %v2674
      %v2790 = vpop.f32.mrf.mxu0
      %v2791 = vadd.f32 0.0, %v2790
      %2792 = vdwg.mxu0
      %2793 = vst [vmem:[%s417] sm:$0xff] %v2698
      %2794 = vst [vmem:[%s417 + $0x8] sm:$0xff] %v2701
      %2795 = vst [vmem:[%s417 + $0x10] sm:$0xff] %v2704
      %2796 = vst [vmem:[%s417 + $0x18] sm:$0xff] %v2707
      %2797 = vst [vmem:[%s417 + $0x20] sm:$0xff] %v2710
      %2798 = vst [vmem:[%s417 + $0x28] sm:$0xff] %v2713
      %2799 = vst [vmem:[%s417 + $0x30] sm:$0xff] %v2716
      %2800 = vst [vmem:[%s417 + $0x38] sm:$0xff] %v2719
      %2801 = vst [vmem:[%s417 + $0x40] sm:$0xff] %v2722
      %2802 = vst [vmem:[%s417 + $0x48] sm:$0xff] %v2725
      %2803 = vst [vmem:[%s417 + $0x50] sm:$0xff] %v2728
      %2804 = vst [vmem:[%s417 + $0x58] sm:$0xff] %v2731
      %2805 = vst [vmem:[%s417 + $0x60] sm:$0xff] %v2734
      %2806 = vst [vmem:[%s417 + $0x68] sm:$0xff] %v2737
      %2807 = vst [vmem:[%s417 + $0x70] sm:$0xff] %v2740
      %2808 = vst [vmem:[%s417 + $0x78] sm:$0xff] %v2743
      %2809 = vst [vmem:[%s417 + $0x80] sm:$0xff] %v2746
      %2810 = vst [vmem:[%s417 + $0x88] sm:$0xff] %v2749
      %2811 = vst [vmem:[%s417 + $0x90] sm:$0xff] %v2752
      %2812 = vst [vmem:[%s417 + $0x98] sm:$0xff] %v2755
      %2813 = vst [vmem:[%s417 + $0xa0] sm:$0xff] %v2758
      %2814 = vst [vmem:[%s417 + $0xa8] sm:$0xff] %v2761
      %2815 = vst [vmem:[%s417 + $0xb0] sm:$0xff] %v2764
      %2816 = vst [vmem:[%s417 + $0xb8] sm:$0xff] %v2767
      %2817 = vst [vmem:[%s417 + $0xc0] sm:$0xff] %v2770
      %2818 = vst [vmem:[%s417 + $0xc8] sm:$0xff] %v2773
      %2819 = vst [vmem:[%s417 + $0xd0] sm:$0xff] %v2776
      %2820 = vst [vmem:[%s417 + $0xd8] sm:$0xff] %v2779
      %2821 = vst [vmem:[%s417 + $0xe0] sm:$0xff] %v2782
      %2822 = vst [vmem:[%s417 + $0xe8] sm:$0xff] %v2785
      %2823 = vst [vmem:[%s417 + $0xf0] sm:$0xff] %v2788
      %2824 = vst [vmem:[%s417 + $0xf8] sm:$0xff] %v2791
      %s2825 = smul.u32 32, %s19
      %p2826 = scmp.lt.s32.totalorder %s2825, 63
      %s2827 = scalar_select %p2826, %s2825, 63
      %s2828 = smul.addr %s2827, 8
      %s2829 = scalar_lea.vmem %s8, %s2828
      // Predicated region
      $region53: #{deform_conv2dcd_forward.3} parent=51 // pred_check
        %p2830 = pneg %p235
      $region54: #{deform_conv2dcd_forward.3} parent=51 // pred_check_branch
        %2832 = sbr.rel (%p2830) target = $region56
      $region55: #{deform_conv2dcd_forward.3} parent=51 // pred_region
        %s2833 = smul.u32 32, %s19
      $region56: #{deform_conv2dcd_forward.3} parent=51 // pred_fallthru
        _
    $region52: #{deform_conv2dcd_forward.3} parent=5 // pred_fallthru
      _
    %p2834 = scmp.le.s32.totalorder 2, %s14
    // Predicated region
    $region57: #{deform_conv2dcd_forward.3} parent=5 // pred_check
      %p2835 = pneg %p2834
    $region58: #{deform_conv2dcd_forward.3} parent=5 // pred_check_branch
      %2837 = sbr.rel (%p2835) target = $region60
    $region59: #{deform_conv2dcd_forward.3} parent=5 // pred_region
      %s2838 = ssub.s32 %s14, 2
      // Predicated region
      $region61: #{deform_conv2dcd_forward.3} parent=59 // pred_check
        %p2839 = pneg %p241
      $region62: #{deform_conv2dcd_forward.3} parent=59 // pred_check_branch
        %2841 = sbr.rel (%p2839) target = $region64
      $region63: #{deform_conv2dcd_forward.3} parent=59 // pred_region
        %s2842 = smul.u32 32, %s20
        %p2843 = scmp.lt.s32.totalorder %s2842, 63
        %s2844 = scalar_select %p2843, %s2842, 63
        %s2845 = smul.addr %s2844, 8
        %s2846 = scalar_lea.vmem %s8, %s2845
      $region64: #{deform_conv2dcd_forward.3} parent=59 // pred_fallthru
        _
    $region60: #{deform_conv2dcd_forward.3} parent=5 // pred_fallthru
      _
  $region6: #{deform_conv2dcd_forward.3} parent=0 // loop_footer
    %s18 = sadd.s32 1, %s14
  $region7: #{deform_conv2dcd_forward.3} parent=0 // loop_footer_branch
    %13 = sbr.rel target = $region3
  $region8: #{deform_conv2dcd_forward.3} parent=0 // loop_exit
    _

</llo_original>
